<compile_context>
chip_gen: v7x
topology: tpu7x:2x2x1
jax: 0.10.0
libtpu: 0.0.40
codegen_flags: <defaults>
</compile_context>

<pallas_src>
import functools

import numpy as np
import jax
import jax.numpy as jnp
from jax.experimental import pallas as pl
from jax.experimental.pallas import tpu as pltpu

_LANE = 128


# ----------------------------------------------------------------------------
# Weight packing (host-side, run once).
# ----------------------------------------------------------------------------
def _pack_encoder(w, b, *, w_in, stride, pad, pool_stride, wp_out, col_stride):
    """Conv2d (+ReLU+MaxPool over width) -> (k*col_stride, 256) matrix + (1,128) bias.

    LHS row layout : col = kh*col_stride + wi*Cin + ci        (image row kh of the window)
    Output layout  : col = blk*128 + wp*Cout + co,  conv wo = pool_stride*wp + blk
    """
    w = np.asarray(w, np.float32)            # (Cout, Cin, k, k)
    b = np.asarray(b, np.float32)
    cout, cin, k, _ = w.shape
    w_conv = (w_in + 2 * pad - k) // stride + 1
    mat = np.zeros((k * col_stride, 2 * _LANE), np.float32)
    for kh in range(k):
        for blk in range(2):
            for wp in range(wp_out):
                wo = pool_stride * wp + blk
                if wo >= w_conv:
                    continue
                for kw in range(k):
                    wi = stride * wo - pad + kw
                    if wi < 0 or wi >= w_in:
                        continue
                    for ci in range(cin):
                        row = kh * col_stride + wi * cin + ci
                        col = blk * _LANE + wp * cout
                        mat[row, col:col + cout] += w[:, ci, kh, kw]
    brow = np.zeros((1, _LANE), np.float32)
    for wp in range(wp_out):
        brow[0, wp * cout: wp * cout + cout] = b
    return jnp.asarray(mat, jnp.bfloat16), jnp.asarray(brow, jnp.float32)


def _pack_decoder(w, b, *, w_in, w_out, stride, pad, col_stride):
    """ConvTranspose2d -> input-stationary (col_stride, k*128) matrix + (1,128) bias.

    LHS row layout : col = iw*Cin + ci           (one input image row)
    Output layout  : col = kh*128 + ow*Cout + co,  ow = stride*iw + kw - pad
    """
    w = np.asarray(w, np.float32)            # (Cin, Cout, k, k)
    b = np.asarray(b, np.float32)
    cin, cout, k, _ = w.shape
    mat = np.zeros((col_stride, k * _LANE), np.float32)
    for kh in range(k):
        for kw in range(k):
            for iw in range(w_in):
                ow = stride * iw + kw - pad
                if ow < 0 or ow >= w_out:
                    continue
                for ci in range(cin):
                    row = iw * cin + ci
                    col = kh * _LANE + ow * cout
                    mat[row, col:col + cout] += w[ci, :, kh, kw]
    brow = np.zeros((1, _LANE), np.float32)
    for ow in range(w_out):
        brow[0, ow * cout: ow * cout + cout] = b
    return jnp.asarray(mat, jnp.bfloat16), jnp.asarray(brow, jnp.float32)


def pack_params(params):
    m1, b1 = _pack_encoder(params["e0_w"], params["e0_b"], w_in=28, stride=3,
                           pad=1, pool_stride=2, wp_out=5, col_stride=32)
    m2, b2 = _pack_encoder(params["e1_w"], params["e1_b"], w_in=5, stride=2,
                           pad=1, pool_stride=1, wp_out=2, col_stride=128)
    md1, bd1 = _pack_decoder(params["d0_w"], params["d0_b"], w_in=2, w_out=5,
                             stride=2, pad=0, col_stride=128)
    md2, bd2 = _pack_decoder(params["d1_w"], params["d1_b"], w_in=5, w_out=15,
                             stride=3, pad=1, col_stride=128)
    md3, bd3 = _pack_decoder(params["d2_w"], params["d2_b"], w_in=15, w_out=28,
                             stride=2, pad=1, col_stride=128)
    return dict(m1=m1, b1=b1, m2=m2, b2=b2, md1=md1, bd1=bd1,
                md2=md2, bd2=bd2, md3=md3, bd3=bd3)


# ----------------------------------------------------------------------------
# The fused Pallas kernel (one grid step = TB images).
# ----------------------------------------------------------------------------
def _autoencoder_kernel(x_ref, m1_ref, b1_ref, m2_ref, b2_ref,
                        md1_ref, bd1_ref, md2_ref, bd2_ref, md3_ref, bd3_ref,
                        enc_ref, dec_ref,
                        lhs1_ref, lhs2_ref, a3_ref, a4_ref, *, tb):
    f32 = jnp.float32
    bf16 = jnp.bfloat16
    TB = tb

    # Zero the two encoder staging buffers: provides the conv zero-padding rows
    # and guarantees the unused pad lanes are finite (they hit zero matrix rows).
    lhs1_ref[...] = jnp.zeros_like(lhs1_ref)
    lhs2_ref[...] = jnp.zeros_like(lhs2_ref)

    # ---- encoder 1: Conv2d(1,16,3,s=3,p=1) + ReLU + MaxPool2d(2,2): 28x28x1 -> 5x5x16
    for ho in range(10):                       # conv output rows
        for kh in range(3):
            r = 3 * ho - 1 + kh                # conv input row (padding=1)
            if 0 <= r < 28:
                lhs1_ref[pl.ds(ho * TB, TB), pl.ds(kh * 32, 28)] = x_ref[r]
    y1 = jnp.dot(lhs1_ref[...].astype(bf16), m1_ref[...],
                 preferred_element_type=f32)                     # (10*TB, 256)
    a1_rows = []
    for hp in range(5):                        # pooled rows: max over row pair + width pair
        r0 = y1[(2 * hp) * TB:(2 * hp + 1) * TB, :]
        r1 = y1[(2 * hp + 1) * TB:(2 * hp + 2) * TB, :]
        m = jnp.maximum(jnp.maximum(r0[:, :128], r0[:, 128:]),
                        jnp.maximum(r1[:, :128], r1[:, 128:]))
        a1_rows.append(jnp.maximum(m + b1_ref[...], 0.0))        # (TB, 128)

    # ---- encoder 2: Conv2d(16,8,3,s=2,p=1) + ReLU + MaxPool2d(2,s=1): 5x5x16 -> 2x2x8
    for ho in range(3):
        for kh in range(3):
            r = 2 * ho - 1 + kh
            if 0 <= r < 5:
                lhs2_ref[pl.ds(ho * TB, TB), pl.ds(kh * 128, 128)] = a1_rows[r]
    y2 = jnp.dot(lhs2_ref[...].astype(bf16), m2_ref[...],
                 preferred_element_type=f32)                     # (3*TB, 256)
    convw = [jnp.maximum(y2[ho * TB:(ho + 1) * TB, :128],
                         y2[ho * TB:(ho + 1) * TB, 128:]) for ho in range(3)]
    enc_rows = []
    for hp in range(2):
        e = jnp.maximum(jnp.maximum(convw[hp], convw[hp + 1]) + b2_ref[...], 0.0)
        enc_rows.append(e)
        enc_ref[hp] = e                        # lane-dense (TB, 128) store

    # ---- decoder 1: ConvTranspose2d(8,16,3,s=2) + ReLU: 2x2x8 -> 5x5x16
    z1 = jnp.dot(jnp.concatenate(enc_rows, axis=0).astype(bf16), md1_ref[...],
                 preferred_element_type=f32)                     # (2*TB, 384)
    for oh in range(5):
        acc = None
        for kh in range(3):
            t = oh - kh
            if t >= 0 and t % 2 == 0 and t // 2 < 2:
                c = z1[(t // 2) * TB:(t // 2 + 1) * TB, kh * 128:(kh + 1) * 128]
                acc = c if acc is None else acc + c
        if acc is None:
            acc = jnp.zeros((TB, 128), f32)
        a3_ref[pl.ds(oh * TB, TB), :] = jnp.maximum(acc + bd1_ref[...], 0.0)

    # ---- decoder 2: ConvTranspose2d(16,8,5,s=3,p=1) + ReLU: 5x5x16 -> 15x15x8
    z2 = jnp.dot(a3_ref[...].astype(bf16), md2_ref[...],
                 preferred_element_type=f32)                     # (5*TB, 640)
    for oh in range(15):
        acc = None
        for kh in range(5):
            t = oh + 1 - kh
            if t >= 0 and t % 3 == 0 and t // 3 < 5:
                c = z2[(t // 3) * TB:(t // 3 + 1) * TB, kh * 128:(kh + 1) * 128]
                acc = c if acc is None else acc + c
        if acc is None:
            acc = jnp.zeros((TB, 128), f32)
        a4_ref[pl.ds(oh * TB, TB), :] = jnp.maximum(acc + bd2_ref[...], 0.0)

    # ---- decoder 3: ConvTranspose2d(8,1,2,s=2,p=1) + Tanh: 15x15x8 -> 28x28x1
    z3 = jnp.dot(a4_ref[...].astype(bf16), md3_ref[...],
                 preferred_element_type=f32)                     # (15*TB, 256)
    for oh in range(28):
        acc = None
        for kh in range(2):
            t = oh + 1 - kh
            if t >= 0 and t % 2 == 0 and t // 2 < 15:
                c = z3[(t // 2) * TB:(t // 2 + 1) * TB, kh * 128:(kh + 1) * 128]
                acc = c if acc is None else acc + c
        if acc is None:
            acc = jnp.zeros((TB, 128), f32)
        dec_ref[oh] = jnp.tanh(acc + bd3_ref[...])               # lane-dense (TB, 128) store


def _choose_tb(batch):
    # Prefer TB=16 (good MXU M) while keeping grid >= 2 for v7x's two TensorCores.
    if batch % 32 == 0:
        return 16
    if batch % 16 == 0:
        return 8
    if batch % 8 == 0:
        return 8
    return batch


def _fused_call(batch, tb):
    n_blk = batch // tb

    def wfull(shape):
        return pl.BlockSpec(shape, lambda i: (0, 0))

    in_specs = [
        pl.BlockSpec((28, tb, 28), lambda i: (0, i, 0)),   # x rows (row-major, batch-minor)
        wfull((96, 256)), wfull((1, 128)),                 # encoder conv1 (pool fused)
        wfull((384, 256)), wfull((1, 128)),                # encoder conv2 (pool fused)
        wfull((128, 384)), wfull((1, 128)),                # decoder convT1 (kh stacked on N)
        wfull((128, 640)), wfull((1, 128)),                # decoder convT2
        wfull((128, 256)), wfull((1, 128)),                # decoder convT3
    ]
    out_specs = [
        pl.BlockSpec((2, tb, 128), lambda i: (0, i, 0)),   # encode slab (lane-dense)
        pl.BlockSpec((28, tb, 128), lambda i: (0, i, 0)),  # decode slab (lane-dense)
    ]
    out_shape = (
        jax.ShapeDtypeStruct((2, batch, 128), jnp.float32),
        jax.ShapeDtypeStruct((28, batch, 128), jnp.float32),
    )
    scratch = [
        pltpu.VMEM((10 * tb, 96), jnp.float32),    # encoder-1 im2col staging
        pltpu.VMEM((3 * tb, 384), jnp.float32),    # encoder-2 im2col staging
        pltpu.VMEM((5 * tb, 128), jnp.float32),    # decoder-1 activation
        pltpu.VMEM((15 * tb, 128), jnp.float32),   # decoder-2 activation
    ]
    return pl.pallas_call(
        functools.partial(_autoencoder_kernel, tb=tb),
        out_shape=out_shape,
        grid_spec=pltpu.PrefetchScalarGridSpec(
            num_scalar_prefetch=0,
            grid=(n_blk,),
            in_specs=in_specs,
            out_specs=out_specs,
            scratch_shapes=scratch),
        compiler_params=pltpu.CompilerParams(
            dimension_semantics=("parallel",),
            vmem_limit_bytes=32 * 1024 * 1024),
    )


# ----------------------------------------------------------------------------
# Parameters (deterministic synthetic init, shapes from the nn.Module __init__)
# ----------------------------------------------------------------------------
def init_params(key):
    def uniform(key, shape, fan_in):
        bound = 1.0 / np.sqrt(float(fan_in))
        return jax.random.uniform(key, shape, jnp.float32, -bound, bound)

    keys = jax.random.split(key, 10)
    return {
        "e0_w": uniform(keys[0], (16, 1, 3, 3), 1 * 9),
        "e0_b": uniform(keys[1], (16,), 1 * 9),
        "e1_w": uniform(keys[2], (8, 16, 3, 3), 16 * 9),
        "e1_b": uniform(keys[3], (8,), 16 * 9),
        "d0_w": uniform(keys[4], (8, 16, 3, 3), 8 * 9),    # ConvTranspose2d(8,16,3)
        "d0_b": uniform(keys[5], (16,), 8 * 9),
        "d1_w": uniform(keys[6], (16, 8, 5, 5), 16 * 25),  # ConvTranspose2d(16,8,5)
        "d1_b": uniform(keys[7], (8,), 16 * 25),
        "d2_w": uniform(keys[8], (8, 1, 2, 2), 8 * 4),     # ConvTranspose2d(8,1,2)
        "d2_b": uniform(keys[9], (1,), 8 * 4),
    }


# ----------------------------------------------------------------------------
# Forward pass (matches autoencoder.forward: returns (encode, decode))
# ----------------------------------------------------------------------------
@jax.jit
def autoencoder_forward(packed, x):
    batch = x.shape[0]
    tb = _choose_tb(batch)
    # Layout plumbing only: present rows as (H, B, W) so in-kernel gathers are
    # contiguous (TB, W) blocks; no padding, DMA size unchanged.
    x_rows = jnp.transpose(x[:, 0, :, :], (1, 0, 2))               # (28, B, 28)
    enc_raw, dec_raw = _fused_call(batch, tb)(
        x_rows,
        packed["m1"], packed["b1"],
        packed["m2"], packed["b2"],
        packed["md1"], packed["bd1"],
        packed["md2"], packed["bd2"],
        packed["md3"], packed["bd3"],
    )
    # encode: (2, B, 128) -> (B, 8, 2, 2)    lanes = wp*8 + co
    enc = enc_raw[:, :, :16].reshape(2, batch, 2, 8)               # (hp, b, wp, co)
    encode = jnp.transpose(enc, (1, 3, 0, 2))                      # (b, co, hp, wp)
    # decode: (28, B, 128) -> (B, 1, 28, 28)  lanes = ow
    decode = jnp.transpose(dec_raw[:, :, :28], (1, 0, 2)).reshape(batch, 1, 28, 28)
    return encode, decode


if __name__ == "__main__":
    key = jax.random.PRNGKey(0)
    pkey, xkey = jax.random.split(key)
    params = init_params(pkey)
    packed = pack_params(params)            # one-time weight layout packing

    # MNIST-shaped input implied by the module: (B, 1, 28, 28); B=32 -> TB=16, grid=(2,)
    x = jax.random.normal(xkey, (32, 1, 28, 28), jnp.float32)

    encode, decode = autoencoder_forward(packed, x)
    jax.block_until_ready((encode, decode))

    assert encode.shape == (32, 8, 2, 2), encode.shape
    assert decode.shape == (32, 1, 28, 28), decode.shape
    assert bool(jnp.all(jnp.isfinite(encode))) and bool(jnp.all(jnp.isfinite(decode)))
    assert float(jnp.max(jnp.abs(decode))) <= 1.0 + 1e-6           # tanh range
    assert float(jnp.min(encode)) >= 0.0                           # ReLU range

    print("KERNEL_OK")
</pallas_src>

<mosaic_0001>
module attributes {stable_mosaic.version = 11 : i64} {
  func.func @_autoencoder_kernel(%arg0: i32, %arg1: memref<28x16x28xf32, #tpu.memory_space<vmem>>, %arg2: memref<96x256xbf16, #tpu.memory_space<vmem>>, %arg3: memref<1x128xf32, #tpu.memory_space<vmem>>, %arg4: memref<384x256xbf16, #tpu.memory_space<vmem>>, %arg5: memref<1x128xf32, #tpu.memory_space<vmem>>, %arg6: memref<128x384xbf16, #tpu.memory_space<vmem>>, %arg7: memref<1x128xf32, #tpu.memory_space<vmem>>, %arg8: memref<128x640xbf16, #tpu.memory_space<vmem>>, %arg9: memref<1x128xf32, #tpu.memory_space<vmem>>, %arg10: memref<128x256xbf16, #tpu.memory_space<vmem>>, %arg11: memref<1x128xf32, #tpu.memory_space<vmem>>, %arg12: memref<2x16x128xf32, #tpu.memory_space<vmem>>, %arg13: memref<28x16x128xf32, #tpu.memory_space<vmem>>, %arg14: memref<160x96xf32, #tpu.memory_space<vmem>>, %arg15: memref<48x384xf32, #tpu.memory_space<vmem>>, %arg16: memref<80x128xf32, #tpu.memory_space<vmem>>, %arg17: memref<240x128xf32, #tpu.memory_space<vmem>>) attributes {dimension_semantics = [#tpu.dimension_semantics<parallel>], iteration_bounds = array<i64: 2>, scalar_prefetch = 0 : i64, scratch_operands = 4 : i64, tpu.core_type = #tpu.core_type<tc>, window_params = [{transform_indices = @transform_0, window_bounds = array<i64: 28, 16, 28>}, {pipeline_mode = #tpu.pipeline_mode<synchronous>, transform_indices = @transform_1, window_bounds = array<i64: 96, 256>}, {pipeline_mode = #tpu.pipeline_mode<synchronous>, transform_indices = @transform_2, window_bounds = array<i64: 1, 128>}, {pipeline_mode = #tpu.pipeline_mode<synchronous>, transform_indices = @transform_3, window_bounds = array<i64: 384, 256>}, {pipeline_mode = #tpu.pipeline_mode<synchronous>, transform_indices = @transform_4, window_bounds = array<i64: 1, 128>}, {pipeline_mode = #tpu.pipeline_mode<synchronous>, transform_indices = @transform_5, window_bounds = array<i64: 128, 384>}, {pipeline_mode = #tpu.pipeline_mode<synchronous>, transform_indices = @transform_6, window_bounds = array<i64: 1, 128>}, {pipeline_mode = #tpu.pipeline_mode<synchronous>, transform_indices = @transform_7, window_bounds = array<i64: 128, 640>}, {pipeline_mode = #tpu.pipeline_mode<synchronous>, transform_indices = @transform_8, window_bounds = array<i64: 1, 128>}, {pipeline_mode = #tpu.pipeline_mode<synchronous>, transform_indices = @transform_9, window_bounds = array<i64: 128, 256>}, {pipeline_mode = #tpu.pipeline_mode<synchronous>, transform_indices = @transform_10, window_bounds = array<i64: 1, 128>}, {transform_indices = @transform_11, window_bounds = array<i64: 2, 16, 128>}, {transform_indices = @transform_12, window_bounds = array<i64: 28, 16, 128>}]} {
    %cst = arith.constant 0.000000e+00 : f32
    %0 = vector.broadcast %cst : f32 to vector<160x96xf32>
    %c0 = arith.constant 0 : index
    %c0_0 = arith.constant 0 : index
    %1 = vector.load %arg14[%c0, %c0_0] : memref<160x96xf32, #tpu.memory_space<vmem>>, vector<160x96xf32>
    tpu.vector_store %arg14[%c0, %c0_0], %0 {strides = array<i32>} : memref<160x96xf32, #tpu.memory_space<vmem>>, vector<160x96xf32>,
    %cst_1 = arith.constant 0.000000e+00 : f32
    %2 = vector.broadcast %cst_1 : f32 to vector<48x384xf32>
    %c0_2 = arith.constant 0 : index
    %c0_3 = arith.constant 0 : index
    %3 = vector.load %arg15[%c0_2, %c0_3] : memref<48x384xf32, #tpu.memory_space<vmem>>, vector<48x384xf32>
    tpu.vector_store %arg15[%c0_2, %c0_3], %2 {strides = array<i32>} : memref<48x384xf32, #tpu.memory_space<vmem>>, vector<48x384xf32>,
    %c0_4 = arith.constant 0 : index
    %c0_5 = arith.constant 0 : index
    %c0_6 = arith.constant 0 : index
    %4 = vector.load %arg1[%c0_4, %c0_5, %c0_6] : memref<28x16x28xf32, #tpu.memory_space<vmem>>, vector<1x16x28xf32>
    %5 = vector.shape_cast %4 : vector<1x16x28xf32> to vector<16x28xf32>
    %c0_7 = arith.constant 0 : index
    %c32 = arith.constant 32 : index
    %6 = vector.load %arg14[%c0_7, %c32] : memref<160x96xf32, #tpu.memory_space<vmem>>, vector<16x28xf32>
    tpu.vector_store %arg14[%c0_7, %c32], %5 {strides = array<i32>} : memref<160x96xf32, #tpu.memory_space<vmem>>, vector<16x28xf32>,
    %c1 = arith.constant 1 : index
    %c0_8 = arith.constant 0 : index
    %c0_9 = arith.constant 0 : index
    %7 = vector.load %arg1[%c1, %c0_8, %c0_9] : memref<28x16x28xf32, #tpu.memory_space<vmem>>, vector<1x16x28xf32>
    %8 = vector.shape_cast %7 : vector<1x16x28xf32> to vector<16x28xf32>
    %c0_10 = arith.constant 0 : index
    %c64 = arith.constant 64 : index
    %9 = vector.load %arg14[%c0_10, %c64] : memref<160x96xf32, #tpu.memory_space<vmem>>, vector<16x28xf32>
    tpu.vector_store %arg14[%c0_10, %c64], %8 {strides = array<i32>} : memref<160x96xf32, #tpu.memory_space<vmem>>, vector<16x28xf32>,
    %c2 = arith.constant 2 : index
    %c0_11 = arith.constant 0 : index
    %c0_12 = arith.constant 0 : index
    %10 = vector.load %arg1[%c2, %c0_11, %c0_12] : memref<28x16x28xf32, #tpu.memory_space<vmem>>, vector<1x16x28xf32>
    %11 = vector.shape_cast %10 : vector<1x16x28xf32> to vector<16x28xf32>
    %c16 = arith.constant 16 : index
    %c0_13 = arith.constant 0 : index
    %12 = vector.load %arg14[%c16, %c0_13] : memref<160x96xf32, #tpu.memory_space<vmem>>, vector<16x28xf32>
    tpu.vector_store %arg14[%c16, %c0_13], %11 {strides = array<i32>} : memref<160x96xf32, #tpu.memory_space<vmem>>, vector<16x28xf32>,
    %c3 = arith.constant 3 : index
    %c0_14 = arith.constant 0 : index
    %c0_15 = arith.constant 0 : index
    %13 = vector.load %arg1[%c3, %c0_14, %c0_15] : memref<28x16x28xf32, #tpu.memory_space<vmem>>, vector<1x16x28xf32>
    %14 = vector.shape_cast %13 : vector<1x16x28xf32> to vector<16x28xf32>
    %c16_16 = arith.constant 16 : index
    %c32_17 = arith.constant 32 : index
    %15 = vector.load %arg14[%c16_16, %c32_17] : memref<160x96xf32, #tpu.memory_space<vmem>>, vector<16x28xf32>
    tpu.vector_store %arg14[%c16_16, %c32_17], %14 {strides = array<i32>} : memref<160x96xf32, #tpu.memory_space<vmem>>, vector<16x28xf32>,
    %c4 = arith.constant 4 : index
    %c0_18 = arith.constant 0 : index
    %c0_19 = arith.constant 0 : index
    %16 = vector.load %arg1[%c4, %c0_18, %c0_19] : memref<28x16x28xf32, #tpu.memory_space<vmem>>, vector<1x16x28xf32>
    %17 = vector.shape_cast %16 : vector<1x16x28xf32> to vector<16x28xf32>
    %c16_20 = arith.constant 16 : index
    %c64_21 = arith.constant 64 : index
    %18 = vector.load %arg14[%c16_20, %c64_21] : memref<160x96xf32, #tpu.memory_space<vmem>>, vector<16x28xf32>
    tpu.vector_store %arg14[%c16_20, %c64_21], %17 {strides = array<i32>} : memref<160x96xf32, #tpu.memory_space<vmem>>, vector<16x28xf32>,
    %c5 = arith.constant 5 : index
    %c0_22 = arith.constant 0 : index
    %c0_23 = arith.constant 0 : index
    %19 = vector.load %arg1[%c5, %c0_22, %c0_23] : memref<28x16x28xf32, #tpu.memory_space<vmem>>, vector<1x16x28xf32>
    %20 = vector.shape_cast %19 : vector<1x16x28xf32> to vector<16x28xf32>
    %c32_24 = arith.constant 32 : index
    %c0_25 = arith.constant 0 : index
    %21 = vector.load %arg14[%c32_24, %c0_25] : memref<160x96xf32, #tpu.memory_space<vmem>>, vector<16x28xf32>
    tpu.vector_store %arg14[%c32_24, %c0_25], %20 {strides = array<i32>} : memref<160x96xf32, #tpu.memory_space<vmem>>, vector<16x28xf32>,
    %c6 = arith.constant 6 : index
    %c0_26 = arith.constant 0 : index
    %c0_27 = arith.constant 0 : index
    %22 = vector.load %arg1[%c6, %c0_26, %c0_27] : memref<28x16x28xf32, #tpu.memory_space<vmem>>, vector<1x16x28xf32>
    %23 = vector.shape_cast %22 : vector<1x16x28xf32> to vector<16x28xf32>
    %c32_28 = arith.constant 32 : index
    %c32_29 = arith.constant 32 : index
    %24 = vector.load %arg14[%c32_28, %c32_29] : memref<160x96xf32, #tpu.memory_space<vmem>>, vector<16x28xf32>
    tpu.vector_store %arg14[%c32_28, %c32_29], %23 {strides = array<i32>} : memref<160x96xf32, #tpu.memory_space<vmem>>, vector<16x28xf32>,
    %c7 = arith.constant 7 : index
    %c0_30 = arith.constant 0 : index
    %c0_31 = arith.constant 0 : index
    %25 = vector.load %arg1[%c7, %c0_30, %c0_31] : memref<28x16x28xf32, #tpu.memory_space<vmem>>, vector<1x16x28xf32>
    %26 = vector.shape_cast %25 : vector<1x16x28xf32> to vector<16x28xf32>
    %c32_32 = arith.constant 32 : index
    %c64_33 = arith.constant 64 : index
    %27 = vector.load %arg14[%c32_32, %c64_33] : memref<160x96xf32, #tpu.memory_space<vmem>>, vector<16x28xf32>
    tpu.vector_store %arg14[%c32_32, %c64_33], %26 {strides = array<i32>} : memref<160x96xf32, #tpu.memory_space<vmem>>, vector<16x28xf32>,
    %c8 = arith.constant 8 : index
    %c0_34 = arith.constant 0 : index
    %c0_35 = arith.constant 0 : index
    %28 = vector.load %arg1[%c8, %c0_34, %c0_35] : memref<28x16x28xf32, #tpu.memory_space<vmem>>, vector<1x16x28xf32>
    %29 = vector.shape_cast %28 : vector<1x16x28xf32> to vector<16x28xf32>
    %c48 = arith.constant 48 : index
    %c0_36 = arith.constant 0 : index
    %30 = vector.load %arg14[%c48, %c0_36] : memref<160x96xf32, #tpu.memory_space<vmem>>, vector<16x28xf32>
    tpu.vector_store %arg14[%c48, %c0_36], %29 {strides = array<i32>} : memref<160x96xf32, #tpu.memory_space<vmem>>, vector<16x28xf32>,
    %c9 = arith.constant 9 : index
    %c0_37 = arith.constant 0 : index
    %c0_38 = arith.constant 0 : index
    %31 = vector.load %arg1[%c9, %c0_37, %c0_38] : memref<28x16x28xf32, #tpu.memory_space<vmem>>, vector<1x16x28xf32>
    %32 = vector.shape_cast %31 : vector<1x16x28xf32> to vector<16x28xf32>
    %c48_39 = arith.constant 48 : index
    %c32_40 = arith.constant 32 : index
    %33 = vector.load %arg14[%c48_39, %c32_40] : memref<160x96xf32, #tpu.memory_space<vmem>>, vector<16x28xf32>
    tpu.vector_store %arg14[%c48_39, %c32_40], %32 {strides = array<i32>} : memref<160x96xf32, #tpu.memory_space<vmem>>, vector<16x28xf32>,
    %c10 = arith.constant 10 : index
    %c0_41 = arith.constant 0 : index
    %c0_42 = arith.constant 0 : index
    %34 = vector.load %arg1[%c10, %c0_41, %c0_42] : memref<28x16x28xf32, #tpu.memory_space<vmem>>, vector<1x16x28xf32>
    %35 = vector.shape_cast %34 : vector<1x16x28xf32> to vector<16x28xf32>
    %c48_43 = arith.constant 48 : index
    %c64_44 = arith.constant 64 : index
    %36 = vector.load %arg14[%c48_43, %c64_44] : memref<160x96xf32, #tpu.memory_space<vmem>>, vector<16x28xf32>
    tpu.vector_store %arg14[%c48_43, %c64_44], %35 {strides = array<i32>} : memref<160x96xf32, #tpu.memory_space<vmem>>, vector<16x28xf32>,
    %c11 = arith.constant 11 : index
    %c0_45 = arith.constant 0 : index
    %c0_46 = arith.constant 0 : index
    %37 = vector.load %arg1[%c11, %c0_45, %c0_46] : memref<28x16x28xf32, #tpu.memory_space<vmem>>, vector<1x16x28xf32>
    %38 = vector.shape_cast %37 : vector<1x16x28xf32> to vector<16x28xf32>
    %c64_47 = arith.constant 64 : index
    %c0_48 = arith.constant 0 : index
    %39 = vector.load %arg14[%c64_47, %c0_48] : memref<160x96xf32, #tpu.memory_space<vmem>>, vector<16x28xf32>
    tpu.vector_store %arg14[%c64_47, %c0_48], %38 {strides = array<i32>} : memref<160x96xf32, #tpu.memory_space<vmem>>, vector<16x28xf32>,
    %c12 = arith.constant 12 : index
    %c0_49 = arith.constant 0 : index
    %c0_50 = arith.constant 0 : index
    %40 = vector.load %arg1[%c12, %c0_49, %c0_50] : memref<28x16x28xf32, #tpu.memory_space<vmem>>, vector<1x16x28xf32>
    %41 = vector.shape_cast %40 : vector<1x16x28xf32> to vector<16x28xf32>
    %c64_51 = arith.constant 64 : index
    %c32_52 = arith.constant 32 : index
    %42 = vector.load %arg14[%c64_51, %c32_52] : memref<160x96xf32, #tpu.memory_space<vmem>>, vector<16x28xf32>
    tpu.vector_store %arg14[%c64_51, %c32_52], %41 {strides = array<i32>} : memref<160x96xf32, #tpu.memory_space<vmem>>, vector<16x28xf32>,
    %c13 = arith.constant 13 : index
    %c0_53 = arith.constant 0 : index
    %c0_54 = arith.constant 0 : index
    %43 = vector.load %arg1[%c13, %c0_53, %c0_54] : memref<28x16x28xf32, #tpu.memory_space<vmem>>, vector<1x16x28xf32>
    %44 = vector.shape_cast %43 : vector<1x16x28xf32> to vector<16x28xf32>
    %c64_55 = arith.constant 64 : index
    %c64_56 = arith.constant 64 : index
    %45 = vector.load %arg14[%c64_55, %c64_56] : memref<160x96xf32, #tpu.memory_space<vmem>>, vector<16x28xf32>
    tpu.vector_store %arg14[%c64_55, %c64_56], %44 {strides = array<i32>} : memref<160x96xf32, #tpu.memory_space<vmem>>, vector<16x28xf32>,
    %c14 = arith.constant 14 : index
    %c0_57 = arith.constant 0 : index
    %c0_58 = arith.constant 0 : index
    %46 = vector.load %arg1[%c14, %c0_57, %c0_58] : memref<28x16x28xf32, #tpu.memory_space<vmem>>, vector<1x16x28xf32>
    %47 = vector.shape_cast %46 : vector<1x16x28xf32> to vector<16x28xf32>
    %c80 = arith.constant 80 : index
    %c0_59 = arith.constant 0 : index
    %48 = vector.load %arg14[%c80, %c0_59] : memref<160x96xf32, #tpu.memory_space<vmem>>, vector<16x28xf32>
    tpu.vector_store %arg14[%c80, %c0_59], %47 {strides = array<i32>} : memref<160x96xf32, #tpu.memory_space<vmem>>, vector<16x28xf32>,
    %c15 = arith.constant 15 : index
    %c0_60 = arith.constant 0 : index
    %c0_61 = arith.constant 0 : index
    %49 = vector.load %arg1[%c15, %c0_60, %c0_61] : memref<28x16x28xf32, #tpu.memory_space<vmem>>, vector<1x16x28xf32>
    %50 = vector.shape_cast %49 : vector<1x16x28xf32> to vector<16x28xf32>
    %c80_62 = arith.constant 80 : index
    %c32_63 = arith.constant 32 : index
    %51 = vector.load %arg14[%c80_62, %c32_63] : memref<160x96xf32, #tpu.memory_space<vmem>>, vector<16x28xf32>
    tpu.vector_store %arg14[%c80_62, %c32_63], %50 {strides = array<i32>} : memref<160x96xf32, #tpu.memory_space<vmem>>, vector<16x28xf32>,
    %c16_64 = arith.constant 16 : index
    %c0_65 = arith.constant 0 : index
    %c0_66 = arith.constant 0 : index
    %52 = vector.load %arg1[%c16_64, %c0_65, %c0_66] : memref<28x16x28xf32, #tpu.memory_space<vmem>>, vector<1x16x28xf32>
    %53 = vector.shape_cast %52 : vector<1x16x28xf32> to vector<16x28xf32>
    %c80_67 = arith.constant 80 : index
    %c64_68 = arith.constant 64 : index
    %54 = vector.load %arg14[%c80_67, %c64_68] : memref<160x96xf32, #tpu.memory_space<vmem>>, vector<16x28xf32>
    tpu.vector_store %arg14[%c80_67, %c64_68], %53 {strides = array<i32>} : memref<160x96xf32, #tpu.memory_space<vmem>>, vector<16x28xf32>,
    %c17 = arith.constant 17 : index
    %c0_69 = arith.constant 0 : index
    %c0_70 = arith.constant 0 : index
    %55 = vector.load %arg1[%c17, %c0_69, %c0_70] : memref<28x16x28xf32, #tpu.memory_space<vmem>>, vector<1x16x28xf32>
    %56 = vector.shape_cast %55 : vector<1x16x28xf32> to vector<16x28xf32>
    %c96 = arith.constant 96 : index
    %c0_71 = arith.constant 0 : index
    %57 = vector.load %arg14[%c96, %c0_71] : memref<160x96xf32, #tpu.memory_space<vmem>>, vector<16x28xf32>
    tpu.vector_store %arg14[%c96, %c0_71], %56 {strides = array<i32>} : memref<160x96xf32, #tpu.memory_space<vmem>>, vector<16x28xf32>,
    %c18 = arith.constant 18 : index
    %c0_72 = arith.constant 0 : index
    %c0_73 = arith.constant 0 : index
    %58 = vector.load %arg1[%c18, %c0_72, %c0_73] : memref<28x16x28xf32, #tpu.memory_space<vmem>>, vector<1x16x28xf32>
    %59 = vector.shape_cast %58 : vector<1x16x28xf32> to vector<16x28xf32>
    %c96_74 = arith.constant 96 : index
    %c32_75 = arith.constant 32 : index
    %60 = vector.load %arg14[%c96_74, %c32_75] : memref<160x96xf32, #tpu.memory_space<vmem>>, vector<16x28xf32>
    tpu.vector_store %arg14[%c96_74, %c32_75], %59 {strides = array<i32>} : memref<160x96xf32, #tpu.memory_space<vmem>>, vector<16x28xf32>,
    %c19 = arith.constant 19 : index
    %c0_76 = arith.constant 0 : index
    %c0_77 = arith.constant 0 : index
    %61 = vector.load %arg1[%c19, %c0_76, %c0_77] : memref<28x16x28xf32, #tpu.memory_space<vmem>>, vector<1x16x28xf32>
    %62 = vector.shape_cast %61 : vector<1x16x28xf32> to vector<16x28xf32>
    %c96_78 = arith.constant 96 : index
    %c64_79 = arith.constant 64 : index
    %63 = vector.load %arg14[%c96_78, %c64_79] : memref<160x96xf32, #tpu.memory_space<vmem>>, vector<16x28xf32>
    tpu.vector_store %arg14[%c96_78, %c64_79], %62 {strides = array<i32>} : memref<160x96xf32, #tpu.memory_space<vmem>>, vector<16x28xf32>,
    %c20 = arith.constant 20 : index
    %c0_80 = arith.constant 0 : index
    %c0_81 = arith.constant 0 : index
    %64 = vector.load %arg1[%c20, %c0_80, %c0_81] : memref<28x16x28xf32, #tpu.memory_space<vmem>>, vector<1x16x28xf32>
    %65 = vector.shape_cast %64 : vector<1x16x28xf32> to vector<16x28xf32>
    %c112 = arith.constant 112 : index
    %c0_82 = arith.constant 0 : index
    %66 = vector.load %arg14[%c112, %c0_82] : memref<160x96xf32, #tpu.memory_space<vmem>>, vector<16x28xf32>
    tpu.vector_store %arg14[%c112, %c0_82], %65 {strides = array<i32>} : memref<160x96xf32, #tpu.memory_space<vmem>>, vector<16x28xf32>,
    %c21 = arith.constant 21 : index
    %c0_83 = arith.constant 0 : index
    %c0_84 = arith.constant 0 : index
    %67 = vector.load %arg1[%c21, %c0_83, %c0_84] : memref<28x16x28xf32, #tpu.memory_space<vmem>>, vector<1x16x28xf32>
    %68 = vector.shape_cast %67 : vector<1x16x28xf32> to vector<16x28xf32>
    %c112_85 = arith.constant 112 : index
    %c32_86 = arith.constant 32 : index
    %69 = vector.load %arg14[%c112_85, %c32_86] : memref<160x96xf32, #tpu.memory_space<vmem>>, vector<16x28xf32>
    tpu.vector_store %arg14[%c112_85, %c32_86], %68 {strides = array<i32>} : memref<160x96xf32, #tpu.memory_space<vmem>>, vector<16x28xf32>,
    %c22 = arith.constant 22 : index
    %c0_87 = arith.constant 0 : index
    %c0_88 = arith.constant 0 : index
    %70 = vector.load %arg1[%c22, %c0_87, %c0_88] : memref<28x16x28xf32, #tpu.memory_space<vmem>>, vector<1x16x28xf32>
    %71 = vector.shape_cast %70 : vector<1x16x28xf32> to vector<16x28xf32>
    %c112_89 = arith.constant 112 : index
    %c64_90 = arith.constant 64 : index
    %72 = vector.load %arg14[%c112_89, %c64_90] : memref<160x96xf32, #tpu.memory_space<vmem>>, vector<16x28xf32>
    tpu.vector_store %arg14[%c112_89, %c64_90], %71 {strides = array<i32>} : memref<160x96xf32, #tpu.memory_space<vmem>>, vector<16x28xf32>,
    %c23 = arith.constant 23 : index
    %c0_91 = arith.constant 0 : index
    %c0_92 = arith.constant 0 : index
    %73 = vector.load %arg1[%c23, %c0_91, %c0_92] : memref<28x16x28xf32, #tpu.memory_space<vmem>>, vector<1x16x28xf32>
    %74 = vector.shape_cast %73 : vector<1x16x28xf32> to vector<16x28xf32>
    %c128 = arith.constant 128 : index
    %c0_93 = arith.constant 0 : index
    %75 = vector.load %arg14[%c128, %c0_93] : memref<160x96xf32, #tpu.memory_space<vmem>>, vector<16x28xf32>
    tpu.vector_store %arg14[%c128, %c0_93], %74 {strides = array<i32>} : memref<160x96xf32, #tpu.memory_space<vmem>>, vector<16x28xf32>,
    %c24 = arith.constant 24 : index
    %c0_94 = arith.constant 0 : index
    %c0_95 = arith.constant 0 : index
    %76 = vector.load %arg1[%c24, %c0_94, %c0_95] : memref<28x16x28xf32, #tpu.memory_space<vmem>>, vector<1x16x28xf32>
    %77 = vector.shape_cast %76 : vector<1x16x28xf32> to vector<16x28xf32>
    %c128_96 = arith.constant 128 : index
    %c32_97 = arith.constant 32 : index
    %78 = vector.load %arg14[%c128_96, %c32_97] : memref<160x96xf32, #tpu.memory_space<vmem>>, vector<16x28xf32>
    tpu.vector_store %arg14[%c128_96, %c32_97], %77 {strides = array<i32>} : memref<160x96xf32, #tpu.memory_space<vmem>>, vector<16x28xf32>,
    %c25 = arith.constant 25 : index
    %c0_98 = arith.constant 0 : index
    %c0_99 = arith.constant 0 : index
    %79 = vector.load %arg1[%c25, %c0_98, %c0_99] : memref<28x16x28xf32, #tpu.memory_space<vmem>>, vector<1x16x28xf32>
    %80 = vector.shape_cast %79 : vector<1x16x28xf32> to vector<16x28xf32>
    %c128_100 = arith.constant 128 : index
    %c64_101 = arith.constant 64 : index
    %81 = vector.load %arg14[%c128_100, %c64_101] : memref<160x96xf32, #tpu.memory_space<vmem>>, vector<16x28xf32>
    tpu.vector_store %arg14[%c128_100, %c64_101], %80 {strides = array<i32>} : memref<160x96xf32, #tpu.memory_space<vmem>>, vector<16x28xf32>,
    %c26 = arith.constant 26 : index
    %c0_102 = arith.constant 0 : index
    %c0_103 = arith.constant 0 : index
    %82 = vector.load %arg1[%c26, %c0_102, %c0_103] : memref<28x16x28xf32, #tpu.memory_space<vmem>>, vector<1x16x28xf32>
    %83 = vector.shape_cast %82 : vector<1x16x28xf32> to vector<16x28xf32>
    %c144 = arith.constant 144 : index
    %c0_104 = arith.constant 0 : index
    %84 = vector.load %arg14[%c144, %c0_104] : memref<160x96xf32, #tpu.memory_space<vmem>>, vector<16x28xf32>
    tpu.vector_store %arg14[%c144, %c0_104], %83 {strides = array<i32>} : memref<160x96xf32, #tpu.memory_space<vmem>>, vector<16x28xf32>,
    %c27 = arith.constant 27 : index
    %c0_105 = arith.constant 0 : index
    %c0_106 = arith.constant 0 : index
    %85 = vector.load %arg1[%c27, %c0_105, %c0_106] : memref<28x16x28xf32, #tpu.memory_space<vmem>>, vector<1x16x28xf32>
    %86 = vector.shape_cast %85 : vector<1x16x28xf32> to vector<16x28xf32>
    %c144_107 = arith.constant 144 : index
    %c32_108 = arith.constant 32 : index
    %87 = vector.load %arg14[%c144_107, %c32_108] : memref<160x96xf32, #tpu.memory_space<vmem>>, vector<16x28xf32>
    tpu.vector_store %arg14[%c144_107, %c32_108], %86 {strides = array<i32>} : memref<160x96xf32, #tpu.memory_space<vmem>>, vector<16x28xf32>,
    %c0_109 = arith.constant 0 : index
    %c0_110 = arith.constant 0 : index
    %88 = vector.load %arg14[%c0_109, %c0_110] : memref<160x96xf32, #tpu.memory_space<vmem>>, vector<160x96xf32>
    %89 = arith.truncf %88 : vector<160x96xf32> to vector<160x96xbf16>
    %c0_111 = arith.constant 0 : index
    %c0_112 = arith.constant 0 : index
    %90 = vector.load %arg2[%c0_111, %c0_112] : memref<96x256xbf16, #tpu.memory_space<vmem>>, vector<96x256xbf16>
    %cst_113 = arith.constant dense<0.000000e+00> : vector<160x256xf32>
    %91 = tpu.matmul %89, %90, %cst_113 {dimension_numbers = #tpu.dot_dimension_numbers<[1], [0], [0], [1], [0, 0, 1, 1], [], []>} : vector<160x96xbf16>, vector<96x256xbf16>, vector<160x256xf32> -> vector<160x256xf32>
    %92 = vector.extract_strided_slice %91 {offsets = [0, 0], sizes = [16, 256], strides = [1, 1]} : vector<160x256xf32> to vector<16x256xf32>
    %93 = vector.extract_strided_slice %91 {offsets = [16, 0], sizes = [16, 256], strides = [1, 1]} : vector<160x256xf32> to vector<16x256xf32>
    %94 = vector.extract_strided_slice %92 {offsets = [0, 0], sizes = [16, 128], strides = [1, 1]} : vector<16x256xf32> to vector<16x128xf32>
    %95 = vector.extract_strided_slice %92 {offsets = [0, 128], sizes = [16, 128], strides = [1, 1]} : vector<16x256xf32> to vector<16x128xf32>
    %96 = arith.maximumf %94, %95 : vector<16x128xf32>
    %97 = vector.extract_strided_slice %93 {offsets = [0, 0], sizes = [16, 128], strides = [1, 1]} : vector<16x256xf32> to vector<16x128xf32>
    %98 = vector.extract_strided_slice %93 {offsets = [0, 128], sizes = [16, 128], strides = [1, 1]} : vector<16x256xf32> to vector<16x128xf32>
    %99 = arith.maximumf %97, %98 : vector<16x128xf32>
    %100 = arith.maximumf %96, %99 : vector<16x128xf32>
    %c0_114 = arith.constant 0 : index
    %c0_115 = arith.constant 0 : index
    %101 = vector.load %arg3[%c0_114, %c0_115] : memref<1x128xf32, #tpu.memory_space<vmem>>, vector<1x128xf32>
    %102 = vector.broadcast %101 : vector<1x128xf32> to vector<16x128xf32>
    %103 = arith.addf %100, %102 : vector<16x128xf32>
    %cst_116 = arith.constant 0.000000e+00 : f32
    %104 = vector.broadcast %cst_116 : f32 to vector<16x128xf32>
    %105 = arith.maximumf %103, %104 : vector<16x128xf32>
    %106 = vector.extract_strided_slice %91 {offsets = [32, 0], sizes = [16, 256], strides = [1, 1]} : vector<160x256xf32> to vector<16x256xf32>
    %107 = vector.extract_strided_slice %91 {offsets = [48, 0], sizes = [16, 256], strides = [1, 1]} : vector<160x256xf32> to vector<16x256xf32>
    %108 = vector.extract_strided_slice %106 {offsets = [0, 0], sizes = [16, 128], strides = [1, 1]} : vector<16x256xf32> to vector<16x128xf32>
    %109 = vector.extract_strided_slice %106 {offsets = [0, 128], sizes = [16, 128], strides = [1, 1]} : vector<16x256xf32> to vector<16x128xf32>
    %110 = arith.maximumf %108, %109 : vector<16x128xf32>
    %111 = vector.extract_strided_slice %107 {offsets = [0, 0], sizes = [16, 128], strides = [1, 1]} : vector<16x256xf32> to vector<16x128xf32>
    %112 = vector.extract_strided_slice %107 {offsets = [0, 128], sizes = [16, 128], strides = [1, 1]} : vector<16x256xf32> to vector<16x128xf32>
    %113 = arith.maximumf %111, %112 : vector<16x128xf32>
    %114 = arith.maximumf %110, %113 : vector<16x128xf32>
    %c0_117 = arith.constant 0 : index
    %c0_118 = arith.constant 0 : index
    %115 = vector.load %arg3[%c0_117, %c0_118] : memref<1x128xf32, #tpu.memory_space<vmem>>, vector<1x128xf32>
    %116 = vector.broadcast %115 : vector<1x128xf32> to vector<16x128xf32>
    %117 = arith.addf %114, %116 : vector<16x128xf32>
    %cst_119 = arith.constant 0.000000e+00 : f32
    %118 = vector.broadcast %cst_119 : f32 to vector<16x128xf32>
    %119 = arith.maximumf %117, %118 : vector<16x128xf32>
    %120 = vector.extract_strided_slice %91 {offsets = [64, 0], sizes = [16, 256], strides = [1, 1]} : vector<160x256xf32> to vector<16x256xf32>
    %121 = vector.extract_strided_slice %91 {offsets = [80, 0], sizes = [16, 256], strides = [1, 1]} : vector<160x256xf32> to vector<16x256xf32>
    %122 = vector.extract_strided_slice %120 {offsets = [0, 0], sizes = [16, 128], strides = [1, 1]} : vector<16x256xf32> to vector<16x128xf32>
    %123 = vector.extract_strided_slice %120 {offsets = [0, 128], sizes = [16, 128], strides = [1, 1]} : vector<16x256xf32> to vector<16x128xf32>
    %124 = arith.maximumf %122, %123 : vector<16x128xf32>
    %125 = vector.extract_strided_slice %121 {offsets = [0, 0], sizes = [16, 128], strides = [1, 1]} : vector<16x256xf32> to vector<16x128xf32>
    %126 = vector.extract_strided_slice %121 {offsets = [0, 128], sizes = [16, 128], strides = [1, 1]} : vector<16x256xf32> to vector<16x128xf32>
    %127 = arith.maximumf %125, %126 : vector<16x128xf32>
    %128 = arith.maximumf %124, %127 : vector<16x128xf32>
    %c0_120 = arith.constant 0 : index
    %c0_121 = arith.constant 0 : index
    %129 = vector.load %arg3[%c0_120, %c0_121] : memref<1x128xf32, #tpu.memory_space<vmem>>, vector<1x128xf32>
    %130 = vector.broadcast %129 : vector<1x128xf32> to vector<16x128xf32>
    %131 = arith.addf %128, %130 : vector<16x128xf32>
    %cst_122 = arith.constant 0.000000e+00 : f32
    %132 = vector.broadcast %cst_122 : f32 to vector<16x128xf32>
    %133 = arith.maximumf %131, %132 : vector<16x128xf32>
    %134 = vector.extract_strided_slice %91 {offsets = [96, 0], sizes = [16, 256], strides = [1, 1]} : vector<160x256xf32> to vector<16x256xf32>
    %135 = vector.extract_strided_slice %91 {offsets = [112, 0], sizes = [16, 256], strides = [1, 1]} : vector<160x256xf32> to vector<16x256xf32>
    %136 = vector.extract_strided_slice %134 {offsets = [0, 0], sizes = [16, 128], strides = [1, 1]} : vector<16x256xf32> to vector<16x128xf32>
    %137 = vector.extract_strided_slice %134 {offsets = [0, 128], sizes = [16, 128], strides = [1, 1]} : vector<16x256xf32> to vector<16x128xf32>
    %138 = arith.maximumf %136, %137 : vector<16x128xf32>
    %139 = vector.extract_strided_slice %135 {offsets = [0, 0], sizes = [16, 128], strides = [1, 1]} : vector<16x256xf32> to vector<16x128xf32>
    %140 = vector.extract_strided_slice %135 {offsets = [0, 128], sizes = [16, 128], strides = [1, 1]} : vector<16x256xf32> to vector<16x128xf32>
    %141 = arith.maximumf %139, %140 : vector<16x128xf32>
    %142 = arith.maximumf %138, %141 : vector<16x128xf32>
    %c0_123 = arith.constant 0 : index
    %c0_124 = arith.constant 0 : index
    %143 = vector.load %arg3[%c0_123, %c0_124] : memref<1x128xf32, #tpu.memory_space<vmem>>, vector<1x128xf32>
    %144 = vector.broadcast %143 : vector<1x128xf32> to vector<16x128xf32>
    %145 = arith.addf %142, %144 : vector<16x128xf32>
    %cst_125 = arith.constant 0.000000e+00 : f32
    %146 = vector.broadcast %cst_125 : f32 to vector<16x128xf32>
    %147 = arith.maximumf %145, %146 : vector<16x128xf32>
    %148 = vector.extract_strided_slice %91 {offsets = [128, 0], sizes = [16, 256], strides = [1, 1]} : vector<160x256xf32> to vector<16x256xf32>
    %149 = vector.extract_strided_slice %91 {offsets = [144, 0], sizes = [16, 256], strides = [1, 1]} : vector<160x256xf32> to vector<16x256xf32>
    %150 = vector.extract_strided_slice %148 {offsets = [0, 0], sizes = [16, 128], strides = [1, 1]} : vector<16x256xf32> to vector<16x128xf32>
    %151 = vector.extract_strided_slice %148 {offsets = [0, 128], sizes = [16, 128], strides = [1, 1]} : vector<16x256xf32> to vector<16x128xf32>
    %152 = arith.maximumf %150, %151 : vector<16x128xf32>
    %153 = vector.extract_strided_slice %149 {offsets = [0, 0], sizes = [16, 128], strides = [1, 1]} : vector<16x256xf32> to vector<16x128xf32>
    %154 = vector.extract_strided_slice %149 {offsets = [0, 128], sizes = [16, 128], strides = [1, 1]} : vector<16x256xf32> to vector<16x128xf32>
    %155 = arith.maximumf %153, %154 : vector<16x128xf32>
    %156 = arith.maximumf %152, %155 : vector<16x128xf32>
    %c0_126 = arith.constant 0 : index
    %c0_127 = arith.constant 0 : index
    %157 = vector.load %arg3[%c0_126, %c0_127] : memref<1x128xf32, #tpu.memory_space<vmem>>, vector<1x128xf32>
    %158 = vector.broadcast %157 : vector<1x128xf32> to vector<16x128xf32>
    %159 = arith.addf %156, %158 : vector<16x128xf32>
    %cst_128 = arith.constant 0.000000e+00 : f32
    %160 = vector.broadcast %cst_128 : f32 to vector<16x128xf32>
    %161 = arith.maximumf %159, %160 : vector<16x128xf32>
    %c0_129 = arith.constant 0 : index
    %c128_130 = arith.constant 128 : index
    %162 = vector.load %arg15[%c0_129, %c128_130] : memref<48x384xf32, #tpu.memory_space<vmem>>, vector<16x128xf32>
    tpu.vector_store %arg15[%c0_129, %c128_130], %105 {strides = array<i32>} : memref<48x384xf32, #tpu.memory_space<vmem>>, vector<16x128xf32>,
    %c0_131 = arith.constant 0 : index
    %c256 = arith.constant 256 : index
    %163 = vector.load %arg15[%c0_131, %c256] : memref<48x384xf32, #tpu.memory_space<vmem>>, vector<16x128xf32>
    tpu.vector_store %arg15[%c0_131, %c256], %119 {strides = array<i32>} : memref<48x384xf32, #tpu.memory_space<vmem>>, vector<16x128xf32>,
    %c16_132 = arith.constant 16 : index
    %c0_133 = arith.constant 0 : index
    %164 = vector.load %arg15[%c16_132, %c0_133] : memref<48x384xf32, #tpu.memory_space<vmem>>, vector<16x128xf32>
    tpu.vector_store %arg15[%c16_132, %c0_133], %119 {strides = array<i32>} : memref<48x384xf32, #tpu.memory_space<vmem>>, vector<16x128xf32>,
    %c16_134 = arith.constant 16 : index
    %c128_135 = arith.constant 128 : index
    %165 = vector.load %arg15[%c16_134, %c128_135] : memref<48x384xf32, #tpu.memory_space<vmem>>, vector<16x128xf32>
    tpu.vector_store %arg15[%c16_134, %c128_135], %133 {strides = array<i32>} : memref<48x384xf32, #tpu.memory_space<vmem>>, vector<16x128xf32>,
    %c16_136 = arith.constant 16 : index
    %c256_137 = arith.constant 256 : index
    %166 = vector.load %arg15[%c16_136, %c256_137] : memref<48x384xf32, #tpu.memory_space<vmem>>, vector<16x128xf32>
    tpu.vector_store %arg15[%c16_136, %c256_137], %147 {strides = array<i32>} : memref<48x384xf32, #tpu.memory_space<vmem>>, vector<16x128xf32>,
    %c32_138 = arith.constant 32 : index
    %c0_139 = arith.constant 0 : index
    %167 = vector.load %arg15[%c32_138, %c0_139] : memref<48x384xf32, #tpu.memory_space<vmem>>, vector<16x128xf32>
    tpu.vector_store %arg15[%c32_138, %c0_139], %147 {strides = array<i32>} : memref<48x384xf32, #tpu.memory_space<vmem>>, vector<16x128xf32>,
    %c32_140 = arith.constant 32 : index
    %c128_141 = arith.constant 128 : index
    %168 = vector.load %arg15[%c32_140, %c128_141] : memref<48x384xf32, #tpu.memory_space<vmem>>, vector<16x128xf32>
    tpu.vector_store %arg15[%c32_140, %c128_141], %161 {strides = array<i32>} : memref<48x384xf32, #tpu.memory_space<vmem>>, vector<16x128xf32>,
    %c0_142 = arith.constant 0 : index
    %c0_143 = arith.constant 0 : index
    %169 = vector.load %arg15[%c0_142, %c0_143] : memref<48x384xf32, #tpu.memory_space<vmem>>, vector<48x384xf32>
    %170 = arith.truncf %169 : vector<48x384xf32> to vector<48x384xbf16>
    %c0_144 = arith.constant 0 : index
    %c0_145 = arith.constant 0 : index
    %171 = vector.load %arg4[%c0_144, %c0_145] : memref<384x256xbf16, #tpu.memory_space<vmem>>, vector<384x256xbf16>
    %cst_146 = arith.constant dense<0.000000e+00> : vector<48x256xf32>
    %172 = tpu.matmul %170, %171, %cst_146 {dimension_numbers = #tpu.dot_dimension_numbers<[1], [0], [0], [1], [0, 0, 1, 1], [], []>} : vector<48x384xbf16>, vector<384x256xbf16>, vector<48x256xf32> -> vector<48x256xf32>
    %173 = vector.extract_strided_slice %172 {offsets = [0, 0], sizes = [16, 128], strides = [1, 1]} : vector<48x256xf32> to vector<16x128xf32>
    %174 = vector.extract_strided_slice %172 {offsets = [0, 128], sizes = [16, 128], strides = [1, 1]} : vector<48x256xf32> to vector<16x128xf32>
    %175 = arith.maximumf %173, %174 : vector<16x128xf32>
    %176 = vector.extract_strided_slice %172 {offsets = [16, 0], sizes = [16, 128], strides = [1, 1]} : vector<48x256xf32> to vector<16x128xf32>
    %177 = vector.extract_strided_slice %172 {offsets = [16, 128], sizes = [16, 128], strides = [1, 1]} : vector<48x256xf32> to vector<16x128xf32>
    %178 = arith.maximumf %176, %177 : vector<16x128xf32>
    %179 = vector.extract_strided_slice %172 {offsets = [32, 0], sizes = [16, 128], strides = [1, 1]} : vector<48x256xf32> to vector<16x128xf32>
    %180 = vector.extract_strided_slice %172 {offsets = [32, 128], sizes = [16, 128], strides = [1, 1]} : vector<48x256xf32> to vector<16x128xf32>
    %181 = arith.maximumf %179, %180 : vector<16x128xf32>
    %182 = arith.maximumf %175, %178 : vector<16x128xf32>
    %c0_147 = arith.constant 0 : index
    %c0_148 = arith.constant 0 : index
    %183 = vector.load %arg5[%c0_147, %c0_148] : memref<1x128xf32, #tpu.memory_space<vmem>>, vector<1x128xf32>
    %184 = vector.broadcast %183 : vector<1x128xf32> to vector<16x128xf32>
    %185 = arith.addf %182, %184 : vector<16x128xf32>
    %cst_149 = arith.constant 0.000000e+00 : f32
    %186 = vector.broadcast %cst_149 : f32 to vector<16x128xf32>
    %187 = arith.maximumf %185, %186 : vector<16x128xf32>
    %c0_150 = arith.constant 0 : index
    %c0_151 = arith.constant 0 : index
    %c0_152 = arith.constant 0 : index
    %188 = vector.load %arg12[%c0_150, %c0_151, %c0_152] : memref<2x16x128xf32, #tpu.memory_space<vmem>>, vector<1x16x128xf32>
    %189 = vector.shape_cast %188 : vector<1x16x128xf32> to vector<16x128xf32>
    %190 = vector.shape_cast %187 : vector<16x128xf32> to vector<1x16x128xf32>
    tpu.vector_store %arg12[%c0_150, %c0_151, %c0_152], %190 {strides = array<i32>} : memref<2x16x128xf32, #tpu.memory_space<vmem>>, vector<1x16x128xf32>,
    %191 = arith.maximumf %178, %181 : vector<16x128xf32>
    %c0_153 = arith.constant 0 : index
    %c0_154 = arith.constant 0 : index
    %192 = vector.load %arg5[%c0_153, %c0_154] : memref<1x128xf32, #tpu.memory_space<vmem>>, vector<1x128xf32>
    %193 = vector.broadcast %192 : vector<1x128xf32> to vector<16x128xf32>
    %194 = arith.addf %191, %193 : vector<16x128xf32>
    %cst_155 = arith.constant 0.000000e+00 : f32
    %195 = vector.broadcast %cst_155 : f32 to vector<16x128xf32>
    %196 = arith.maximumf %194, %195 : vector<16x128xf32>
    %c1_156 = arith.constant 1 : index
    %c0_157 = arith.constant 0 : index
    %c0_158 = arith.constant 0 : index
    %197 = vector.load %arg12[%c1_156, %c0_157, %c0_158] : memref<2x16x128xf32, #tpu.memory_space<vmem>>, vector<1x16x128xf32>
    %198 = vector.shape_cast %197 : vector<1x16x128xf32> to vector<16x128xf32>
    %199 = vector.shape_cast %196 : vector<16x128xf32> to vector<1x16x128xf32>
    tpu.vector_store %arg12[%c1_156, %c0_157, %c0_158], %199 {strides = array<i32>} : memref<2x16x128xf32, #tpu.memory_space<vmem>>, vector<1x16x128xf32>,
    %200 = tpu.concatenate %187, %196 in 0 : vector<16x128xf32>, vector<16x128xf32> -> vector<32x128xf32>
    %201 = arith.truncf %200 : vector<32x128xf32> to vector<32x128xbf16>
    %c0_159 = arith.constant 0 : index
    %c0_160 = arith.constant 0 : index
    %202 = vector.load %arg6[%c0_159, %c0_160] : memref<128x384xbf16, #tpu.memory_space<vmem>>, vector<128x384xbf16>
    %cst_161 = arith.constant dense<0.000000e+00> : vector<32x384xf32>
    %203 = tpu.matmul %201, %202, %cst_161 {dimension_numbers = #tpu.dot_dimension_numbers<[1], [0], [0], [1], [0, 0, 1, 1], [], []>} : vector<32x128xbf16>, vector<128x384xbf16>, vector<32x384xf32> -> vector<32x384xf32>
    %204 = vector.extract_strided_slice %203 {offsets = [0, 0], sizes = [16, 128], strides = [1, 1]} : vector<32x384xf32> to vector<16x128xf32>
    %c0_162 = arith.constant 0 : index
    %c0_163 = arith.constant 0 : index
    %205 = vector.load %arg7[%c0_162, %c0_163] : memref<1x128xf32, #tpu.memory_space<vmem>>, vector<1x128xf32>
    %206 = vector.broadcast %205 : vector<1x128xf32> to vector<16x128xf32>
    %207 = arith.addf %204, %206 : vector<16x128xf32>
    %cst_164 = arith.constant 0.000000e+00 : f32
    %208 = vector.broadcast %cst_164 : f32 to vector<16x128xf32>
    %209 = arith.maximumf %207, %208 : vector<16x128xf32>
    %c0_165 = arith.constant 0 : index
    %c0_166 = arith.constant 0 : index
    %210 = vector.load %arg16[%c0_165, %c0_166] : memref<80x128xf32, #tpu.memory_space<vmem>>, vector<16x128xf32>
    tpu.vector_store %arg16[%c0_165, %c0_166], %209 {strides = array<i32>} : memref<80x128xf32, #tpu.memory_space<vmem>>, vector<16x128xf32>,
    %211 = vector.extract_strided_slice %203 {offsets = [0, 128], sizes = [16, 128], strides = [1, 1]} : vector<32x384xf32> to vector<16x128xf32>
    %c0_167 = arith.constant 0 : index
    %c0_168 = arith.constant 0 : index
    %212 = vector.load %arg7[%c0_167, %c0_168] : memref<1x128xf32, #tpu.memory_space<vmem>>, vector<1x128xf32>
    %213 = vector.broadcast %212 : vector<1x128xf32> to vector<16x128xf32>
    %214 = arith.addf %211, %213 : vector<16x128xf32>
    %cst_169 = arith.constant 0.000000e+00 : f32
    %215 = vector.broadcast %cst_169 : f32 to vector<16x128xf32>
    %216 = arith.maximumf %214, %215 : vector<16x128xf32>
    %c16_170 = arith.constant 16 : index
    %c0_171 = arith.constant 0 : index
    %217 = vector.load %arg16[%c16_170, %c0_171] : memref<80x128xf32, #tpu.memory_space<vmem>>, vector<16x128xf32>
    tpu.vector_store %arg16[%c16_170, %c0_171], %216 {strides = array<i32>} : memref<80x128xf32, #tpu.memory_space<vmem>>, vector<16x128xf32>,
    %218 = vector.extract_strided_slice %203 {offsets = [16, 0], sizes = [16, 128], strides = [1, 1]} : vector<32x384xf32> to vector<16x128xf32>
    %219 = vector.extract_strided_slice %203 {offsets = [0, 256], sizes = [16, 128], strides = [1, 1]} : vector<32x384xf32> to vector<16x128xf32>
    %220 = arith.addf %218, %219 : vector<16x128xf32>
    %c0_172 = arith.constant 0 : index
    %c0_173 = arith.constant 0 : index
    %221 = vector.load %arg7[%c0_172, %c0_173] : memref<1x128xf32, #tpu.memory_space<vmem>>, vector<1x128xf32>
    %222 = vector.broadcast %221 : vector<1x128xf32> to vector<16x128xf32>
    %223 = arith.addf %220, %222 : vector<16x128xf32>
    %cst_174 = arith.constant 0.000000e+00 : f32
    %224 = vector.broadcast %cst_174 : f32 to vector<16x128xf32>
    %225 = arith.maximumf %223, %224 : vector<16x128xf32>
    %c32_175 = arith.constant 32 : index
    %c0_176 = arith.constant 0 : index
    %226 = vector.load %arg16[%c32_175, %c0_176] : memref<80x128xf32, #tpu.memory_space<vmem>>, vector<16x128xf32>
    tpu.vector_store %arg16[%c32_175, %c0_176], %225 {strides = array<i32>} : memref<80x128xf32, #tpu.memory_space<vmem>>, vector<16x128xf32>,
    %227 = vector.extract_strided_slice %203 {offsets = [16, 128], sizes = [16, 128], strides = [1, 1]} : vector<32x384xf32> to vector<16x128xf32>
    %c0_177 = arith.constant 0 : index
    %c0_178 = arith.constant 0 : index
    %228 = vector.load %arg7[%c0_177, %c0_178] : memref<1x128xf32, #tpu.memory_space<vmem>>, vector<1x128xf32>
    %229 = vector.broadcast %228 : vector<1x128xf32> to vector<16x128xf32>
    %230 = arith.addf %227, %229 : vector<16x128xf32>
    %cst_179 = arith.constant 0.000000e+00 : f32
    %231 = vector.broadcast %cst_179 : f32 to vector<16x128xf32>
    %232 = arith.maximumf %230, %231 : vector<16x128xf32>
    %c48_180 = arith.constant 48 : index
    %c0_181 = arith.constant 0 : index
    %233 = vector.load %arg16[%c48_180, %c0_181] : memref<80x128xf32, #tpu.memory_space<vmem>>, vector<16x128xf32>
    tpu.vector_store %arg16[%c48_180, %c0_181], %232 {strides = array<i32>} : memref<80x128xf32, #tpu.memory_space<vmem>>, vector<16x128xf32>,
    %234 = vector.extract_strided_slice %203 {offsets = [16, 256], sizes = [16, 128], strides = [1, 1]} : vector<32x384xf32> to vector<16x128xf32>
    %c0_182 = arith.constant 0 : index
    %c0_183 = arith.constant 0 : index
    %235 = vector.load %arg7[%c0_182, %c0_183] : memref<1x128xf32, #tpu.memory_space<vmem>>, vector<1x128xf32>
    %236 = vector.broadcast %235 : vector<1x128xf32> to vector<16x128xf32>
    %237 = arith.addf %234, %236 : vector<16x128xf32>
    %cst_184 = arith.constant 0.000000e+00 : f32
    %238 = vector.broadcast %cst_184 : f32 to vector<16x128xf32>
    %239 = arith.maximumf %237, %238 : vector<16x128xf32>
    %c64_185 = arith.constant 64 : index
    %c0_186 = arith.constant 0 : index
    %240 = vector.load %arg16[%c64_185, %c0_186] : memref<80x128xf32, #tpu.memory_space<vmem>>, vector<16x128xf32>
    tpu.vector_store %arg16[%c64_185, %c0_186], %239 {strides = array<i32>} : memref<80x128xf32, #tpu.memory_space<vmem>>, vector<16x128xf32>,
    %c0_187 = arith.constant 0 : index
    %c0_188 = arith.constant 0 : index
    %241 = vector.load %arg16[%c0_187, %c0_188] : memref<80x128xf32, #tpu.memory_space<vmem>>, vector<80x128xf32>
    %242 = arith.truncf %241 : vector<80x128xf32> to vector<80x128xbf16>
    %c0_189 = arith.constant 0 : index
    %c0_190 = arith.constant 0 : index
    %243 = vector.load %arg8[%c0_189, %c0_190] : memref<128x640xbf16, #tpu.memory_space<vmem>>, vector<128x640xbf16>
    %cst_191 = arith.constant dense<0.000000e+00> : vector<80x640xf32>
    %244 = tpu.matmul %242, %243, %cst_191 {dimension_numbers = #tpu.dot_dimension_numbers<[1], [0], [0], [1], [0, 0, 1, 1], [], []>} : vector<80x128xbf16>, vector<128x640xbf16>, vector<80x640xf32> -> vector<80x640xf32>
    %245 = vector.extract_strided_slice %244 {offsets = [0, 128], sizes = [16, 128], strides = [1, 1]} : vector<80x640xf32> to vector<16x128xf32>
    %c0_192 = arith.constant 0 : index
    %c0_193 = arith.constant 0 : index
    %246 = vector.load %arg9[%c0_192, %c0_193] : memref<1x128xf32, #tpu.memory_space<vmem>>, vector<1x128xf32>
    %247 = vector.broadcast %246 : vector<1x128xf32> to vector<16x128xf32>
    %248 = arith.addf %245, %247 : vector<16x128xf32>
    %cst_194 = arith.constant 0.000000e+00 : f32
    %249 = vector.broadcast %cst_194 : f32 to vector<16x128xf32>
    %250 = arith.maximumf %248, %249 : vector<16x128xf32>
    %c0_195 = arith.constant 0 : index
    %c0_196 = arith.constant 0 : index
    %251 = vector.load %arg17[%c0_195, %c0_196] : memref<240x128xf32, #tpu.memory_space<vmem>>, vector<16x128xf32>
    tpu.vector_store %arg17[%c0_195, %c0_196], %250 {strides = array<i32>} : memref<240x128xf32, #tpu.memory_space<vmem>>, vector<16x128xf32>,
    %252 = vector.extract_strided_slice %244 {offsets = [0, 256], sizes = [16, 128], strides = [1, 1]} : vector<80x640xf32> to vector<16x128xf32>
    %c0_197 = arith.constant 0 : index
    %c0_198 = arith.constant 0 : index
    %253 = vector.load %arg9[%c0_197, %c0_198] : memref<1x128xf32, #tpu.memory_space<vmem>>, vector<1x128xf32>
    %254 = vector.broadcast %253 : vector<1x128xf32> to vector<16x128xf32>
    %255 = arith.addf %252, %254 : vector<16x128xf32>
    %cst_199 = arith.constant 0.000000e+00 : f32
    %256 = vector.broadcast %cst_199 : f32 to vector<16x128xf32>
    %257 = arith.maximumf %255, %256 : vector<16x128xf32>
    %c16_200 = arith.constant 16 : index
    %c0_201 = arith.constant 0 : index
    %258 = vector.load %arg17[%c16_200, %c0_201] : memref<240x128xf32, #tpu.memory_space<vmem>>, vector<16x128xf32>
    tpu.vector_store %arg17[%c16_200, %c0_201], %257 {strides = array<i32>} : memref<240x128xf32, #tpu.memory_space<vmem>>, vector<16x128xf32>,
    %259 = vector.extract_strided_slice %244 {offsets = [16, 0], sizes = [16, 128], strides = [1, 1]} : vector<80x640xf32> to vector<16x128xf32>
    %260 = vector.extract_strided_slice %244 {offsets = [0, 384], sizes = [16, 128], strides = [1, 1]} : vector<80x640xf32> to vector<16x128xf32>
    %261 = arith.addf %259, %260 : vector<16x128xf32>
    %c0_202 = arith.constant 0 : index
    %c0_203 = arith.constant 0 : index
    %262 = vector.load %arg9[%c0_202, %c0_203] : memref<1x128xf32, #tpu.memory_space<vmem>>, vector<1x128xf32>
    %263 = vector.broadcast %262 : vector<1x128xf32> to vector<16x128xf32>
    %264 = arith.addf %261, %263 : vector<16x128xf32>
    %cst_204 = arith.constant 0.000000e+00 : f32
    %265 = vector.broadcast %cst_204 : f32 to vector<16x128xf32>
    %266 = arith.maximumf %264, %265 : vector<16x128xf32>
    %c32_205 = arith.constant 32 : index
    %c0_206 = arith.constant 0 : index
    %267 = vector.load %arg17[%c32_205, %c0_206] : memref<240x128xf32, #tpu.memory_space<vmem>>, vector<16x128xf32>
    tpu.vector_store %arg17[%c32_205, %c0_206], %266 {strides = array<i32>} : memref<240x128xf32, #tpu.memory_space<vmem>>, vector<16x128xf32>,
    %268 = vector.extract_strided_slice %244 {offsets = [16, 128], sizes = [16, 128], strides = [1, 1]} : vector<80x640xf32> to vector<16x128xf32>
    %269 = vector.extract_strided_slice %244 {offsets = [0, 512], sizes = [16, 128], strides = [1, 1]} : vector<80x640xf32> to vector<16x128xf32>
    %270 = arith.addf %268, %269 : vector<16x128xf32>
    %c0_207 = arith.constant 0 : index
    %c0_208 = arith.constant 0 : index
    %271 = vector.load %arg9[%c0_207, %c0_208] : memref<1x128xf32, #tpu.memory_space<vmem>>, vector<1x128xf32>
    %272 = vector.broadcast %271 : vector<1x128xf32> to vector<16x128xf32>
    %273 = arith.addf %270, %272 : vector<16x128xf32>
    %cst_209 = arith.constant 0.000000e+00 : f32
    %274 = vector.broadcast %cst_209 : f32 to vector<16x128xf32>
    %275 = arith.maximumf %273, %274 : vector<16x128xf32>
    %c48_210 = arith.constant 48 : index
    %c0_211 = arith.constant 0 : index
    %276 = vector.load %arg17[%c48_210, %c0_211] : memref<240x128xf32, #tpu.memory_space<vmem>>, vector<16x128xf32>
    tpu.vector_store %arg17[%c48_210, %c0_211], %275 {strides = array<i32>} : memref<240x128xf32, #tpu.memory_space<vmem>>, vector<16x128xf32>,
    %277 = vector.extract_strided_slice %244 {offsets = [16, 256], sizes = [16, 128], strides = [1, 1]} : vector<80x640xf32> to vector<16x128xf32>
    %c0_212 = arith.constant 0 : index
    %c0_213 = arith.constant 0 : index
    %278 = vector.load %arg9[%c0_212, %c0_213] : memref<1x128xf32, #tpu.memory_space<vmem>>, vector<1x128xf32>
    %279 = vector.broadcast %278 : vector<1x128xf32> to vector<16x128xf32>
    %280 = arith.addf %277, %279 : vector<16x128xf32>
    %cst_214 = arith.constant 0.000000e+00 : f32
    %281 = vector.broadcast %cst_214 : f32 to vector<16x128xf32>
    %282 = arith.maximumf %280, %281 : vector<16x128xf32>
    %c64_215 = arith.constant 64 : index
    %c0_216 = arith.constant 0 : index
    %283 = vector.load %arg17[%c64_215, %c0_216] : memref<240x128xf32, #tpu.memory_space<vmem>>, vector<16x128xf32>
    tpu.vector_store %arg17[%c64_215, %c0_216], %282 {strides = array<i32>} : memref<240x128xf32, #tpu.memory_space<vmem>>, vector<16x128xf32>,
    %284 = vector.extract_strided_slice %244 {offsets = [32, 0], sizes = [16, 128], strides = [1, 1]} : vector<80x640xf32> to vector<16x128xf32>
    %285 = vector.extract_strided_slice %244 {offsets = [16, 384], sizes = [16, 128], strides = [1, 1]} : vector<80x640xf32> to vector<16x128xf32>
    %286 = arith.addf %284, %285 : vector<16x128xf32>
    %c0_217 = arith.constant 0 : index
    %c0_218 = arith.constant 0 : index
    %287 = vector.load %arg9[%c0_217, %c0_218] : memref<1x128xf32, #tpu.memory_space<vmem>>, vector<1x128xf32>
    %288 = vector.broadcast %287 : vector<1x128xf32> to vector<16x128xf32>
    %289 = arith.addf %286, %288 : vector<16x128xf32>
    %cst_219 = arith.constant 0.000000e+00 : f32
    %290 = vector.broadcast %cst_219 : f32 to vector<16x128xf32>
    %291 = arith.maximumf %289, %290 : vector<16x128xf32>
    %c80_220 = arith.constant 80 : index
    %c0_221 = arith.constant 0 : index
    %292 = vector.load %arg17[%c80_220, %c0_221] : memref<240x128xf32, #tpu.memory_space<vmem>>, vector<16x128xf32>
    tpu.vector_store %arg17[%c80_220, %c0_221], %291 {strides = array<i32>} : memref<240x128xf32, #tpu.memory_space<vmem>>, vector<16x128xf32>,
    %293 = vector.extract_strided_slice %244 {offsets = [32, 128], sizes = [16, 128], strides = [1, 1]} : vector<80x640xf32> to vector<16x128xf32>
    %294 = vector.extract_strided_slice %244 {offsets = [16, 512], sizes = [16, 128], strides = [1, 1]} : vector<80x640xf32> to vector<16x128xf32>
    %295 = arith.addf %293, %294 : vector<16x128xf32>
    %c0_222 = arith.constant 0 : index
    %c0_223 = arith.constant 0 : index
    %296 = vector.load %arg9[%c0_222, %c0_223] : memref<1x128xf32, #tpu.memory_space<vmem>>, vector<1x128xf32>
    %297 = vector.broadcast %296 : vector<1x128xf32> to vector<16x128xf32>
    %298 = arith.addf %295, %297 : vector<16x128xf32>
    %cst_224 = arith.constant 0.000000e+00 : f32
    %299 = vector.broadcast %cst_224 : f32 to vector<16x128xf32>
    %300 = arith.maximumf %298, %299 : vector<16x128xf32>
    %c96_225 = arith.constant 96 : index
    %c0_226 = arith.constant 0 : index
    %301 = vector.load %arg17[%c96_225, %c0_226] : memref<240x128xf32, #tpu.memory_space<vmem>>, vector<16x128xf32>
    tpu.vector_store %arg17[%c96_225, %c0_226], %300 {strides = array<i32>} : memref<240x128xf32, #tpu.memory_space<vmem>>, vector<16x128xf32>,
    %302 = vector.extract_strided_slice %244 {offsets = [32, 256], sizes = [16, 128], strides = [1, 1]} : vector<80x640xf32> to vector<16x128xf32>
    %c0_227 = arith.constant 0 : index
    %c0_228 = arith.constant 0 : index
    %303 = vector.load %arg9[%c0_227, %c0_228] : memref<1x128xf32, #tpu.memory_space<vmem>>, vector<1x128xf32>
    %304 = vector.broadcast %303 : vector<1x128xf32> to vector<16x128xf32>
    %305 = arith.addf %302, %304 : vector<16x128xf32>
    %cst_229 = arith.constant 0.000000e+00 : f32
    %306 = vector.broadcast %cst_229 : f32 to vector<16x128xf32>
    %307 = arith.maximumf %305, %306 : vector<16x128xf32>
    %c112_230 = arith.constant 112 : index
    %c0_231 = arith.constant 0 : index
    %308 = vector.load %arg17[%c112_230, %c0_231] : memref<240x128xf32, #tpu.memory_space<vmem>>, vector<16x128xf32>
    tpu.vector_store %arg17[%c112_230, %c0_231], %307 {strides = array<i32>} : memref<240x128xf32, #tpu.memory_space<vmem>>, vector<16x128xf32>,
    %309 = vector.extract_strided_slice %244 {offsets = [48, 0], sizes = [16, 128], strides = [1, 1]} : vector<80x640xf32> to vector<16x128xf32>
    %310 = vector.extract_strided_slice %244 {offsets = [32, 384], sizes = [16, 128], strides = [1, 1]} : vector<80x640xf32> to vector<16x128xf32>
    %311 = arith.addf %309, %310 : vector<16x128xf32>
    %c0_232 = arith.constant 0 : index
    %c0_233 = arith.constant 0 : index
    %312 = vector.load %arg9[%c0_232, %c0_233] : memref<1x128xf32, #tpu.memory_space<vmem>>, vector<1x128xf32>
    %313 = vector.broadcast %312 : vector<1x128xf32> to vector<16x128xf32>
    %314 = arith.addf %311, %313 : vector<16x128xf32>
    %cst_234 = arith.constant 0.000000e+00 : f32
    %315 = vector.broadcast %cst_234 : f32 to vector<16x128xf32>
    %316 = arith.maximumf %314, %315 : vector<16x128xf32>
    %c128_235 = arith.constant 128 : index
    %c0_236 = arith.constant 0 : index
    %317 = vector.load %arg17[%c128_235, %c0_236] : memref<240x128xf32, #tpu.memory_space<vmem>>, vector<16x128xf32>
    tpu.vector_store %arg17[%c128_235, %c0_236], %316 {strides = array<i32>} : memref<240x128xf32, #tpu.memory_space<vmem>>, vector<16x128xf32>,
    %318 = vector.extract_strided_slice %244 {offsets = [48, 128], sizes = [16, 128], strides = [1, 1]} : vector<80x640xf32> to vector<16x128xf32>
    %319 = vector.extract_strided_slice %244 {offsets = [32, 512], sizes = [16, 128], strides = [1, 1]} : vector<80x640xf32> to vector<16x128xf32>
    %320 = arith.addf %318, %319 : vector<16x128xf32>
    %c0_237 = arith.constant 0 : index
    %c0_238 = arith.constant 0 : index
    %321 = vector.load %arg9[%c0_237, %c0_238] : memref<1x128xf32, #tpu.memory_space<vmem>>, vector<1x128xf32>
    %322 = vector.broadcast %321 : vector<1x128xf32> to vector<16x128xf32>
    %323 = arith.addf %320, %322 : vector<16x128xf32>
    %cst_239 = arith.constant 0.000000e+00 : f32
    %324 = vector.broadcast %cst_239 : f32 to vector<16x128xf32>
    %325 = arith.maximumf %323, %324 : vector<16x128xf32>
    %c144_240 = arith.constant 144 : index
    %c0_241 = arith.constant 0 : index
    %326 = vector.load %arg17[%c144_240, %c0_241] : memref<240x128xf32, #tpu.memory_space<vmem>>, vector<16x128xf32>
    tpu.vector_store %arg17[%c144_240, %c0_241], %325 {strides = array<i32>} : memref<240x128xf32, #tpu.memory_space<vmem>>, vector<16x128xf32>,
    %327 = vector.extract_strided_slice %244 {offsets = [48, 256], sizes = [16, 128], strides = [1, 1]} : vector<80x640xf32> to vector<16x128xf32>
    %c0_242 = arith.constant 0 : index
    %c0_243 = arith.constant 0 : index
    %328 = vector.load %arg9[%c0_242, %c0_243] : memref<1x128xf32, #tpu.memory_space<vmem>>, vector<1x128xf32>
    %329 = vector.broadcast %328 : vector<1x128xf32> to vector<16x128xf32>
    %330 = arith.addf %327, %329 : vector<16x128xf32>
    %cst_244 = arith.constant 0.000000e+00 : f32
    %331 = vector.broadcast %cst_244 : f32 to vector<16x128xf32>
    %332 = arith.maximumf %330, %331 : vector<16x128xf32>
    %c160 = arith.constant 160 : index
    %c0_245 = arith.constant 0 : index
    %333 = vector.load %arg17[%c160, %c0_245] : memref<240x128xf32, #tpu.memory_space<vmem>>, vector<16x128xf32>
    tpu.vector_store %arg17[%c160, %c0_245], %332 {strides = array<i32>} : memref<240x128xf32, #tpu.memory_space<vmem>>, vector<16x128xf32>,
    %334 = vector.extract_strided_slice %244 {offsets = [64, 0], sizes = [16, 128], strides = [1, 1]} : vector<80x640xf32> to vector<16x128xf32>
    %335 = vector.extract_strided_slice %244 {offsets = [48, 384], sizes = [16, 128], strides = [1, 1]} : vector<80x640xf32> to vector<16x128xf32>
    %336 = arith.addf %334, %335 : vector<16x128xf32>
    %c0_246 = arith.constant 0 : index
    %c0_247 = arith.constant 0 : index
    %337 = vector.load %arg9[%c0_246, %c0_247] : memref<1x128xf32, #tpu.memory_space<vmem>>, vector<1x128xf32>
    %338 = vector.broadcast %337 : vector<1x128xf32> to vector<16x128xf32>
    %339 = arith.addf %336, %338 : vector<16x128xf32>
    %cst_248 = arith.constant 0.000000e+00 : f32
    %340 = vector.broadcast %cst_248 : f32 to vector<16x128xf32>
    %341 = arith.maximumf %339, %340 : vector<16x128xf32>
    %c176 = arith.constant 176 : index
    %c0_249 = arith.constant 0 : index
    %342 = vector.load %arg17[%c176, %c0_249] : memref<240x128xf32, #tpu.memory_space<vmem>>, vector<16x128xf32>
    tpu.vector_store %arg17[%c176, %c0_249], %341 {strides = array<i32>} : memref<240x128xf32, #tpu.memory_space<vmem>>, vector<16x128xf32>,
    %343 = vector.extract_strided_slice %244 {offsets = [64, 128], sizes = [16, 128], strides = [1, 1]} : vector<80x640xf32> to vector<16x128xf32>
    %344 = vector.extract_strided_slice %244 {offsets = [48, 512], sizes = [16, 128], strides = [1, 1]} : vector<80x640xf32> to vector<16x128xf32>
    %345 = arith.addf %343, %344 : vector<16x128xf32>
    %c0_250 = arith.constant 0 : index
    %c0_251 = arith.constant 0 : index
    %346 = vector.load %arg9[%c0_250, %c0_251] : memref<1x128xf32, #tpu.memory_space<vmem>>, vector<1x128xf32>
    %347 = vector.broadcast %346 : vector<1x128xf32> to vector<16x128xf32>
    %348 = arith.addf %345, %347 : vector<16x128xf32>
    %cst_252 = arith.constant 0.000000e+00 : f32
    %349 = vector.broadcast %cst_252 : f32 to vector<16x128xf32>
    %350 = arith.maximumf %348, %349 : vector<16x128xf32>
    %c192 = arith.constant 192 : index
    %c0_253 = arith.constant 0 : index
    %351 = vector.load %arg17[%c192, %c0_253] : memref<240x128xf32, #tpu.memory_space<vmem>>, vector<16x128xf32>
    tpu.vector_store %arg17[%c192, %c0_253], %350 {strides = array<i32>} : memref<240x128xf32, #tpu.memory_space<vmem>>, vector<16x128xf32>,
    %352 = vector.extract_strided_slice %244 {offsets = [64, 256], sizes = [16, 128], strides = [1, 1]} : vector<80x640xf32> to vector<16x128xf32>
    %c0_254 = arith.constant 0 : index
    %c0_255 = arith.constant 0 : index
    %353 = vector.load %arg9[%c0_254, %c0_255] : memref<1x128xf32, #tpu.memory_space<vmem>>, vector<1x128xf32>
    %354 = vector.broadcast %353 : vector<1x128xf32> to vector<16x128xf32>
    %355 = arith.addf %352, %354 : vector<16x128xf32>
    %cst_256 = arith.constant 0.000000e+00 : f32
    %356 = vector.broadcast %cst_256 : f32 to vector<16x128xf32>
    %357 = arith.maximumf %355, %356 : vector<16x128xf32>
    %c208 = arith.constant 208 : index
    %c0_257 = arith.constant 0 : index
    %358 = vector.load %arg17[%c208, %c0_257] : memref<240x128xf32, #tpu.memory_space<vmem>>, vector<16x128xf32>
    tpu.vector_store %arg17[%c208, %c0_257], %357 {strides = array<i32>} : memref<240x128xf32, #tpu.memory_space<vmem>>, vector<16x128xf32>,
    %359 = vector.extract_strided_slice %244 {offsets = [64, 384], sizes = [16, 128], strides = [1, 1]} : vector<80x640xf32> to vector<16x128xf32>
    %c0_258 = arith.constant 0 : index
    %c0_259 = arith.constant 0 : index
    %360 = vector.load %arg9[%c0_258, %c0_259] : memref<1x128xf32, #tpu.memory_space<vmem>>, vector<1x128xf32>
    %361 = vector.broadcast %360 : vector<1x128xf32> to vector<16x128xf32>
    %362 = arith.addf %359, %361 : vector<16x128xf32>
    %cst_260 = arith.constant 0.000000e+00 : f32
    %363 = vector.broadcast %cst_260 : f32 to vector<16x128xf32>
    %364 = arith.maximumf %362, %363 : vector<16x128xf32>
    %c224 = arith.constant 224 : index
    %c0_261 = arith.constant 0 : index
    %365 = vector.load %arg17[%c224, %c0_261] : memref<240x128xf32, #tpu.memory_space<vmem>>, vector<16x128xf32>
    tpu.vector_store %arg17[%c224, %c0_261], %364 {strides = array<i32>} : memref<240x128xf32, #tpu.memory_space<vmem>>, vector<16x128xf32>,
    %c0_262 = arith.constant 0 : index
    %c0_263 = arith.constant 0 : index
    %366 = vector.load %arg17[%c0_262, %c0_263] : memref<240x128xf32, #tpu.memory_space<vmem>>, vector<240x128xf32>
    %367 = arith.truncf %366 : vector<240x128xf32> to vector<240x128xbf16>
    %c0_264 = arith.constant 0 : index
    %c0_265 = arith.constant 0 : index
    %368 = vector.load %arg10[%c0_264, %c0_265] : memref<128x256xbf16, #tpu.memory_space<vmem>>, vector<128x256xbf16>
    %cst_266 = arith.constant dense<0.000000e+00> : vector<240x256xf32>
    %369 = tpu.matmul %367, %368, %cst_266 {dimension_numbers = #tpu.dot_dimension_numbers<[1], [0], [0], [1], [0, 0, 1, 1], [], []>} : vector<240x128xbf16>, vector<128x256xbf16>, vector<240x256xf32> -> vector<240x256xf32>
    %370 = vector.extract_strided_slice %369 {offsets = [0, 128], sizes = [16, 128], strides = [1, 1]} : vector<240x256xf32> to vector<16x128xf32>
    %c0_267 = arith.constant 0 : index
    %c0_268 = arith.constant 0 : index
    %371 = vector.load %arg11[%c0_267, %c0_268] : memref<1x128xf32, #tpu.memory_space<vmem>>, vector<1x128xf32>
    %372 = vector.broadcast %371 : vector<1x128xf32> to vector<16x128xf32>
    %373 = arith.addf %370, %372 : vector<16x128xf32>
    %374 = math.tanh %373 : vector<16x128xf32>
    %c0_269 = arith.constant 0 : index
    %c0_270 = arith.constant 0 : index
    %c0_271 = arith.constant 0 : index
    %375 = vector.load %arg13[%c0_269, %c0_270, %c0_271] : memref<28x16x128xf32, #tpu.memory_space<vmem>>, vector<1x16x128xf32>
    %376 = vector.shape_cast %375 : vector<1x16x128xf32> to vector<16x128xf32>
    %377 = vector.shape_cast %374 : vector<16x128xf32> to vector<1x16x128xf32>
    tpu.vector_store %arg13[%c0_269, %c0_270, %c0_271], %377 {strides = array<i32>} : memref<28x16x128xf32, #tpu.memory_space<vmem>>, vector<1x16x128xf32>,
    %378 = vector.extract_strided_slice %369 {offsets = [16, 0], sizes = [16, 128], strides = [1, 1]} : vector<240x256xf32> to vector<16x128xf32>
    %c0_272 = arith.constant 0 : index
    %c0_273 = arith.constant 0 : index
    %379 = vector.load %arg11[%c0_272, %c0_273] : memref<1x128xf32, #tpu.memory_space<vmem>>, vector<1x128xf32>
    %380 = vector.broadcast %379 : vector<1x128xf32> to vector<16x128xf32>
    %381 = arith.addf %378, %380 : vector<16x128xf32>
    %382 = math.tanh %381 : vector<16x128xf32>
    %c1_274 = arith.constant 1 : index
    %c0_275 = arith.constant 0 : index
    %c0_276 = arith.constant 0 : index
    %383 = vector.load %arg13[%c1_274, %c0_275, %c0_276] : memref<28x16x128xf32, #tpu.memory_space<vmem>>, vector<1x16x128xf32>
    %384 = vector.shape_cast %383 : vector<1x16x128xf32> to vector<16x128xf32>
    %385 = vector.shape_cast %382 : vector<16x128xf32> to vector<1x16x128xf32>
    tpu.vector_store %arg13[%c1_274, %c0_275, %c0_276], %385 {strides = array<i32>} : memref<28x16x128xf32, #tpu.memory_space<vmem>>, vector<1x16x128xf32>,
    %386 = vector.extract_strided_slice %369 {offsets = [16, 128], sizes = [16, 128], strides = [1, 1]} : vector<240x256xf32> to vector<16x128xf32>
    %c0_277 = arith.constant 0 : index
    %c0_278 = arith.constant 0 : index
    %387 = vector.load %arg11[%c0_277, %c0_278] : memref<1x128xf32, #tpu.memory_space<vmem>>, vector<1x128xf32>
    %388 = vector.broadcast %387 : vector<1x128xf32> to vector<16x128xf32>
    %389 = arith.addf %386, %388 : vector<16x128xf32>
    %390 = math.tanh %389 : vector<16x128xf32>
    %c2_279 = arith.constant 2 : index
    %c0_280 = arith.constant 0 : index
    %c0_281 = arith.constant 0 : index
    %391 = vector.load %arg13[%c2_279, %c0_280, %c0_281] : memref<28x16x128xf32, #tpu.memory_space<vmem>>, vector<1x16x128xf32>
    %392 = vector.shape_cast %391 : vector<1x16x128xf32> to vector<16x128xf32>
    %393 = vector.shape_cast %390 : vector<16x128xf32> to vector<1x16x128xf32>
    tpu.vector_store %arg13[%c2_279, %c0_280, %c0_281], %393 {strides = array<i32>} : memref<28x16x128xf32, #tpu.memory_space<vmem>>, vector<1x16x128xf32>,
    %394 = vector.extract_strided_slice %369 {offsets = [32, 0], sizes = [16, 128], strides = [1, 1]} : vector<240x256xf32> to vector<16x128xf32>
    %c0_282 = arith.constant 0 : index
    %c0_283 = arith.constant 0 : index
    %395 = vector.load %arg11[%c0_282, %c0_283] : memref<1x128xf32, #tpu.memory_space<vmem>>, vector<1x128xf32>
    %396 = vector.broadcast %395 : vector<1x128xf32> to vector<16x128xf32>
    %397 = arith.addf %394, %396 : vector<16x128xf32>
    %398 = math.tanh %397 : vector<16x128xf32>
    %c3_284 = arith.constant 3 : index
    %c0_285 = arith.constant 0 : index
    %c0_286 = arith.constant 0 : index
    %399 = vector.load %arg13[%c3_284, %c0_285, %c0_286] : memref<28x16x128xf32, #tpu.memory_space<vmem>>, vector<1x16x128xf32>
    %400 = vector.shape_cast %399 : vector<1x16x128xf32> to vector<16x128xf32>
    %401 = vector.shape_cast %398 : vector<16x128xf32> to vector<1x16x128xf32>
    tpu.vector_store %arg13[%c3_284, %c0_285, %c0_286], %401 {strides = array<i32>} : memref<28x16x128xf32, #tpu.memory_space<vmem>>, vector<1x16x128xf32>,
    %402 = vector.extract_strided_slice %369 {offsets = [32, 128], sizes = [16, 128], strides = [1, 1]} : vector<240x256xf32> to vector<16x128xf32>
    %c0_287 = arith.constant 0 : index
    %c0_288 = arith.constant 0 : index
    %403 = vector.load %arg11[%c0_287, %c0_288] : memref<1x128xf32, #tpu.memory_space<vmem>>, vector<1x128xf32>
    %404 = vector.broadcast %403 : vector<1x128xf32> to vector<16x128xf32>
    %405 = arith.addf %402, %404 : vector<16x128xf32>
    %406 = math.tanh %405 : vector<16x128xf32>
    %c4_289 = arith.constant 4 : index
    %c0_290 = arith.constant 0 : index
    %c0_291 = arith.constant 0 : index
    %407 = vector.load %arg13[%c4_289, %c0_290, %c0_291] : memref<28x16x128xf32, #tpu.memory_space<vmem>>, vector<1x16x128xf32>
    %408 = vector.shape_cast %407 : vector<1x16x128xf32> to vector<16x128xf32>
    %409 = vector.shape_cast %406 : vector<16x128xf32> to vector<1x16x128xf32>
    tpu.vector_store %arg13[%c4_289, %c0_290, %c0_291], %409 {strides = array<i32>} : memref<28x16x128xf32, #tpu.memory_space<vmem>>, vector<1x16x128xf32>,
    %410 = vector.extract_strided_slice %369 {offsets = [48, 0], sizes = [16, 128], strides = [1, 1]} : vector<240x256xf32> to vector<16x128xf32>
    %c0_292 = arith.constant 0 : index
    %c0_293 = arith.constant 0 : index
    %411 = vector.load %arg11[%c0_292, %c0_293] : memref<1x128xf32, #tpu.memory_space<vmem>>, vector<1x128xf32>
    %412 = vector.broadcast %411 : vector<1x128xf32> to vector<16x128xf32>
    %413 = arith.addf %410, %412 : vector<16x128xf32>
    %414 = math.tanh %413 : vector<16x128xf32>
    %c5_294 = arith.constant 5 : index
    %c0_295 = arith.constant 0 : index
    %c0_296 = arith.constant 0 : index
    %415 = vector.load %arg13[%c5_294, %c0_295, %c0_296] : memref<28x16x128xf32, #tpu.memory_space<vmem>>, vector<1x16x128xf32>
    %416 = vector.shape_cast %415 : vector<1x16x128xf32> to vector<16x128xf32>
    %417 = vector.shape_cast %414 : vector<16x128xf32> to vector<1x16x128xf32>
    tpu.vector_store %arg13[%c5_294, %c0_295, %c0_296], %417 {strides = array<i32>} : memref<28x16x128xf32, #tpu.memory_space<vmem>>, vector<1x16x128xf32>,
    %418 = vector.extract_strided_slice %369 {offsets = [48, 128], sizes = [16, 128], strides = [1, 1]} : vector<240x256xf32> to vector<16x128xf32>
    %c0_297 = arith.constant 0 : index
    %c0_298 = arith.constant 0 : index
    %419 = vector.load %arg11[%c0_297, %c0_298] : memref<1x128xf32, #tpu.memory_space<vmem>>, vector<1x128xf32>
    %420 = vector.broadcast %419 : vector<1x128xf32> to vector<16x128xf32>
    %421 = arith.addf %418, %420 : vector<16x128xf32>
    %422 = math.tanh %421 : vector<16x128xf32>
    %c6_299 = arith.constant 6 : index
    %c0_300 = arith.constant 0 : index
    %c0_301 = arith.constant 0 : index
    %423 = vector.load %arg13[%c6_299, %c0_300, %c0_301] : memref<28x16x128xf32, #tpu.memory_space<vmem>>, vector<1x16x128xf32>
    %424 = vector.shape_cast %423 : vector<1x16x128xf32> to vector<16x128xf32>
    %425 = vector.shape_cast %422 : vector<16x128xf32> to vector<1x16x128xf32>
    tpu.vector_store %arg13[%c6_299, %c0_300, %c0_301], %425 {strides = array<i32>} : memref<28x16x128xf32, #tpu.memory_space<vmem>>, vector<1x16x128xf32>,
    %426 = vector.extract_strided_slice %369 {offsets = [64, 0], sizes = [16, 128], strides = [1, 1]} : vector<240x256xf32> to vector<16x128xf32>
    %c0_302 = arith.constant 0 : index
    %c0_303 = arith.constant 0 : index
    %427 = vector.load %arg11[%c0_302, %c0_303] : memref<1x128xf32, #tpu.memory_space<vmem>>, vector<1x128xf32>
    %428 = vector.broadcast %427 : vector<1x128xf32> to vector<16x128xf32>
    %429 = arith.addf %426, %428 : vector<16x128xf32>
    %430 = math.tanh %429 : vector<16x128xf32>
    %c7_304 = arith.constant 7 : index
    %c0_305 = arith.constant 0 : index
    %c0_306 = arith.constant 0 : index
    %431 = vector.load %arg13[%c7_304, %c0_305, %c0_306] : memref<28x16x128xf32, #tpu.memory_space<vmem>>, vector<1x16x128xf32>
    %432 = vector.shape_cast %431 : vector<1x16x128xf32> to vector<16x128xf32>
    %433 = vector.shape_cast %430 : vector<16x128xf32> to vector<1x16x128xf32>
    tpu.vector_store %arg13[%c7_304, %c0_305, %c0_306], %433 {strides = array<i32>} : memref<28x16x128xf32, #tpu.memory_space<vmem>>, vector<1x16x128xf32>,
    %434 = vector.extract_strided_slice %369 {offsets = [64, 128], sizes = [16, 128], strides = [1, 1]} : vector<240x256xf32> to vector<16x128xf32>
    %c0_307 = arith.constant 0 : index
    %c0_308 = arith.constant 0 : index
    %435 = vector.load %arg11[%c0_307, %c0_308] : memref<1x128xf32, #tpu.memory_space<vmem>>, vector<1x128xf32>
    %436 = vector.broadcast %435 : vector<1x128xf32> to vector<16x128xf32>
    %437 = arith.addf %434, %436 : vector<16x128xf32>
    %438 = math.tanh %437 : vector<16x128xf32>
    %c8_309 = arith.constant 8 : index
    %c0_310 = arith.constant 0 : index
    %c0_311 = arith.constant 0 : index
    %439 = vector.load %arg13[%c8_309, %c0_310, %c0_311] : memref<28x16x128xf32, #tpu.memory_space<vmem>>, vector<1x16x128xf32>
    %440 = vector.shape_cast %439 : vector<1x16x128xf32> to vector<16x128xf32>
    %441 = vector.shape_cast %438 : vector<16x128xf32> to vector<1x16x128xf32>
    tpu.vector_store %arg13[%c8_309, %c0_310, %c0_311], %441 {strides = array<i32>} : memref<28x16x128xf32, #tpu.memory_space<vmem>>, vector<1x16x128xf32>,
    %442 = vector.extract_strided_slice %369 {offsets = [80, 0], sizes = [16, 128], strides = [1, 1]} : vector<240x256xf32> to vector<16x128xf32>
    %c0_312 = arith.constant 0 : index
    %c0_313 = arith.constant 0 : index
    %443 = vector.load %arg11[%c0_312, %c0_313] : memref<1x128xf32, #tpu.memory_space<vmem>>, vector<1x128xf32>
    %444 = vector.broadcast %443 : vector<1x128xf32> to vector<16x128xf32>
    %445 = arith.addf %442, %444 : vector<16x128xf32>
    %446 = math.tanh %445 : vector<16x128xf32>
    %c9_314 = arith.constant 9 : index
    %c0_315 = arith.constant 0 : index
    %c0_316 = arith.constant 0 : index
    %447 = vector.load %arg13[%c9_314, %c0_315, %c0_316] : memref<28x16x128xf32, #tpu.memory_space<vmem>>, vector<1x16x128xf32>
    %448 = vector.shape_cast %447 : vector<1x16x128xf32> to vector<16x128xf32>
    %449 = vector.shape_cast %446 : vector<16x128xf32> to vector<1x16x128xf32>
    tpu.vector_store %arg13[%c9_314, %c0_315, %c0_316], %449 {strides = array<i32>} : memref<28x16x128xf32, #tpu.memory_space<vmem>>, vector<1x16x128xf32>,
    %450 = vector.extract_strided_slice %369 {offsets = [80, 128], sizes = [16, 128], strides = [1, 1]} : vector<240x256xf32> to vector<16x128xf32>
    %c0_317 = arith.constant 0 : index
    %c0_318 = arith.constant 0 : index
    %451 = vector.load %arg11[%c0_317, %c0_318] : memref<1x128xf32, #tpu.memory_space<vmem>>, vector<1x128xf32>
    %452 = vector.broadcast %451 : vector<1x128xf32> to vector<16x128xf32>
    %453 = arith.addf %450, %452 : vector<16x128xf32>
    %454 = math.tanh %453 : vector<16x128xf32>
    %c10_319 = arith.constant 10 : index
    %c0_320 = arith.constant 0 : index
    %c0_321 = arith.constant 0 : index
    %455 = vector.load %arg13[%c10_319, %c0_320, %c0_321] : memref<28x16x128xf32, #tpu.memory_space<vmem>>, vector<1x16x128xf32>
    %456 = vector.shape_cast %455 : vector<1x16x128xf32> to vector<16x128xf32>
    %457 = vector.shape_cast %454 : vector<16x128xf32> to vector<1x16x128xf32>
    tpu.vector_store %arg13[%c10_319, %c0_320, %c0_321], %457 {strides = array<i32>} : memref<28x16x128xf32, #tpu.memory_space<vmem>>, vector<1x16x128xf32>,
    %458 = vector.extract_strided_slice %369 {offsets = [96, 0], sizes = [16, 128], strides = [1, 1]} : vector<240x256xf32> to vector<16x128xf32>
    %c0_322 = arith.constant 0 : index
    %c0_323 = arith.constant 0 : index
    %459 = vector.load %arg11[%c0_322, %c0_323] : memref<1x128xf32, #tpu.memory_space<vmem>>, vector<1x128xf32>
    %460 = vector.broadcast %459 : vector<1x128xf32> to vector<16x128xf32>
    %461 = arith.addf %458, %460 : vector<16x128xf32>
    %462 = math.tanh %461 : vector<16x128xf32>
    %c11_324 = arith.constant 11 : index
    %c0_325 = arith.constant 0 : index
    %c0_326 = arith.constant 0 : index
    %463 = vector.load %arg13[%c11_324, %c0_325, %c0_326] : memref<28x16x128xf32, #tpu.memory_space<vmem>>, vector<1x16x128xf32>
    %464 = vector.shape_cast %463 : vector<1x16x128xf32> to vector<16x128xf32>
    %465 = vector.shape_cast %462 : vector<16x128xf32> to vector<1x16x128xf32>
    tpu.vector_store %arg13[%c11_324, %c0_325, %c0_326], %465 {strides = array<i32>} : memref<28x16x128xf32, #tpu.memory_space<vmem>>, vector<1x16x128xf32>,
    %466 = vector.extract_strided_slice %369 {offsets = [96, 128], sizes = [16, 128], strides = [1, 1]} : vector<240x256xf32> to vector<16x128xf32>
    %c0_327 = arith.constant 0 : index
    %c0_328 = arith.constant 0 : index
    %467 = vector.load %arg11[%c0_327, %c0_328] : memref<1x128xf32, #tpu.memory_space<vmem>>, vector<1x128xf32>
    %468 = vector.broadcast %467 : vector<1x128xf32> to vector<16x128xf32>
    %469 = arith.addf %466, %468 : vector<16x128xf32>
    %470 = math.tanh %469 : vector<16x128xf32>
    %c12_329 = arith.constant 12 : index
    %c0_330 = arith.constant 0 : index
    %c0_331 = arith.constant 0 : index
    %471 = vector.load %arg13[%c12_329, %c0_330, %c0_331] : memref<28x16x128xf32, #tpu.memory_space<vmem>>, vector<1x16x128xf32>
    %472 = vector.shape_cast %471 : vector<1x16x128xf32> to vector<16x128xf32>
    %473 = vector.shape_cast %470 : vector<16x128xf32> to vector<1x16x128xf32>
    tpu.vector_store %arg13[%c12_329, %c0_330, %c0_331], %473 {strides = array<i32>} : memref<28x16x128xf32, #tpu.memory_space<vmem>>, vector<1x16x128xf32>,
    %474 = vector.extract_strided_slice %369 {offsets = [112, 0], sizes = [16, 128], strides = [1, 1]} : vector<240x256xf32> to vector<16x128xf32>
    %c0_332 = arith.constant 0 : index
    %c0_333 = arith.constant 0 : index
    %475 = vector.load %arg11[%c0_332, %c0_333] : memref<1x128xf32, #tpu.memory_space<vmem>>, vector<1x128xf32>
    %476 = vector.broadcast %475 : vector<1x128xf32> to vector<16x128xf32>
    %477 = arith.addf %474, %476 : vector<16x128xf32>
    %478 = math.tanh %477 : vector<16x128xf32>
    %c13_334 = arith.constant 13 : index
    %c0_335 = arith.constant 0 : index
    %c0_336 = arith.constant 0 : index
    %479 = vector.load %arg13[%c13_334, %c0_335, %c0_336] : memref<28x16x128xf32, #tpu.memory_space<vmem>>, vector<1x16x128xf32>
    %480 = vector.shape_cast %479 : vector<1x16x128xf32> to vector<16x128xf32>
    %481 = vector.shape_cast %478 : vector<16x128xf32> to vector<1x16x128xf32>
    tpu.vector_store %arg13[%c13_334, %c0_335, %c0_336], %481 {strides = array<i32>} : memref<28x16x128xf32, #tpu.memory_space<vmem>>, vector<1x16x128xf32>,
    %482 = vector.extract_strided_slice %369 {offsets = [112, 128], sizes = [16, 128], strides = [1, 1]} : vector<240x256xf32> to vector<16x128xf32>
    %c0_337 = arith.constant 0 : index
    %c0_338 = arith.constant 0 : index
    %483 = vector.load %arg11[%c0_337, %c0_338] : memref<1x128xf32, #tpu.memory_space<vmem>>, vector<1x128xf32>
    %484 = vector.broadcast %483 : vector<1x128xf32> to vector<16x128xf32>
    %485 = arith.addf %482, %484 : vector<16x128xf32>
    %486 = math.tanh %485 : vector<16x128xf32>
    %c14_339 = arith.constant 14 : index
    %c0_340 = arith.constant 0 : index
    %c0_341 = arith.constant 0 : index
    %487 = vector.load %arg13[%c14_339, %c0_340, %c0_341] : memref<28x16x128xf32, #tpu.memory_space<vmem>>, vector<1x16x128xf32>
    %488 = vector.shape_cast %487 : vector<1x16x128xf32> to vector<16x128xf32>
    %489 = vector.shape_cast %486 : vector<16x128xf32> to vector<1x16x128xf32>
    tpu.vector_store %arg13[%c14_339, %c0_340, %c0_341], %489 {strides = array<i32>} : memref<28x16x128xf32, #tpu.memory_space<vmem>>, vector<1x16x128xf32>,
    %490 = vector.extract_strided_slice %369 {offsets = [128, 0], sizes = [16, 128], strides = [1, 1]} : vector<240x256xf32> to vector<16x128xf32>
    %c0_342 = arith.constant 0 : index
    %c0_343 = arith.constant 0 : index
    %491 = vector.load %arg11[%c0_342, %c0_343] : memref<1x128xf32, #tpu.memory_space<vmem>>, vector<1x128xf32>
    %492 = vector.broadcast %491 : vector<1x128xf32> to vector<16x128xf32>
    %493 = arith.addf %490, %492 : vector<16x128xf32>
    %494 = math.tanh %493 : vector<16x128xf32>
    %c15_344 = arith.constant 15 : index
    %c0_345 = arith.constant 0 : index
    %c0_346 = arith.constant 0 : index
    %495 = vector.load %arg13[%c15_344, %c0_345, %c0_346] : memref<28x16x128xf32, #tpu.memory_space<vmem>>, vector<1x16x128xf32>
    %496 = vector.shape_cast %495 : vector<1x16x128xf32> to vector<16x128xf32>
    %497 = vector.shape_cast %494 : vector<16x128xf32> to vector<1x16x128xf32>
    tpu.vector_store %arg13[%c15_344, %c0_345, %c0_346], %497 {strides = array<i32>} : memref<28x16x128xf32, #tpu.memory_space<vmem>>, vector<1x16x128xf32>,
    %498 = vector.extract_strided_slice %369 {offsets = [128, 128], sizes = [16, 128], strides = [1, 1]} : vector<240x256xf32> to vector<16x128xf32>
    %c0_347 = arith.constant 0 : index
    %c0_348 = arith.constant 0 : index
    %499 = vector.load %arg11[%c0_347, %c0_348] : memref<1x128xf32, #tpu.memory_space<vmem>>, vector<1x128xf32>
    %500 = vector.broadcast %499 : vector<1x128xf32> to vector<16x128xf32>
    %501 = arith.addf %498, %500 : vector<16x128xf32>
    %502 = math.tanh %501 : vector<16x128xf32>
    %c16_349 = arith.constant 16 : index
    %c0_350 = arith.constant 0 : index
    %c0_351 = arith.constant 0 : index
    %503 = vector.load %arg13[%c16_349, %c0_350, %c0_351] : memref<28x16x128xf32, #tpu.memory_space<vmem>>, vector<1x16x128xf32>
    %504 = vector.shape_cast %503 : vector<1x16x128xf32> to vector<16x128xf32>
    %505 = vector.shape_cast %502 : vector<16x128xf32> to vector<1x16x128xf32>
    tpu.vector_store %arg13[%c16_349, %c0_350, %c0_351], %505 {strides = array<i32>} : memref<28x16x128xf32, #tpu.memory_space<vmem>>, vector<1x16x128xf32>,
    %506 = vector.extract_strided_slice %369 {offsets = [144, 0], sizes = [16, 128], strides = [1, 1]} : vector<240x256xf32> to vector<16x128xf32>
    %c0_352 = arith.constant 0 : index
    %c0_353 = arith.constant 0 : index
    %507 = vector.load %arg11[%c0_352, %c0_353] : memref<1x128xf32, #tpu.memory_space<vmem>>, vector<1x128xf32>
    %508 = vector.broadcast %507 : vector<1x128xf32> to vector<16x128xf32>
    %509 = arith.addf %506, %508 : vector<16x128xf32>
    %510 = math.tanh %509 : vector<16x128xf32>
    %c17_354 = arith.constant 17 : index
    %c0_355 = arith.constant 0 : index
    %c0_356 = arith.constant 0 : index
    %511 = vector.load %arg13[%c17_354, %c0_355, %c0_356] : memref<28x16x128xf32, #tpu.memory_space<vmem>>, vector<1x16x128xf32>
    %512 = vector.shape_cast %511 : vector<1x16x128xf32> to vector<16x128xf32>
    %513 = vector.shape_cast %510 : vector<16x128xf32> to vector<1x16x128xf32>
    tpu.vector_store %arg13[%c17_354, %c0_355, %c0_356], %513 {strides = array<i32>} : memref<28x16x128xf32, #tpu.memory_space<vmem>>, vector<1x16x128xf32>,
    %514 = vector.extract_strided_slice %369 {offsets = [144, 128], sizes = [16, 128], strides = [1, 1]} : vector<240x256xf32> to vector<16x128xf32>
    %c0_357 = arith.constant 0 : index
    %c0_358 = arith.constant 0 : index
    %515 = vector.load %arg11[%c0_357, %c0_358] : memref<1x128xf32, #tpu.memory_space<vmem>>, vector<1x128xf32>
    %516 = vector.broadcast %515 : vector<1x128xf32> to vector<16x128xf32>
    %517 = arith.addf %514, %516 : vector<16x128xf32>
    %518 = math.tanh %517 : vector<16x128xf32>
    %c18_359 = arith.constant 18 : index
    %c0_360 = arith.constant 0 : index
    %c0_361 = arith.constant 0 : index
    %519 = vector.load %arg13[%c18_359, %c0_360, %c0_361] : memref<28x16x128xf32, #tpu.memory_space<vmem>>, vector<1x16x128xf32>
    %520 = vector.shape_cast %519 : vector<1x16x128xf32> to vector<16x128xf32>
    %521 = vector.shape_cast %518 : vector<16x128xf32> to vector<1x16x128xf32>
    tpu.vector_store %arg13[%c18_359, %c0_360, %c0_361], %521 {strides = array<i32>} : memref<28x16x128xf32, #tpu.memory_space<vmem>>, vector<1x16x128xf32>,
    %522 = vector.extract_strided_slice %369 {offsets = [160, 0], sizes = [16, 128], strides = [1, 1]} : vector<240x256xf32> to vector<16x128xf32>
    %c0_362 = arith.constant 0 : index
    %c0_363 = arith.constant 0 : index
    %523 = vector.load %arg11[%c0_362, %c0_363] : memref<1x128xf32, #tpu.memory_space<vmem>>, vector<1x128xf32>
    %524 = vector.broadcast %523 : vector<1x128xf32> to vector<16x128xf32>
    %525 = arith.addf %522, %524 : vector<16x128xf32>
    %526 = math.tanh %525 : vector<16x128xf32>
    %c19_364 = arith.constant 19 : index
    %c0_365 = arith.constant 0 : index
    %c0_366 = arith.constant 0 : index
    %527 = vector.load %arg13[%c19_364, %c0_365, %c0_366] : memref<28x16x128xf32, #tpu.memory_space<vmem>>, vector<1x16x128xf32>
    %528 = vector.shape_cast %527 : vector<1x16x128xf32> to vector<16x128xf32>
    %529 = vector.shape_cast %526 : vector<16x128xf32> to vector<1x16x128xf32>
    tpu.vector_store %arg13[%c19_364, %c0_365, %c0_366], %529 {strides = array<i32>} : memref<28x16x128xf32, #tpu.memory_space<vmem>>, vector<1x16x128xf32>,
    %530 = vector.extract_strided_slice %369 {offsets = [160, 128], sizes = [16, 128], strides = [1, 1]} : vector<240x256xf32> to vector<16x128xf32>
    %c0_367 = arith.constant 0 : index
    %c0_368 = arith.constant 0 : index
    %531 = vector.load %arg11[%c0_367, %c0_368] : memref<1x128xf32, #tpu.memory_space<vmem>>, vector<1x128xf32>
    %532 = vector.broadcast %531 : vector<1x128xf32> to vector<16x128xf32>
    %533 = arith.addf %530, %532 : vector<16x128xf32>
    %534 = math.tanh %533 : vector<16x128xf32>
    %c20_369 = arith.constant 20 : index
    %c0_370 = arith.constant 0 : index
    %c0_371 = arith.constant 0 : index
    %535 = vector.load %arg13[%c20_369, %c0_370, %c0_371] : memref<28x16x128xf32, #tpu.memory_space<vmem>>, vector<1x16x128xf32>
    %536 = vector.shape_cast %535 : vector<1x16x128xf32> to vector<16x128xf32>
    %537 = vector.shape_cast %534 : vector<16x128xf32> to vector<1x16x128xf32>
    tpu.vector_store %arg13[%c20_369, %c0_370, %c0_371], %537 {strides = array<i32>} : memref<28x16x128xf32, #tpu.memory_space<vmem>>, vector<1x16x128xf32>,
    %538 = vector.extract_strided_slice %369 {offsets = [176, 0], sizes = [16, 128], strides = [1, 1]} : vector<240x256xf32> to vector<16x128xf32>
    %c0_372 = arith.constant 0 : index
    %c0_373 = arith.constant 0 : index
    %539 = vector.load %arg11[%c0_372, %c0_373] : memref<1x128xf32, #tpu.memory_space<vmem>>, vector<1x128xf32>
    %540 = vector.broadcast %539 : vector<1x128xf32> to vector<16x128xf32>
    %541 = arith.addf %538, %540 : vector<16x128xf32>
    %542 = math.tanh %541 : vector<16x128xf32>
    %c21_374 = arith.constant 21 : index
    %c0_375 = arith.constant 0 : index
    %c0_376 = arith.constant 0 : index
    %543 = vector.load %arg13[%c21_374, %c0_375, %c0_376] : memref<28x16x128xf32, #tpu.memory_space<vmem>>, vector<1x16x128xf32>
    %544 = vector.shape_cast %543 : vector<1x16x128xf32> to vector<16x128xf32>
    %545 = vector.shape_cast %542 : vector<16x128xf32> to vector<1x16x128xf32>
    tpu.vector_store %arg13[%c21_374, %c0_375, %c0_376], %545 {strides = array<i32>} : memref<28x16x128xf32, #tpu.memory_space<vmem>>, vector<1x16x128xf32>,
    %546 = vector.extract_strided_slice %369 {offsets = [176, 128], sizes = [16, 128], strides = [1, 1]} : vector<240x256xf32> to vector<16x128xf32>
    %c0_377 = arith.constant 0 : index
    %c0_378 = arith.constant 0 : index
    %547 = vector.load %arg11[%c0_377, %c0_378] : memref<1x128xf32, #tpu.memory_space<vmem>>, vector<1x128xf32>
    %548 = vector.broadcast %547 : vector<1x128xf32> to vector<16x128xf32>
    %549 = arith.addf %546, %548 : vector<16x128xf32>
    %550 = math.tanh %549 : vector<16x128xf32>
    %c22_379 = arith.constant 22 : index
    %c0_380 = arith.constant 0 : index
    %c0_381 = arith.constant 0 : index
    %551 = vector.load %arg13[%c22_379, %c0_380, %c0_381] : memref<28x16x128xf32, #tpu.memory_space<vmem>>, vector<1x16x128xf32>
    %552 = vector.shape_cast %551 : vector<1x16x128xf32> to vector<16x128xf32>
    %553 = vector.shape_cast %550 : vector<16x128xf32> to vector<1x16x128xf32>
    tpu.vector_store %arg13[%c22_379, %c0_380, %c0_381], %553 {strides = array<i32>} : memref<28x16x128xf32, #tpu.memory_space<vmem>>, vector<1x16x128xf32>,
    %554 = vector.extract_strided_slice %369 {offsets = [192, 0], sizes = [16, 128], strides = [1, 1]} : vector<240x256xf32> to vector<16x128xf32>
    %c0_382 = arith.constant 0 : index
    %c0_383 = arith.constant 0 : index
    %555 = vector.load %arg11[%c0_382, %c0_383] : memref<1x128xf32, #tpu.memory_space<vmem>>, vector<1x128xf32>
    %556 = vector.broadcast %555 : vector<1x128xf32> to vector<16x128xf32>
    %557 = arith.addf %554, %556 : vector<16x128xf32>
    %558 = math.tanh %557 : vector<16x128xf32>
    %c23_384 = arith.constant 23 : index
    %c0_385 = arith.constant 0 : index
    %c0_386 = arith.constant 0 : index
    %559 = vector.load %arg13[%c23_384, %c0_385, %c0_386] : memref<28x16x128xf32, #tpu.memory_space<vmem>>, vector<1x16x128xf32>
    %560 = vector.shape_cast %559 : vector<1x16x128xf32> to vector<16x128xf32>
    %561 = vector.shape_cast %558 : vector<16x128xf32> to vector<1x16x128xf32>
    tpu.vector_store %arg13[%c23_384, %c0_385, %c0_386], %561 {strides = array<i32>} : memref<28x16x128xf32, #tpu.memory_space<vmem>>, vector<1x16x128xf32>,
    %562 = vector.extract_strided_slice %369 {offsets = [192, 128], sizes = [16, 128], strides = [1, 1]} : vector<240x256xf32> to vector<16x128xf32>
    %c0_387 = arith.constant 0 : index
    %c0_388 = arith.constant 0 : index
    %563 = vector.load %arg11[%c0_387, %c0_388] : memref<1x128xf32, #tpu.memory_space<vmem>>, vector<1x128xf32>
    %564 = vector.broadcast %563 : vector<1x128xf32> to vector<16x128xf32>
    %565 = arith.addf %562, %564 : vector<16x128xf32>
    %566 = math.tanh %565 : vector<16x128xf32>
    %c24_389 = arith.constant 24 : index
    %c0_390 = arith.constant 0 : index
    %c0_391 = arith.constant 0 : index
    %567 = vector.load %arg13[%c24_389, %c0_390, %c0_391] : memref<28x16x128xf32, #tpu.memory_space<vmem>>, vector<1x16x128xf32>
    %568 = vector.shape_cast %567 : vector<1x16x128xf32> to vector<16x128xf32>
    %569 = vector.shape_cast %566 : vector<16x128xf32> to vector<1x16x128xf32>
    tpu.vector_store %arg13[%c24_389, %c0_390, %c0_391], %569 {strides = array<i32>} : memref<28x16x128xf32, #tpu.memory_space<vmem>>, vector<1x16x128xf32>,
    %570 = vector.extract_strided_slice %369 {offsets = [208, 0], sizes = [16, 128], strides = [1, 1]} : vector<240x256xf32> to vector<16x128xf32>
    %c0_392 = arith.constant 0 : index
    %c0_393 = arith.constant 0 : index
    %571 = vector.load %arg11[%c0_392, %c0_393] : memref<1x128xf32, #tpu.memory_space<vmem>>, vector<1x128xf32>
    %572 = vector.broadcast %571 : vector<1x128xf32> to vector<16x128xf32>
    %573 = arith.addf %570, %572 : vector<16x128xf32>
    %574 = math.tanh %573 : vector<16x128xf32>
    %c25_394 = arith.constant 25 : index
    %c0_395 = arith.constant 0 : index
    %c0_396 = arith.constant 0 : index
    %575 = vector.load %arg13[%c25_394, %c0_395, %c0_396] : memref<28x16x128xf32, #tpu.memory_space<vmem>>, vector<1x16x128xf32>
    %576 = vector.shape_cast %575 : vector<1x16x128xf32> to vector<16x128xf32>
    %577 = vector.shape_cast %574 : vector<16x128xf32> to vector<1x16x128xf32>
    tpu.vector_store %arg13[%c25_394, %c0_395, %c0_396], %577 {strides = array<i32>} : memref<28x16x128xf32, #tpu.memory_space<vmem>>, vector<1x16x128xf32>,
    %578 = vector.extract_strided_slice %369 {offsets = [208, 128], sizes = [16, 128], strides = [1, 1]} : vector<240x256xf32> to vector<16x128xf32>
    %c0_397 = arith.constant 0 : index
    %c0_398 = arith.constant 0 : index
    %579 = vector.load %arg11[%c0_397, %c0_398] : memref<1x128xf32, #tpu.memory_space<vmem>>, vector<1x128xf32>
    %580 = vector.broadcast %579 : vector<1x128xf32> to vector<16x128xf32>
    %581 = arith.addf %578, %580 : vector<16x128xf32>
    %582 = math.tanh %581 : vector<16x128xf32>
    %c26_399 = arith.constant 26 : index
    %c0_400 = arith.constant 0 : index
    %c0_401 = arith.constant 0 : index
    %583 = vector.load %arg13[%c26_399, %c0_400, %c0_401] : memref<28x16x128xf32, #tpu.memory_space<vmem>>, vector<1x16x128xf32>
    %584 = vector.shape_cast %583 : vector<1x16x128xf32> to vector<16x128xf32>
    %585 = vector.shape_cast %582 : vector<16x128xf32> to vector<1x16x128xf32>
    tpu.vector_store %arg13[%c26_399, %c0_400, %c0_401], %585 {strides = array<i32>} : memref<28x16x128xf32, #tpu.memory_space<vmem>>, vector<1x16x128xf32>,
    %586 = vector.extract_strided_slice %369 {offsets = [224, 0], sizes = [16, 128], strides = [1, 1]} : vector<240x256xf32> to vector<16x128xf32>
    %c0_402 = arith.constant 0 : index
    %c0_403 = arith.constant 0 : index
    %587 = vector.load %arg11[%c0_402, %c0_403] : memref<1x128xf32, #tpu.memory_space<vmem>>, vector<1x128xf32>
    %588 = vector.broadcast %587 : vector<1x128xf32> to vector<16x128xf32>
    %589 = arith.addf %586, %588 : vector<16x128xf32>
    %590 = math.tanh %589 : vector<16x128xf32>
    %c27_404 = arith.constant 27 : index
    %c0_405 = arith.constant 0 : index
    %c0_406 = arith.constant 0 : index
    %591 = vector.load %arg13[%c27_404, %c0_405, %c0_406] : memref<28x16x128xf32, #tpu.memory_space<vmem>>, vector<1x16x128xf32>
    %592 = vector.shape_cast %591 : vector<1x16x128xf32> to vector<16x128xf32>
    %593 = vector.shape_cast %590 : vector<16x128xf32> to vector<1x16x128xf32>
    tpu.vector_store %arg13[%c27_404, %c0_405, %c0_406], %593 {strides = array<i32>} : memref<28x16x128xf32, #tpu.memory_space<vmem>>, vector<1x16x128xf32>,
    return
  }
  func.func @transform_0(%arg0: i32) -> (i32, i32, i32) {
    %c0_i32 = arith.constant 0 : i32
    %c0_i32_0 = arith.constant 0 : i32
    %c0_i32_1 = arith.constant 0 : i32
    return %c0_i32, %arg0, %c0_i32_0 : i32, i32, i32
  }
  func.func @transform_1(%arg0: i32) -> (i32, i32) {
    %c0_i32 = arith.constant 0 : i32
    %c0_i32_0 = arith.constant 0 : i32
    %c0_i32_1 = arith.constant 0 : i32
    return %c0_i32, %c0_i32_0 : i32, i32
  }
  func.func @transform_2(%arg0: i32) -> (i32, i32) {
    %c0_i32 = arith.constant 0 : i32
    %c0_i32_0 = arith.constant 0 : i32
    %c0_i32_1 = arith.constant 0 : i32
    return %c0_i32, %c0_i32_0 : i32, i32
  }
  func.func @transform_3(%arg0: i32) -> (i32, i32) {
    %c0_i32 = arith.constant 0 : i32
    %c0_i32_0 = arith.constant 0 : i32
    %c0_i32_1 = arith.constant 0 : i32
    return %c0_i32, %c0_i32_0 : i32, i32
  }
  func.func @transform_4(%arg0: i32) -> (i32, i32) {
    %c0_i32 = arith.constant 0 : i32
    %c0_i32_0 = arith.constant 0 : i32
    %c0_i32_1 = arith.constant 0 : i32
    return %c0_i32, %c0_i32_0 : i32, i32
  }
  func.func @transform_5(%arg0: i32) -> (i32, i32) {
    %c0_i32 = arith.constant 0 : i32
    %c0_i32_0 = arith.constant 0 : i32
    %c0_i32_1 = arith.constant 0 : i32
    return %c0_i32, %c0_i32_0 : i32, i32
  }
  func.func @transform_6(%arg0: i32) -> (i32, i32) {
    %c0_i32 = arith.constant 0 : i32
    %c0_i32_0 = arith.constant 0 : i32
    %c0_i32_1 = arith.constant 0 : i32
    return %c0_i32, %c0_i32_0 : i32, i32
  }
  func.func @transform_7(%arg0: i32) -> (i32, i32) {
    %c0_i32 = arith.constant 0 : i32
    %c0_i32_0 = arith.constant 0 : i32
    %c0_i32_1 = arith.constant 0 : i32
    return %c0_i32, %c0_i32_0 : i32, i32
  }
  func.func @transform_8(%arg0: i32) -> (i32, i32) {
    %c0_i32 = arith.constant 0 : i32
    %c0_i32_0 = arith.constant 0 : i32
    %c0_i32_1 = arith.constant 0 : i32
    return %c0_i32, %c0_i32_0 : i32, i32
  }
  func.func @transform_9(%arg0: i32) -> (i32, i32) {
    %c0_i32 = arith.constant 0 : i32
    %c0_i32_0 = arith.constant 0 : i32
    %c0_i32_1 = arith.constant 0 : i32
    return %c0_i32, %c0_i32_0 : i32, i32
  }
  func.func @transform_10(%arg0: i32) -> (i32, i32) {
    %c0_i32 = arith.constant 0 : i32
    %c0_i32_0 = arith.constant 0 : i32
    %c0_i32_1 = arith.constant 0 : i32
    return %c0_i32, %c0_i32_0 : i32, i32
  }
  func.func @transform_11(%arg0: i32) -> (i32, i32, i32) {
    %c0_i32 = arith.constant 0 : i32
    %c0_i32_0 = arith.constant 0 : i32
    %c0_i32_1 = arith.constant 0 : i32
    return %c0_i32, %arg0, %c0_i32_0 : i32, i32, i32
  }
  func.func @transform_12(%arg0: i32) -> (i32, i32, i32) {
    %c0_i32 = arith.constant 0 : i32
    %c0_i32_0 = arith.constant 0 : i32
    %c0_i32_1 = arith.constant 0 : i32
    return %c0_i32, %arg0, %c0_i32_0 : i32, i32, i32
  }
}

</mosaic_0001>

<llo_original>
// kernel: autoencoder_forward.1
$region0: #{autoencoder_forward.1}
  #allocation0 [shape = 'u32[]', space=smem, size = 0x4, offset = 0x4, fixed_abs, tag = 'smem constant byte address 0x4 - core index']
  #allocation1 [shape = 'u32[144,128]{1,0:T(1,128)}', space=vmem, size = 0x12000, scoped, tag = 'internal scratch']
  #allocation2 [shape = 'f32[160,96]{1,0:T(8,128)}', space=vmem, size = 0x14000, scoped, tag = 'scratch operand']
  #allocation3 [shape = 'f32[48,384]{1,0:T(8,128)}', space=vmem, size = 0x12000, scoped, tag = 'scratch operand']
  #allocation4 [shape = 'f32[80,128]{1,0:T(8,128)}', space=vmem, size = 0xa000, scoped, tag = 'scratch operand']
  #allocation5 [shape = 'f32[240,128]{1,0:T(8,128)}', space=vmem, size = 0x1e000, scoped, tag = 'scratch operand']
  %s0 = inlined_call_operand.vmem [shape: f32[28,32,28], index: 0, kind: input, shape index: {}]
  %s1 = inlined_call_operand.vmem [shape: bf16[96,256], index: 1, kind: input, shape index: {}]
  %s2 = inlined_call_operand.vmem [shape: f32[1,128], index: 2, kind: input, shape index: {}]
  %s3 = inlined_call_operand.vmem [shape: bf16[384,256], index: 3, kind: input, shape index: {}]
  %s4 = inlined_call_operand.vmem [shape: f32[1,128], index: 4, kind: input, shape index: {}]
  %s5 = inlined_call_operand.vmem [shape: bf16[128,384], index: 5, kind: input, shape index: {}]
  %s6 = inlined_call_operand.vmem [shape: f32[1,128], index: 6, kind: input, shape index: {}]
  %s7 = inlined_call_operand.vmem [shape: bf16[128,640], index: 7, kind: input, shape index: {}]
  %s8 = inlined_call_operand.vmem [shape: f32[1,128], index: 8, kind: input, shape index: {}]
  %s9 = inlined_call_operand.vmem [shape: bf16[128,256], index: 9, kind: input, shape index: {}]
  %s10 = inlined_call_operand.vmem [shape: f32[1,128], index: 10, kind: input, shape index: {}]
  %s11 = inlined_call_operand.vmem [shape: f32[2,32,128], index: 11, kind: output, shape index: {0}]
  %s12 = inlined_call_operand.vmem [shape: f32[28,32,128], index: 12, kind: output, shape index: {1}]
  %13 = xla_tuple %s11, %s12
  %s14 = sld [smem:[#allocation0]]
  $region191: #{autoencoder_forward.1} parent=0
    _
  %s16 = ssub.s32 1, %s14
  %s17 = scalar_select 0, %s16, %s14
  $region1: #{autoencoder_forward.1} parent=0
    #allocation6 [shape = 'u8[458752]{0}', space=vmem, size = 0x70000, scoped, tag = 'input window, operand 0']
    #allocation7 [shape = 'u8[32768]{0}', space=vmem, size = 0x8000, scoped, tag = 'output window, operand 0']
    #allocation8 [shape = 'u8[458752]{0}', space=vmem, size = 0x70000, scoped, tag = 'output window, operand 1']
    loop: start=0, step=1, limit=4
    $region2: #{autoencoder_forward.1} parent=1 // loop_pre_header
      _
    $region3: #{autoencoder_forward.1} parent=1 // loop_header
      %s19 = sphi 0, %s23
      %p20 = scmp.ge.s32.totalorder %s19, 4
      %s29 = sphi 0, %s31
      %s32 = sphi 0, %s29
      %s33 = sphi 0, %s32
      %s49 = sphi 0, %s33
      %s53 = sphi 0, %s53
      %s55 = sphi 0, %s53
      %s56 = sphi 0, %s55
      %s70 = sphi 0, %s56
      %s74 = sphi 0, %s74
      %s76 = sphi 0, %s74
      %s77 = sphi 0, %s76
      %s91 = sphi 0, %s77
      %s95 = sphi 0, %s95
      %s97 = sphi 0, %s95
      %s98 = sphi 0, %s97
      %s112 = sphi 0, %s98
      %s116 = sphi 0, %s116
      %s118 = sphi 0, %s116
      %s119 = sphi 0, %s118
      %s133 = sphi 0, %s119
      %s137 = sphi 0, %s137
      %s139 = sphi 0, %s137
      %s140 = sphi 0, %s139
      %s154 = sphi 0, %s140
      %s158 = sphi 0, %s158
      %s160 = sphi 0, %s158
      %s161 = sphi 0, %s160
      %s175 = sphi 0, %s161
      %s179 = sphi 0, %s179
      %s181 = sphi 0, %s179
      %s182 = sphi 0, %s181
      %s196 = sphi 0, %s182
      %s200 = sphi 0, %s200
      %s202 = sphi 0, %s200
      %s203 = sphi 0, %s202
      %s217 = sphi 0, %s203
      %s221 = sphi 0, %s221
      %s223 = sphi 0, %s221
      %s224 = sphi 0, %s223
      %s238 = sphi 0, %s224
      %s242 = sphi 0, %s242
      %s244 = sphi 0, %s242
      %s245 = sphi 0, %s244
      %s259 = sphi 0, %s245
      %s265 = sphi 0, %s267
      %s268 = sphi 0, %s265
      %s269 = sphi 0, %s268
      %s285 = sphi 0, %s269
      %s291 = sphi 0, %s293
      %s294 = sphi 0, %s291
      %s295 = sphi 0, %s294
      %s311 = sphi 0, %s295
    $region4: #{autoencoder_forward.1} parent=1 // loop_header_branch
      %22 = sbr.rel (%p20) target = $region8
    $region5: #{autoencoder_forward.1} parent=1 // loop_body
      %s24 = ssub.s32 %s19, 1
      %s25 = ssub.s32 %s19, 2
      %s26 = sadd.s32 %s19, 1
      %s27 = ssub.s32 %s19, %s26
      %p28 = scmp.eq.s32.totalorder %s27, 0
      %s30 = sadd.s32 %s29, 1
      %s31 = scalar_select %p28, %s29, %s30
      %p34 = pneg %p28
      %p35 = scmp.eq.s32.totalorder %s19, 1
      %p36 = por %p34, %p35
      %p37 = scmp.ne.s32.totalorder %s29, %s32
      %p38 = scmp.eq.s32.totalorder %s19, 0
      %p39 = por %p37, %p38
      %p40 = scmp.ne.s32.totalorder %s29, %s32
      %p41 = scmp.eq.s32.totalorder %s24, 1
      %p42 = por %p40, %p41
      %p43 = scmp.ne.s32.totalorder %s32, %s33
      %p44 = scmp.eq.s32.totalorder %s24, 0
      %p45 = por %p43, %p44
      %p46 = scmp.ne.s32.totalorder %s32, %s33
      %p47 = scmp.eq.s32.totalorder %s25, 1
      %p48 = por %p46, %p47
      %p50 = scmp.ne.s32.totalorder %s33, %s49
      %p51 = scmp.eq.s32.totalorder %s25, 0
      %p52 = por %p50, %p51
      %s54 = sadd.s32 %s53, 1
      %p57 = scmp.eq.s32.totalorder %s19, 1
      %p58 = scmp.ne.s32.totalorder %s53, %s55
      %p59 = scmp.eq.s32.totalorder %s19, 0
      %p60 = por %p58, %p59
      %p61 = scmp.ne.s32.totalorder %s53, %s55
      %p62 = scmp.eq.s32.totalorder %s24, 1
      %p63 = por %p61, %p62
      %p64 = scmp.ne.s32.totalorder %s55, %s56
      %p65 = scmp.eq.s32.totalorder %s24, 0
      %p66 = por %p64, %p65
      %p67 = scmp.ne.s32.totalorder %s55, %s56
      %p68 = scmp.eq.s32.totalorder %s25, 1
      %p69 = por %p67, %p68
      %p71 = scmp.ne.s32.totalorder %s56, %s70
      %p72 = scmp.eq.s32.totalorder %s25, 0
      %p73 = por %p71, %p72
      %s75 = sadd.s32 %s74, 1
      %p78 = scmp.eq.s32.totalorder %s19, 1
      %p79 = scmp.ne.s32.totalorder %s74, %s76
      %p80 = scmp.eq.s32.totalorder %s19, 0
      %p81 = por %p79, %p80
      %p82 = scmp.ne.s32.totalorder %s74, %s76
      %p83 = scmp.eq.s32.totalorder %s24, 1
      %p84 = por %p82, %p83
      %p85 = scmp.ne.s32.totalorder %s76, %s77
      %p86 = scmp.eq.s32.totalorder %s24, 0
      %p87 = por %p85, %p86
      %p88 = scmp.ne.s32.totalorder %s76, %s77
      %p89 = scmp.eq.s32.totalorder %s25, 1
      %p90 = por %p88, %p89
      %p92 = scmp.ne.s32.totalorder %s77, %s91
      %p93 = scmp.eq.s32.totalorder %s25, 0
      %p94 = por %p92, %p93
      %s96 = sadd.s32 %s95, 1
      %p99 = scmp.eq.s32.totalorder %s19, 1
      %p100 = scmp.ne.s32.totalorder %s95, %s97
      %p101 = scmp.eq.s32.totalorder %s19, 0
      %p102 = por %p100, %p101
      %p103 = scmp.ne.s32.totalorder %s95, %s97
      %p104 = scmp.eq.s32.totalorder %s24, 1
      %p105 = por %p103, %p104
      %p106 = scmp.ne.s32.totalorder %s97, %s98
      %p107 = scmp.eq.s32.totalorder %s24, 0
      %p108 = por %p106, %p107
      %p109 = scmp.ne.s32.totalorder %s97, %s98
      %p110 = scmp.eq.s32.totalorder %s25, 1
      %p111 = por %p109, %p110
      %p113 = scmp.ne.s32.totalorder %s98, %s112
      %p114 = scmp.eq.s32.totalorder %s25, 0
      %p115 = por %p113, %p114
      %s117 = sadd.s32 %s116, 1
      %p120 = scmp.eq.s32.totalorder %s19, 1
      %p121 = scmp.ne.s32.totalorder %s116, %s118
      %p122 = scmp.eq.s32.totalorder %s19, 0
      %p123 = por %p121, %p122
      %p124 = scmp.ne.s32.totalorder %s116, %s118
      %p125 = scmp.eq.s32.totalorder %s24, 1
      %p126 = por %p124, %p125
      %p127 = scmp.ne.s32.totalorder %s118, %s119
      %p128 = scmp.eq.s32.totalorder %s24, 0
      %p129 = por %p127, %p128
      %p130 = scmp.ne.s32.totalorder %s118, %s119
      %p131 = scmp.eq.s32.totalorder %s25, 1
      %p132 = por %p130, %p131
      %p134 = scmp.ne.s32.totalorder %s119, %s133
      %p135 = scmp.eq.s32.totalorder %s25, 0
      %p136 = por %p134, %p135
      %s138 = sadd.s32 %s137, 1
      %p141 = scmp.eq.s32.totalorder %s19, 1
      %p142 = scmp.ne.s32.totalorder %s137, %s139
      %p143 = scmp.eq.s32.totalorder %s19, 0
      %p144 = por %p142, %p143
      %p145 = scmp.ne.s32.totalorder %s137, %s139
      %p146 = scmp.eq.s32.totalorder %s24, 1
      %p147 = por %p145, %p146
      %p148 = scmp.ne.s32.totalorder %s139, %s140
      %p149 = scmp.eq.s32.totalorder %s24, 0
      %p150 = por %p148, %p149
      %p151 = scmp.ne.s32.totalorder %s139, %s140
      %p152 = scmp.eq.s32.totalorder %s25, 1
      %p153 = por %p151, %p152
      %p155 = scmp.ne.s32.totalorder %s140, %s154
      %p156 = scmp.eq.s32.totalorder %s25, 0
      %p157 = por %p155, %p156
      %s159 = sadd.s32 %s158, 1
      %p162 = scmp.eq.s32.totalorder %s19, 1
      %p163 = scmp.ne.s32.totalorder %s158, %s160
      %p164 = scmp.eq.s32.totalorder %s19, 0
      %p165 = por %p163, %p164
      %p166 = scmp.ne.s32.totalorder %s158, %s160
      %p167 = scmp.eq.s32.totalorder %s24, 1
      %p168 = por %p166, %p167
      %p169 = scmp.ne.s32.totalorder %s160, %s161
      %p170 = scmp.eq.s32.totalorder %s24, 0
      %p171 = por %p169, %p170
      %p172 = scmp.ne.s32.totalorder %s160, %s161
      %p173 = scmp.eq.s32.totalorder %s25, 1
      %p174 = por %p172, %p173
      %p176 = scmp.ne.s32.totalorder %s161, %s175
      %p177 = scmp.eq.s32.totalorder %s25, 0
      %p178 = por %p176, %p177
      %s180 = sadd.s32 %s179, 1
      %p183 = scmp.eq.s32.totalorder %s19, 1
      %p184 = scmp.ne.s32.totalorder %s179, %s181
      %p185 = scmp.eq.s32.totalorder %s19, 0
      %p186 = por %p184, %p185
      %p187 = scmp.ne.s32.totalorder %s179, %s181
      %p188 = scmp.eq.s32.totalorder %s24, 1
      %p189 = por %p187, %p188
      %p190 = scmp.ne.s32.totalorder %s181, %s182
      %p191 = scmp.eq.s32.totalorder %s24, 0
      %p192 = por %p190, %p191
      %p193 = scmp.ne.s32.totalorder %s181, %s182
      %p194 = scmp.eq.s32.totalorder %s25, 1
      %p195 = por %p193, %p194
      %p197 = scmp.ne.s32.totalorder %s182, %s196
      %p198 = scmp.eq.s32.totalorder %s25, 0
      %p199 = por %p197, %p198
      %s201 = sadd.s32 %s200, 1
      %p204 = scmp.eq.s32.totalorder %s19, 1
      %p205 = scmp.ne.s32.totalorder %s200, %s202
      %p206 = scmp.eq.s32.totalorder %s19, 0
      %p207 = por %p205, %p206
      %p208 = scmp.ne.s32.totalorder %s200, %s202
      %p209 = scmp.eq.s32.totalorder %s24, 1
      %p210 = por %p208, %p209
      %p211 = scmp.ne.s32.totalorder %s202, %s203
      %p212 = scmp.eq.s32.totalorder %s24, 0
      %p213 = por %p211, %p212
      %p214 = scmp.ne.s32.totalorder %s202, %s203
      %p215 = scmp.eq.s32.totalorder %s25, 1
      %p216 = por %p214, %p215
      %p218 = scmp.ne.s32.totalorder %s203, %s217
      %p219 = scmp.eq.s32.totalorder %s25, 0
      %p220 = por %p218, %p219
      %s222 = sadd.s32 %s221, 1
      %p225 = scmp.eq.s32.totalorder %s19, 1
      %p226 = scmp.ne.s32.totalorder %s221, %s223
      %p227 = scmp.eq.s32.totalorder %s19, 0
      %p228 = por %p226, %p227
      %p229 = scmp.ne.s32.totalorder %s221, %s223
      %p230 = scmp.eq.s32.totalorder %s24, 1
      %p231 = por %p229, %p230
      %p232 = scmp.ne.s32.totalorder %s223, %s224
      %p233 = scmp.eq.s32.totalorder %s24, 0
      %p234 = por %p232, %p233
      %p235 = scmp.ne.s32.totalorder %s223, %s224
      %p236 = scmp.eq.s32.totalorder %s25, 1
      %p237 = por %p235, %p236
      %p239 = scmp.ne.s32.totalorder %s224, %s238
      %p240 = scmp.eq.s32.totalorder %s25, 0
      %p241 = por %p239, %p240
      %s243 = sadd.s32 %s242, 1
      %p246 = scmp.eq.s32.totalorder %s19, 1
      %p247 = scmp.ne.s32.totalorder %s242, %s244
      %p248 = scmp.eq.s32.totalorder %s19, 0
      %p249 = por %p247, %p248
      %p250 = scmp.ne.s32.totalorder %s242, %s244
      %p251 = scmp.eq.s32.totalorder %s24, 1
      %p252 = por %p250, %p251
      %p253 = scmp.ne.s32.totalorder %s244, %s245
      %p254 = scmp.eq.s32.totalorder %s24, 0
      %p255 = por %p253, %p254
      %p256 = scmp.ne.s32.totalorder %s244, %s245
      %p257 = scmp.eq.s32.totalorder %s25, 1
      %p258 = por %p256, %p257
      %p260 = scmp.ne.s32.totalorder %s245, %s259
      %p261 = scmp.eq.s32.totalorder %s25, 0
      %p262 = por %p260, %p261
      %s263 = ssub.s32 %s19, %s26
      %p264 = scmp.eq.s32.totalorder %s263, 0
      %s266 = sadd.s32 %s265, 1
      %s267 = scalar_select %p264, %s265, %s266
      %p270 = pneg %p264
      %p271 = scmp.eq.s32.totalorder %s19, 1
      %p272 = por %p270, %p271
      %p273 = scmp.ne.s32.totalorder %s265, %s268
      %p274 = scmp.eq.s32.totalorder %s19, 0
      %p275 = por %p273, %p274
      %p276 = scmp.ne.s32.totalorder %s265, %s268
      %p277 = scmp.eq.s32.totalorder %s24, 1
      %p278 = por %p276, %p277
      %p279 = scmp.ne.s32.totalorder %s268, %s269
      %p280 = scmp.eq.s32.totalorder %s24, 0
      %p281 = por %p279, %p280
      %p282 = scmp.ne.s32.totalorder %s268, %s269
      %p283 = scmp.eq.s32.totalorder %s25, 1
      %p284 = por %p282, %p283
      %p286 = scmp.ne.s32.totalorder %s269, %s285
      %p287 = scmp.eq.s32.totalorder %s25, 0
      %p288 = por %p286, %p287
      %s289 = ssub.s32 %s19, %s26
      %p290 = scmp.eq.s32.totalorder %s289, 0
      %s292 = sadd.s32 %s291, 1
      %s293 = scalar_select %p290, %s291, %s292
      %p296 = pneg %p290
      %p297 = scmp.eq.s32.totalorder %s19, 1
      %p298 = por %p296, %p297
      %p299 = scmp.ne.s32.totalorder %s291, %s294
      %p300 = scmp.eq.s32.totalorder %s19, 0
      %p301 = por %p299, %p300
      %p302 = scmp.ne.s32.totalorder %s291, %s294
      %p303 = scmp.eq.s32.totalorder %s24, 1
      %p304 = por %p302, %p303
      %p305 = scmp.ne.s32.totalorder %s294, %s295
      %p306 = scmp.eq.s32.totalorder %s24, 0
      %p307 = por %p305, %p306
      %p308 = scmp.ne.s32.totalorder %s294, %s295
      %p309 = scmp.eq.s32.totalorder %s25, 1
      %p310 = por %p308, %p309
      %p312 = scmp.ne.s32.totalorder %s295, %s311
      %p313 = scmp.eq.s32.totalorder %s25, 0
      %p314 = por %p312, %p313
      %p315 = scmp.le.s32.totalorder 1, %s19
      %p316 = scmp.lt.s32.totalorder %s19, 3
      %p317 = pnand %p315, %p316
      %p318 = pneg %p317
      // Predicated region
      $region9: #{autoencoder_forward.1} parent=5 // pred_check
        _
      $region10: #{autoencoder_forward.1} parent=5 // pred_check_branch
        %320 = sbr.rel (%p317) target = $region12
      $region11: #{autoencoder_forward.1} parent=5 // pred_region
        %s321 = ssub.s32 %s19, 1
        // Predicated region
        $region13: #{autoencoder_forward.1} parent=11 // pred_check
          %p322 = pneg %p66
        $region14: #{autoencoder_forward.1} parent=11 // pred_check_branch
          %324 = sbr.rel (%p322) target = $region16
        $region15: #{autoencoder_forward.1} parent=11 // pred_region
          _
        $region16: #{autoencoder_forward.1} parent=11 // pred_fallthru
          _
        // Predicated region
        $region17: #{autoencoder_forward.1} parent=11 // pred_check
          %p325 = pneg %p87
        $region18: #{autoencoder_forward.1} parent=11 // pred_check_branch
          %327 = sbr.rel (%p325) target = $region20
        $region19: #{autoencoder_forward.1} parent=11 // pred_region
          _
        $region20: #{autoencoder_forward.1} parent=11 // pred_fallthru
          _
        // Predicated region
        $region21: #{autoencoder_forward.1} parent=11 // pred_check
          %p328 = pneg %p108
        $region22: #{autoencoder_forward.1} parent=11 // pred_check_branch
          %330 = sbr.rel (%p328) target = $region24
        $region23: #{autoencoder_forward.1} parent=11 // pred_region
          _
        $region24: #{autoencoder_forward.1} parent=11 // pred_fallthru
          _
        // Predicated region
        $region25: #{autoencoder_forward.1} parent=11 // pred_check
          %p331 = pneg %p129
        $region26: #{autoencoder_forward.1} parent=11 // pred_check_branch
          %333 = sbr.rel (%p331) target = $region28
        $region27: #{autoencoder_forward.1} parent=11 // pred_region
          _
        $region28: #{autoencoder_forward.1} parent=11 // pred_fallthru
          _
        // Predicated region
        $region29: #{autoencoder_forward.1} parent=11 // pred_check
          %p334 = pneg %p150
        $region30: #{autoencoder_forward.1} parent=11 // pred_check_branch
          %336 = sbr.rel (%p334) target = $region32
        $region31: #{autoencoder_forward.1} parent=11 // pred_region
          _
        $region32: #{autoencoder_forward.1} parent=11 // pred_fallthru
          _
        // Predicated region
        $region33: #{autoencoder_forward.1} parent=11 // pred_check
          %p337 = pneg %p171
        $region34: #{autoencoder_forward.1} parent=11 // pred_check_branch
          %339 = sbr.rel (%p337) target = $region36
        $region35: #{autoencoder_forward.1} parent=11 // pred_region
          _
        $region36: #{autoencoder_forward.1} parent=11 // pred_fallthru
          _
        // Predicated region
        $region37: #{autoencoder_forward.1} parent=11 // pred_check
          %p340 = pneg %p192
        $region38: #{autoencoder_forward.1} parent=11 // pred_check_branch
          %342 = sbr.rel (%p340) target = $region40
        $region39: #{autoencoder_forward.1} parent=11 // pred_region
          _
        $region40: #{autoencoder_forward.1} parent=11 // pred_fallthru
          _
        // Predicated region
        $region41: #{autoencoder_forward.1} parent=11 // pred_check
          %p343 = pneg %p213
        $region42: #{autoencoder_forward.1} parent=11 // pred_check_branch
          %345 = sbr.rel (%p343) target = $region44
        $region43: #{autoencoder_forward.1} parent=11 // pred_region
          _
        $region44: #{autoencoder_forward.1} parent=11 // pred_fallthru
          _
        // Predicated region
        $region45: #{autoencoder_forward.1} parent=11 // pred_check
          %p346 = pneg %p234
        $region46: #{autoencoder_forward.1} parent=11 // pred_check_branch
          %348 = sbr.rel (%p346) target = $region48
        $region47: #{autoencoder_forward.1} parent=11 // pred_region
          _
        $region48: #{autoencoder_forward.1} parent=11 // pred_fallthru
          _
        // Predicated region
        $region49: #{autoencoder_forward.1} parent=11 // pred_check
          %p349 = pneg %p255
        $region50: #{autoencoder_forward.1} parent=11 // pred_check_branch
          %351 = sbr.rel (%p349) target = $region52
        $region51: #{autoencoder_forward.1} parent=11 // pred_region
          _
        $region52: #{autoencoder_forward.1} parent=11 // pred_fallthru
          _
      $region12: #{autoencoder_forward.1} parent=5 // pred_fallthru
        _
      %p352 = scmp.lt.s32.totalorder %s19, 2
      // Predicated region
      $region53: #{autoencoder_forward.1} parent=5 // pred_check
        %p353 = pneg %p352
      $region54: #{autoencoder_forward.1} parent=5 // pred_check_branch
        %355 = sbr.rel (%p353) target = $region56
      $region55: #{autoencoder_forward.1} parent=5 // pred_region
        // Predicated region
        $region57: #{autoencoder_forward.1} parent=55 // pred_check
          %p356 = pneg %p39
        $region58: #{autoencoder_forward.1} parent=55 // pred_check_branch
          %358 = sbr.rel (%p356) target = $region60
        $region59: #{autoencoder_forward.1} parent=55 // pred_region
          %s359 = sand.u32 %s29, 1
          %s360 = sand.u32 %s29, 1
          %s361 = smul.addr %s360, 448
          %s362 = scalar_lea.vmem [#allocation6], %s361
          %s363 = smul.u32 2, %s19
          %s364 = smul.addr %s363, 8
          %s365 = scalar_lea.vmem %s0, %s364
          // Predicated region
          $region61: #{autoencoder_forward.1} parent=59 // pred_check
            _
          $region62: #{autoencoder_forward.1} parent=59 // pred_check_branch
            %367 = sbr.rel (0) target = $region64
          $region63: #{autoencoder_forward.1} parent=59 // pred_region
            // Predicated region
            $region65: #{autoencoder_forward.1} parent=63 // pred_check
              _
            $region66: #{autoencoder_forward.1} parent=63 // pred_check_branch
              %369 = sbr.rel (0) target = $region68
            $region67: #{autoencoder_forward.1} parent=63 // pred_region
              // Predicated region
              $region80: #{autoencoder_forward.1} parent=67 // pred_check
                _
              $region81: #{autoencoder_forward.1} parent=67 // pred_check_branch
                %494 = sbr.rel (0) target = $region83
              $region82: #{autoencoder_forward.1} parent=67 // pred_region
                loop: start=0, step=1, limit=1
                $region84: #{autoencoder_forward.1} parent=82 // loop_pre_header
                  _
                $region85: #{autoencoder_forward.1} parent=82 // loop_header
                  %s496 = sphi 0, %s500
                  %p497 = scmp.ge.s32.totalorder %s496, 1
                  %s501 = sphi %s365, %s365
                  %s502 = sphi %s362, %s362
                $region86: #{autoencoder_forward.1} parent=82 // loop_header_branch
                  %499 = sbr.rel (%p497) target = $region90
                $region87: #{autoencoder_forward.1} parent=82 // loop_body
                  %v503 = vld [vmem:[%s501] sm:$0xff]
                  %504 = vst [vmem:[%s502] sm:$0xff] %v503
                  %v505 = vld [vmem:[%s501 + $0x8] sm:$0xff]
                  %506 = vst [vmem:[%s502 + $0x8] sm:$0xff] %v505
                  %v507 = vld [vmem:[%s501 + $0x20] sm:$0xff]
                  %508 = vst [vmem:[%s502 + $0x10] sm:$0xff] %v507
                  %v509 = vld [vmem:[%s501 + $0x28] sm:$0xff]
                  %510 = vst [vmem:[%s502 + $0x18] sm:$0xff] %v509
                  %v511 = vld [vmem:[%s501 + $0x40] sm:$0xff]
                  %512 = vst [vmem:[%s502 + $0x20] sm:$0xff] %v511
                  %v513 = vld [vmem:[%s501 + $0x48] sm:$0xff]
                  %514 = vst [vmem:[%s502 + $0x28] sm:$0xff] %v513
                  %v515 = vld [vmem:[%s501 + $0x60] sm:$0xff]
                  %516 = vst [vmem:[%s502 + $0x30] sm:$0xff] %v515
                  %v517 = vld [vmem:[%s501 + $0x68] sm:$0xff]
                  %518 = vst [vmem:[%s502 + $0x38] sm:$0xff] %v517
                  %v519 = vld [vmem:[%s501 + $0x80] sm:$0xff]
                  %520 = vst [vmem:[%s502 + $0x40] sm:$0xff] %v519
                  %v521 = vld [vmem:[%s501 + $0x88] sm:$0xff]
                  %522 = vst [vmem:[%s502 + $0x48] sm:$0xff] %v521
                  %v523 = vld [vmem:[%s501 + $0xa0] sm:$0xff]
                  %524 = vst [vmem:[%s502 + $0x50] sm:$0xff] %v523
                  %v525 = vld [vmem:[%s501 + $0xa8] sm:$0xff]
                  %526 = vst [vmem:[%s502 + $0x58] sm:$0xff] %v525
                  %v527 = vld [vmem:[%s501 + $0xc0] sm:$0xff]
                  %528 = vst [vmem:[%s502 + $0x60] sm:$0xff] %v527
                  %v529 = vld [vmem:[%s501 + $0xc8] sm:$0xff]
                  %530 = vst [vmem:[%s502 + $0x68] sm:$0xff] %v529
                  %v531 = vld [vmem:[%s501 + $0xe0] sm:$0xff]
                  %532 = vst [vmem:[%s502 + $0x70] sm:$0xff] %v531
                  %v533 = vld [vmem:[%s501 + $0xe8] sm:$0xff]
                  %534 = vst [vmem:[%s502 + $0x78] sm:$0xff] %v533
                  %v535 = vld [vmem:[%s501 + $0x100] sm:$0xff]
                  %536 = vst [vmem:[%s502 + $0x80] sm:$0xff] %v535
                  %v537 = vld [vmem:[%s501 + $0x108] sm:$0xff]
                  %538 = vst [vmem:[%s502 + $0x88] sm:$0xff] %v537
                  %v539 = vld [vmem:[%s501 + $0x120] sm:$0xff]
                  %540 = vst [vmem:[%s502 + $0x90] sm:$0xff] %v539
                  %v541 = vld [vmem:[%s501 + $0x128] sm:$0xff]
                  %542 = vst [vmem:[%s502 + $0x98] sm:$0xff] %v541
                  %v543 = vld [vmem:[%s501 + $0x140] sm:$0xff]
                  %544 = vst [vmem:[%s502 + $0xa0] sm:$0xff] %v543
                  %v545 = vld [vmem:[%s501 + $0x148] sm:$0xff]
                  %546 = vst [vmem:[%s502 + $0xa8] sm:$0xff] %v545
                  %v547 = vld [vmem:[%s501 + $0x160] sm:$0xff]
                  %548 = vst [vmem:[%s502 + $0xb0] sm:$0xff] %v547
                  %v549 = vld [vmem:[%s501 + $0x168] sm:$0xff]
                  %550 = vst [vmem:[%s502 + $0xb8] sm:$0xff] %v549
                  %v551 = vld [vmem:[%s501 + $0x180] sm:$0xff]
                  %552 = vst [vmem:[%s502 + $0xc0] sm:$0xff] %v551
                  %v553 = vld [vmem:[%s501 + $0x188] sm:$0xff]
                  %554 = vst [vmem:[%s502 + $0xc8] sm:$0xff] %v553
                  %v555 = vld [vmem:[%s501 + $0x1a0] sm:$0xff]
                  %556 = vst [vmem:[%s502 + $0xd0] sm:$0xff] %v555
                  %v557 = vld [vmem:[%s501 + $0x1a8] sm:$0xff]
                  %558 = vst [vmem:[%s502 + $0xd8] sm:$0xff] %v557
                  %v559 = vld [vmem:[%s501 + $0x1c0] sm:$0xff]
                  %560 = vst [vmem:[%s502 + $0xe0] sm:$0xff] %v559
                  %v561 = vld [vmem:[%s501 + $0x1c8] sm:$0xff]
                  %562 = vst [vmem:[%s502 + $0xe8] sm:$0xff] %v561
                  %v563 = vld [vmem:[%s501 + $0x1e0] sm:$0xff]
                  %564 = vst [vmem:[%s502 + $0xf0] sm:$0xff] %v563
                  %v565 = vld [vmem:[%s501 + $0x1e8] sm:$0xff]
                  %566 = vst [vmem:[%s502 + $0xf8] sm:$0xff] %v565
                  %v567 = vld [vmem:[%s501 + $0x200] sm:$0xff]
                  %568 = vst [vmem:[%s502 + $0x100] sm:$0xff] %v567
                  %v569 = vld [vmem:[%s501 + $0x208] sm:$0xff]
                  %570 = vst [vmem:[%s502 + $0x108] sm:$0xff] %v569
                  %v571 = vld [vmem:[%s501 + $0x220] sm:$0xff]
                  %572 = vst [vmem:[%s502 + $0x110] sm:$0xff] %v571
                  %v573 = vld [vmem:[%s501 + $0x228] sm:$0xff]
                  %574 = vst [vmem:[%s502 + $0x118] sm:$0xff] %v573
                  %v575 = vld [vmem:[%s501 + $0x240] sm:$0xff]
                  %576 = vst [vmem:[%s502 + $0x120] sm:$0xff] %v575
                  %v577 = vld [vmem:[%s501 + $0x248] sm:$0xff]
                  %578 = vst [vmem:[%s502 + $0x128] sm:$0xff] %v577
                  %v579 = vld [vmem:[%s501 + $0x260] sm:$0xff]
                  %580 = vst [vmem:[%s502 + $0x130] sm:$0xff] %v579
                  %v581 = vld [vmem:[%s501 + $0x268] sm:$0xff]
                  %582 = vst [vmem:[%s502 + $0x138] sm:$0xff] %v581
                  %v583 = vld [vmem:[%s501 + $0x280] sm:$0xff]
                  %584 = vst [vmem:[%s502 + $0x140] sm:$0xff] %v583
                  %v585 = vld [vmem:[%s501 + $0x288] sm:$0xff]
                  %586 = vst [vmem:[%s502 + $0x148] sm:$0xff] %v585
                  %v587 = vld [vmem:[%s501 + $0x2a0] sm:$0xff]
                  %588 = vst [vmem:[%s502 + $0x150] sm:$0xff] %v587
                  %v589 = vld [vmem:[%s501 + $0x2a8] sm:$0xff]
                  %590 = vst [vmem:[%s502 + $0x158] sm:$0xff] %v589
                  %v591 = vld [vmem:[%s501 + $0x2c0] sm:$0xff]
                  %592 = vst [vmem:[%s502 + $0x160] sm:$0xff] %v591
                  %v593 = vld [vmem:[%s501 + $0x2c8] sm:$0xff]
                  %594 = vst [vmem:[%s502 + $0x168] sm:$0xff] %v593
                  %v595 = vld [vmem:[%s501 + $0x2e0] sm:$0xff]
                  %596 = vst [vmem:[%s502 + $0x170] sm:$0xff] %v595
                  %v597 = vld [vmem:[%s501 + $0x2e8] sm:$0xff]
                  %598 = vst [vmem:[%s502 + $0x178] sm:$0xff] %v597
                  %v599 = vld [vmem:[%s501 + $0x300] sm:$0xff]
                  %600 = vst [vmem:[%s502 + $0x180] sm:$0xff] %v599
                  %v601 = vld [vmem:[%s501 + $0x308] sm:$0xff]
                  %602 = vst [vmem:[%s502 + $0x188] sm:$0xff] %v601
                  %v603 = vld [vmem:[%s501 + $0x320] sm:$0xff]
                  %604 = vst [vmem:[%s502 + $0x190] sm:$0xff] %v603
                  %v605 = vld [vmem:[%s501 + $0x328] sm:$0xff]
                  %606 = vst [vmem:[%s502 + $0x198] sm:$0xff] %v605
                  %v607 = vld [vmem:[%s501 + $0x340] sm:$0xff]
                  %608 = vst [vmem:[%s502 + $0x1a0] sm:$0xff] %v607
                  %v609 = vld [vmem:[%s501 + $0x348] sm:$0xff]
                  %610 = vst [vmem:[%s502 + $0x1a8] sm:$0xff] %v609
                  %v611 = vld [vmem:[%s501 + $0x360] sm:$0xff]
                  %612 = vst [vmem:[%s502 + $0x1b0] sm:$0xff] %v611
                  %v613 = vld [vmem:[%s501 + $0x368] sm:$0xff]
                  %614 = vst [vmem:[%s502 + $0x1b8] sm:$0xff] %v613
                $region88: #{autoencoder_forward.1} parent=82 // loop_footer
                  %s500 = sadd.s32 1, %s496
                $region89: #{autoencoder_forward.1} parent=82 // loop_footer_branch
                  %495 = sbr.rel target = $region85
                $region90: #{autoencoder_forward.1} parent=82 // loop_exit
                  _
              $region83: #{autoencoder_forward.1} parent=67 // pred_fallthru
                _
              // Predicated region
              $region91: #{autoencoder_forward.1} parent=67 // pred_check
                _
              $region92: #{autoencoder_forward.1} parent=67 // pred_check_branch
                %616 = sbr.rel target = $region94
              $region93: #{autoencoder_forward.1} parent=67 // pred_region
                _
              $region94: #{autoencoder_forward.1} parent=67 // pred_fallthru
                _
            $region68: #{autoencoder_forward.1} parent=63 // pred_fallthru
              _
            // Predicated region
            $region69: #{autoencoder_forward.1} parent=63 // pred_check
              _
            $region70: #{autoencoder_forward.1} parent=63 // pred_check_branch
              %371 = sbr.rel target = $region72
            $region71: #{autoencoder_forward.1} parent=63 // pred_region
              loop: start=0, step=1, limit=1
              $region73: #{autoencoder_forward.1} parent=71 // loop_pre_header
                _
              $region74: #{autoencoder_forward.1} parent=71 // loop_header
                %s374 = sphi 0, %s378
                %p375 = scmp.ge.s32.totalorder %s374, 1
                %s379 = sphi %s365, %s365
                %s380 = sphi %s362, %s362
              $region75: #{autoencoder_forward.1} parent=71 // loop_header_branch
                %377 = sbr.rel (%p375) target = $region79
              $region76: #{autoencoder_forward.1} parent=71 // loop_body
                %v381 = vld [vmem:[%s379] sm:$0xff]
                %382 = vst [vmem:[%s380] sm:$0xff] %v381
                %v383 = vld [vmem:[%s379 + $0x8] sm:$0xff]
                %384 = vst [vmem:[%s380 + $0x8] sm:$0xff] %v383
                %v385 = vld [vmem:[%s379 + $0x20] sm:$0xff]
                %386 = vst [vmem:[%s380 + $0x10] sm:$0xff] %v385
                %v387 = vld [vmem:[%s379 + $0x28] sm:$0xff]
                %388 = vst [vmem:[%s380 + $0x18] sm:$0xff] %v387
                %v389 = vld [vmem:[%s379 + $0x40] sm:$0xff]
                %390 = vst [vmem:[%s380 + $0x20] sm:$0xff] %v389
                %v391 = vld [vmem:[%s379 + $0x48] sm:$0xff]
                %392 = vst [vmem:[%s380 + $0x28] sm:$0xff] %v391
                %v393 = vld [vmem:[%s379 + $0x60] sm:$0xff]
                %394 = vst [vmem:[%s380 + $0x30] sm:$0xff] %v393
                %v395 = vld [vmem:[%s379 + $0x68] sm:$0xff]
                %396 = vst [vmem:[%s380 + $0x38] sm:$0xff] %v395
                %v397 = vld [vmem:[%s379 + $0x80] sm:$0xff]
                %398 = vst [vmem:[%s380 + $0x40] sm:$0xff] %v397
                %v399 = vld [vmem:[%s379 + $0x88] sm:$0xff]
                %400 = vst [vmem:[%s380 + $0x48] sm:$0xff] %v399
                %v401 = vld [vmem:[%s379 + $0xa0] sm:$0xff]
                %402 = vst [vmem:[%s380 + $0x50] sm:$0xff] %v401
                %v403 = vld [vmem:[%s379 + $0xa8] sm:$0xff]
                %404 = vst [vmem:[%s380 + $0x58] sm:$0xff] %v403
                %v405 = vld [vmem:[%s379 + $0xc0] sm:$0xff]
                %406 = vst [vmem:[%s380 + $0x60] sm:$0xff] %v405
                %v407 = vld [vmem:[%s379 + $0xc8] sm:$0xff]
                %408 = vst [vmem:[%s380 + $0x68] sm:$0xff] %v407
                %v409 = vld [vmem:[%s379 + $0xe0] sm:$0xff]
                %410 = vst [vmem:[%s380 + $0x70] sm:$0xff] %v409
                %v411 = vld [vmem:[%s379 + $0xe8] sm:$0xff]
                %412 = vst [vmem:[%s380 + $0x78] sm:$0xff] %v411
                %v413 = vld [vmem:[%s379 + $0x100] sm:$0xff]
                %414 = vst [vmem:[%s380 + $0x80] sm:$0xff] %v413
                %v415 = vld [vmem:[%s379 + $0x108] sm:$0xff]
                %416 = vst [vmem:[%s380 + $0x88] sm:$0xff] %v415
                %v417 = vld [vmem:[%s379 + $0x120] sm:$0xff]
                %418 = vst [vmem:[%s380 + $0x90] sm:$0xff] %v417
                %v419 = vld [vmem:[%s379 + $0x128] sm:$0xff]
                %420 = vst [vmem:[%s380 + $0x98] sm:$0xff] %v419
                %v421 = vld [vmem:[%s379 + $0x140] sm:$0xff]
                %422 = vst [vmem:[%s380 + $0xa0] sm:$0xff] %v421
                %v423 = vld [vmem:[%s379 + $0x148] sm:$0xff]
                %424 = vst [vmem:[%s380 + $0xa8] sm:$0xff] %v423
                %v425 = vld [vmem:[%s379 + $0x160] sm:$0xff]
                %426 = vst [vmem:[%s380 + $0xb0] sm:$0xff] %v425
                %v427 = vld [vmem:[%s379 + $0x168] sm:$0xff]
                %428 = vst [vmem:[%s380 + $0xb8] sm:$0xff] %v427
                %v429 = vld [vmem:[%s379 + $0x180] sm:$0xff]
                %430 = vst [vmem:[%s380 + $0xc0] sm:$0xff] %v429
                %v431 = vld [vmem:[%s379 + $0x188] sm:$0xff]
                %432 = vst [vmem:[%s380 + $0xc8] sm:$0xff] %v431
                %v433 = vld [vmem:[%s379 + $0x1a0] sm:$0xff]
                %434 = vst [vmem:[%s380 + $0xd0] sm:$0xff] %v433
                %v435 = vld [vmem:[%s379 + $0x1a8] sm:$0xff]
                %436 = vst [vmem:[%s380 + $0xd8] sm:$0xff] %v435
                %v437 = vld [vmem:[%s379 + $0x1c0] sm:$0xff]
                %438 = vst [vmem:[%s380 + $0xe0] sm:$0xff] %v437
                %v439 = vld [vmem:[%s379 + $0x1c8] sm:$0xff]
                %440 = vst [vmem:[%s380 + $0xe8] sm:$0xff] %v439
                %v441 = vld [vmem:[%s379 + $0x1e0] sm:$0xff]
                %442 = vst [vmem:[%s380 + $0xf0] sm:$0xff] %v441
                %v443 = vld [vmem:[%s379 + $0x1e8] sm:$0xff]
                %444 = vst [vmem:[%s380 + $0xf8] sm:$0xff] %v443
                %v445 = vld [vmem:[%s379 + $0x200] sm:$0xff]
                %446 = vst [vmem:[%s380 + $0x100] sm:$0xff] %v445
                %v447 = vld [vmem:[%s379 + $0x208] sm:$0xff]
                %448 = vst [vmem:[%s380 + $0x108] sm:$0xff] %v447
                %v449 = vld [vmem:[%s379 + $0x220] sm:$0xff]
                %450 = vst [vmem:[%s380 + $0x110] sm:$0xff] %v449
                %v451 = vld [vmem:[%s379 + $0x228] sm:$0xff]
                %452 = vst [vmem:[%s380 + $0x118] sm:$0xff] %v451
                %v453 = vld [vmem:[%s379 + $0x240] sm:$0xff]
                %454 = vst [vmem:[%s380 + $0x120] sm:$0xff] %v453
                %v455 = vld [vmem:[%s379 + $0x248] sm:$0xff]
                %456 = vst [vmem:[%s380 + $0x128] sm:$0xff] %v455
                %v457 = vld [vmem:[%s379 + $0x260] sm:$0xff]
                %458 = vst [vmem:[%s380 + $0x130] sm:$0xff] %v457
                %v459 = vld [vmem:[%s379 + $0x268] sm:$0xff]
                %460 = vst [vmem:[%s380 + $0x138] sm:$0xff] %v459
                %v461 = vld [vmem:[%s379 + $0x280] sm:$0xff]
                %462 = vst [vmem:[%s380 + $0x140] sm:$0xff] %v461
                %v463 = vld [vmem:[%s379 + $0x288] sm:$0xff]
                %464 = vst [vmem:[%s380 + $0x148] sm:$0xff] %v463
                %v465 = vld [vmem:[%s379 + $0x2a0] sm:$0xff]
                %466 = vst [vmem:[%s380 + $0x150] sm:$0xff] %v465
                %v467 = vld [vmem:[%s379 + $0x2a8] sm:$0xff]
                %468 = vst [vmem:[%s380 + $0x158] sm:$0xff] %v467
                %v469 = vld [vmem:[%s379 + $0x2c0] sm:$0xff]
                %470 = vst [vmem:[%s380 + $0x160] sm:$0xff] %v469
                %v471 = vld [vmem:[%s379 + $0x2c8] sm:$0xff]
                %472 = vst [vmem:[%s380 + $0x168] sm:$0xff] %v471
                %v473 = vld [vmem:[%s379 + $0x2e0] sm:$0xff]
                %474 = vst [vmem:[%s380 + $0x170] sm:$0xff] %v473
                %v475 = vld [vmem:[%s379 + $0x2e8] sm:$0xff]
                %476 = vst [vmem:[%s380 + $0x178] sm:$0xff] %v475
                %v477 = vld [vmem:[%s379 + $0x300] sm:$0xff]
                %478 = vst [vmem:[%s380 + $0x180] sm:$0xff] %v477
                %v479 = vld [vmem:[%s379 + $0x308] sm:$0xff]
                %480 = vst [vmem:[%s380 + $0x188] sm:$0xff] %v479
                %v481 = vld [vmem:[%s379 + $0x320] sm:$0xff]
                %482 = vst [vmem:[%s380 + $0x190] sm:$0xff] %v481
                %v483 = vld [vmem:[%s379 + $0x328] sm:$0xff]
                %484 = vst [vmem:[%s380 + $0x198] sm:$0xff] %v483
                %v485 = vld [vmem:[%s379 + $0x340] sm:$0xff]
                %486 = vst [vmem:[%s380 + $0x1a0] sm:$0xff] %v485
                %v487 = vld [vmem:[%s379 + $0x348] sm:$0xff]
                %488 = vst [vmem:[%s380 + $0x1a8] sm:$0xff] %v487
                %v489 = vld [vmem:[%s379 + $0x360] sm:$0xff]
                %490 = vst [vmem:[%s380 + $0x1b0] sm:$0xff] %v489
                %v491 = vld [vmem:[%s379 + $0x368] sm:$0xff]
                %492 = vst [vmem:[%s380 + $0x1b8] sm:$0xff] %v491
              $region77: #{autoencoder_forward.1} parent=71 // loop_footer
                %s378 = sadd.s32 1, %s374
              $region78: #{autoencoder_forward.1} parent=71 // loop_footer_branch
                %373 = sbr.rel target = $region74
              $region79: #{autoencoder_forward.1} parent=71 // loop_exit
                _
            $region72: #{autoencoder_forward.1} parent=63 // pred_fallthru
              _
          $region64: #{autoencoder_forward.1} parent=59 // pred_fallthru
            _
          %617 = vnop
        $region60: #{autoencoder_forward.1} parent=55 // pred_fallthru
          _
      $region56: #{autoencoder_forward.1} parent=5 // pred_fallthru
        _
      %p618 = scmp.le.s32.totalorder 1, %s19
      %p619 = scmp.lt.s32.totalorder %s19, 3
      %p620 = pnand %p618, %p619
      %p621 = pneg %p620
      // Predicated region
      $region95: #{autoencoder_forward.1} parent=5 // pred_check
        _
      $region96: #{autoencoder_forward.1} parent=5 // pred_check_branch
        %623 = sbr.rel (%p620) target = $region98
      $region97: #{autoencoder_forward.1} parent=5 // pred_region
        %s624 = ssub.s32 %s19, 1
        %s625 = sand.u32 %s32, 1
        %s626 = sand.u32 %s32, 1
        %s627 = smul.addr %s626, 448
        %s628 = scalar_lea.vmem [#allocation6], %s627
        // Predicated region
        $region99: #{autoencoder_forward.1} parent=97 // pred_check
          %p629 = pneg %p45
        $region100: #{autoencoder_forward.1} parent=97 // pred_check_branch
          %631 = sbr.rel (%p629) target = $region102
        $region101: #{autoencoder_forward.1} parent=97 // pred_region
          _
        $region102: #{autoencoder_forward.1} parent=97 // pred_fallthru
          _
        %s632 = sand.u32 %s32, 1
        %s633 = sand.u32 %s32, 1
        %s634 = smul.addr %s633, 448
        %s635 = scalar_lea.vmem [#allocation6], %s634
        %p636 = pneg %p45
        %p637 = pneg %p42
        %p638 = pneg %p66
        %p639 = pneg %p63
        %p640 = pneg %p87
        %p641 = pneg %p84
        %p642 = pneg %p108
        %p643 = pneg %p105
        %p644 = pneg %p129
        %p645 = pneg %p126
        %p646 = pneg %p150
        %p647 = pneg %p147
        %p648 = pneg %p171
        %p649 = pneg %p168
        %p650 = pneg %p192
        %p651 = pneg %p189
        %p652 = pneg %p213
        %p653 = pneg %p210
        %p654 = pneg %p234
        %p655 = pneg %p231
        %p656 = pneg %p255
        %p657 = pneg %p252
        %p658 = pneg %p281
        %p659 = pneg %p278
        %s660 = sand.u32 %s268, 1
        %s661 = sand.u32 %s268, 1
        %s662 = smul.addr %s661, 32
        %s663 = scalar_lea.vmem [#allocation7], %s662
        %p664 = pneg %p307
        %p665 = pneg %p304
        %s666 = sand.u32 %s294, 1
        %s667 = sand.u32 %s294, 1
        %s668 = smul.addr %s667, 448
        %s669 = scalar_lea.vmem [#allocation8], %s668
        %s670 = smul.u32 2, %s24
        %s671 = smul.u32 2, %s24
        %s672 = smul.u32 2, %s24
        %vm674 = vcmask 785408
        %675 = vst.msk [vmem:[#allocation2] sm:$0xff] %vm674, 0.0
        %676 = vst.msk [vmem:[#allocation2 + $0x8] sm:$0xff] %vm674, 0.0
        %677 = vst.msk [vmem:[#allocation2 + $0x10] sm:$0xff] %vm674, 0.0
        %678 = vst.msk [vmem:[#allocation2 + $0x18] sm:$0xff] %vm674, 0.0
        %679 = vst.msk [vmem:[#allocation2 + $0x20] sm:$0xff] %vm674, 0.0
        %680 = vst.msk [vmem:[#allocation2 + $0x28] sm:$0xff] %vm674, 0.0
        %681 = vst.msk [vmem:[#allocation2 + $0x30] sm:$0xff] %vm674, 0.0
        %682 = vst.msk [vmem:[#allocation2 + $0x38] sm:$0xff] %vm674, 0.0
        %683 = vst.msk [vmem:[#allocation2 + $0x40] sm:$0xff] %vm674, 0.0
        %684 = vst.msk [vmem:[#allocation2 + $0x48] sm:$0xff] %vm674, 0.0
        %685 = vst.msk [vmem:[#allocation2 + $0x50] sm:$0xff] %vm674, 0.0
        %686 = vst.msk [vmem:[#allocation2 + $0x58] sm:$0xff] %vm674, 0.0
        %687 = vst.msk [vmem:[#allocation2 + $0x60] sm:$0xff] %vm674, 0.0
        %688 = vst.msk [vmem:[#allocation2 + $0x68] sm:$0xff] %vm674, 0.0
        %689 = vst.msk [vmem:[#allocation2 + $0x70] sm:$0xff] %vm674, 0.0
        %690 = vst.msk [vmem:[#allocation2 + $0x78] sm:$0xff] %vm674, 0.0
        %691 = vst.msk [vmem:[#allocation2 + $0x80] sm:$0xff] %vm674, 0.0
        %692 = vst.msk [vmem:[#allocation2 + $0x88] sm:$0xff] %vm674, 0.0
        %693 = vst.msk [vmem:[#allocation2 + $0x90] sm:$0xff] %vm674, 0.0
        %694 = vst.msk [vmem:[#allocation2 + $0x98] sm:$0xff] %vm674, 0.0
        %695 = vst [vmem:[#allocation3] sm:$0xff] 0.0
        %696 = vst [vmem:[#allocation3 + $0x8] sm:$0xff] 0.0
        %697 = vst [vmem:[#allocation3 + $0x10] sm:$0xff] 0.0
        %698 = vst [vmem:[#allocation3 + $0x18] sm:$0xff] 0.0
        %699 = vst [vmem:[#allocation3 + $0x20] sm:$0xff] 0.0
        %700 = vst [vmem:[#allocation3 + $0x28] sm:$0xff] 0.0
        %701 = vst [vmem:[#allocation3 + $0x30] sm:$0xff] 0.0
        %702 = vst [vmem:[#allocation3 + $0x38] sm:$0xff] 0.0
        %703 = vst [vmem:[#allocation3 + $0x40] sm:$0xff] 0.0
        %704 = vst [vmem:[#allocation3 + $0x48] sm:$0xff] 0.0
        %705 = vst [vmem:[#allocation3 + $0x50] sm:$0xff] 0.0
        %706 = vst [vmem:[#allocation3 + $0x58] sm:$0xff] 0.0
        %707 = vst [vmem:[#allocation3 + $0x60] sm:$0xff] 0.0
        %708 = vst [vmem:[#allocation3 + $0x68] sm:$0xff] 0.0
        %709 = vst [vmem:[#allocation3 + $0x70] sm:$0xff] 0.0
        %710 = vst [vmem:[#allocation3 + $0x78] sm:$0xff] 0.0
        %711 = vst [vmem:[#allocation3 + $0x80] sm:$0xff] 0.0
        %712 = vst [vmem:[#allocation3 + $0x88] sm:$0xff] 0.0
        %v713 = vld [vmem:[%s628] sm:$0xff]
        %v714 = vld [vmem:[%s628 + $0x8] sm:$0xff]
        %717 = vrot.lane.b32.xlu0 %v713, 32
        %v718 = vpop.permute.xlu0 %717
        %719 = vrot.lane.b32.xlu0 %v714, 32
        %v720 = vpop.permute.xlu0 %719
        %vm723 = vcmask 490752
        %724 = vst.msk [vmem:[#allocation2] sm:$0xff] %vm723, %v718
        %725 = vst.msk [vmem:[#allocation2 + $0x8] sm:$0xff] %vm723, %v720
        %s726 = scalar_lea.vmem %s628, 16 [#allocation6]
        %v727 = vld [vmem:[%s726] sm:$0xff]
        %v728 = vld [vmem:[%s726 + $0x8] sm:$0xff]
        %731 = vrot.lane.b32.xlu0 %v727, 64
        %v732 = vpop.permute.xlu0 %731
        %733 = vrot.lane.b32.xlu0 %v728, 64
        %v734 = vpop.permute.xlu0 %733
        %vm737 = vcmask 753152
        %738 = vst.msk [vmem:[#allocation2] sm:$0xff] %vm737, %v732
        %739 = vst.msk [vmem:[#allocation2 + $0x8] sm:$0xff] %vm737, %v734
        %s740 = scalar_lea.vmem %s628, 32 [#allocation6]
        %v741 = vld [vmem:[%s740] sm:$0xff]
        %v742 = vld [vmem:[%s740 + $0x8] sm:$0xff]
        %vm743 = vcmask 228352
        %744 = vst.msk [vmem:[#allocation2 + $0x10] sm:$0xff] %vm743, %v741
        %745 = vst.msk [vmem:[#allocation2 + $0x18] sm:$0xff] %vm743, %v742
        %s746 = scalar_lea.vmem %s628, 48 [#allocation6]
        %v747 = vld [vmem:[%s746] sm:$0xff]
        %v748 = vld [vmem:[%s746 + $0x8] sm:$0xff]
        %751 = vrot.lane.b32.xlu0 %v747, 32
        %v752 = vpop.permute.xlu0 %751
        %753 = vrot.lane.b32.xlu0 %v748, 32
        %v754 = vpop.permute.xlu0 %753
        %757 = vst.msk [vmem:[#allocation2 + $0x10] sm:$0xff] %vm723, %v752
        %758 = vst.msk [vmem:[#allocation2 + $0x18] sm:$0xff] %vm723, %v754
        %s759 = scalar_lea.vmem %s628, 64 [#allocation6]
        %v760 = vld [vmem:[%s759] sm:$0xff]
        %v761 = vld [vmem:[%s759 + $0x8] sm:$0xff]
        %764 = vrot.lane.b32.xlu0 %v760, 64
        %v765 = vpop.permute.xlu0 %764
        %766 = vrot.lane.b32.xlu0 %v761, 64
        %v767 = vpop.permute.xlu0 %766
        %770 = vst.msk [vmem:[#allocation2 + $0x10] sm:$0xff] %vm737, %v765
        %771 = vst.msk [vmem:[#allocation2 + $0x18] sm:$0xff] %vm737, %v767
        %s772 = scalar_lea.vmem %s628, 80 [#allocation6]
        %v773 = vld [vmem:[%s772] sm:$0xff]
        %v774 = vld [vmem:[%s772 + $0x8] sm:$0xff]
        %775 = vst.msk [vmem:[#allocation2 + $0x20] sm:$0xff] %vm743, %v773
        %776 = vst.msk [vmem:[#allocation2 + $0x28] sm:$0xff] %vm743, %v774
        %s777 = scalar_lea.vmem %s628, 96 [#allocation6]
        %v778 = vld [vmem:[%s777] sm:$0xff]
        %v779 = vld [vmem:[%s777 + $0x8] sm:$0xff]
        %782 = vrot.lane.b32.xlu0 %v778, 32
        %v783 = vpop.permute.xlu0 %782
        %784 = vrot.lane.b32.xlu0 %v779, 32
        %v785 = vpop.permute.xlu0 %784
        %788 = vst.msk [vmem:[#allocation2 + $0x20] sm:$0xff] %vm723, %v783
        %789 = vst.msk [vmem:[#allocation2 + $0x28] sm:$0xff] %vm723, %v785
        %s790 = scalar_lea.vmem %s628, 112 [#allocation6]
        %v791 = vld [vmem:[%s790] sm:$0xff]
        %v792 = vld [vmem:[%s790 + $0x8] sm:$0xff]
        %795 = vrot.lane.b32.xlu0 %v791, 64
        %v796 = vpop.permute.xlu0 %795
        %797 = vrot.lane.b32.xlu0 %v792, 64
        %v798 = vpop.permute.xlu0 %797
        %801 = vst.msk [vmem:[#allocation2 + $0x20] sm:$0xff] %vm737, %v796
        %802 = vst.msk [vmem:[#allocation2 + $0x28] sm:$0xff] %vm737, %v798
        %s803 = scalar_lea.vmem %s628, 128 [#allocation6]
        %v804 = vld [vmem:[%s803] sm:$0xff]
        %v805 = vld [vmem:[%s803 + $0x8] sm:$0xff]
        %806 = vst.msk [vmem:[#allocation2 + $0x30] sm:$0xff] %vm743, %v804
        %807 = vst.msk [vmem:[#allocation2 + $0x38] sm:$0xff] %vm743, %v805
        %s808 = scalar_lea.vmem %s628, 144 [#allocation6]
        %v809 = vld [vmem:[%s808] sm:$0xff]
        %v810 = vld [vmem:[%s808 + $0x8] sm:$0xff]
        %813 = vrot.lane.b32.xlu0 %v809, 32
        %v814 = vpop.permute.xlu0 %813
        %815 = vrot.lane.b32.xlu0 %v810, 32
        %v816 = vpop.permute.xlu0 %815
        %819 = vst.msk [vmem:[#allocation2 + $0x30] sm:$0xff] %vm723, %v814
        %820 = vst.msk [vmem:[#allocation2 + $0x38] sm:$0xff] %vm723, %v816
        %s821 = scalar_lea.vmem %s628, 160 [#allocation6]
        %v822 = vld [vmem:[%s821] sm:$0xff]
        %v823 = vld [vmem:[%s821 + $0x8] sm:$0xff]
        %826 = vrot.lane.b32.xlu0 %v822, 64
        %v827 = vpop.permute.xlu0 %826
        %828 = vrot.lane.b32.xlu0 %v823, 64
        %v829 = vpop.permute.xlu0 %828
        %832 = vst.msk [vmem:[#allocation2 + $0x30] sm:$0xff] %vm737, %v827
        %833 = vst.msk [vmem:[#allocation2 + $0x38] sm:$0xff] %vm737, %v829
        %s834 = scalar_lea.vmem %s628, 176 [#allocation6]
        %v835 = vld [vmem:[%s834] sm:$0xff]
        %v836 = vld [vmem:[%s834 + $0x8] sm:$0xff]
        %837 = vst.msk [vmem:[#allocation2 + $0x40] sm:$0xff] %vm743, %v835
        %838 = vst.msk [vmem:[#allocation2 + $0x48] sm:$0xff] %vm743, %v836
        %s839 = scalar_lea.vmem %s628, 192 [#allocation6]
        %v840 = vld [vmem:[%s839] sm:$0xff]
        %v841 = vld [vmem:[%s839 + $0x8] sm:$0xff]
        %844 = vrot.lane.b32.xlu0 %v840, 32
        %v845 = vpop.permute.xlu0 %844
        %846 = vrot.lane.b32.xlu0 %v841, 32
        %v847 = vpop.permute.xlu0 %846
        %850 = vst.msk [vmem:[#allocation2 + $0x40] sm:$0xff] %vm723, %v845
        %851 = vst.msk [vmem:[#allocation2 + $0x48] sm:$0xff] %vm723, %v847
        %s852 = scalar_lea.vmem %s628, 208 [#allocation6]
        %v853 = vld [vmem:[%s852] sm:$0xff]
        %v854 = vld [vmem:[%s852 + $0x8] sm:$0xff]
        %857 = vrot.lane.b32.xlu0 %v853, 64
        %v858 = vpop.permute.xlu0 %857
        %859 = vrot.lane.b32.xlu0 %v854, 64
        %v860 = vpop.permute.xlu0 %859
        %863 = vst.msk [vmem:[#allocation2 + $0x40] sm:$0xff] %vm737, %v858
        %864 = vst.msk [vmem:[#allocation2 + $0x48] sm:$0xff] %vm737, %v860
        %s865 = scalar_lea.vmem %s628, 224 [#allocation6]
        %v866 = vld [vmem:[%s865] sm:$0xff]
        %v867 = vld [vmem:[%s865 + $0x8] sm:$0xff]
        %868 = vst.msk [vmem:[#allocation2 + $0x50] sm:$0xff] %vm743, %v866
        %869 = vst.msk [vmem:[#allocation2 + $0x58] sm:$0xff] %vm743, %v867
        %s870 = scalar_lea.vmem %s628, 240 [#allocation6]
        %v871 = vld [vmem:[%s870] sm:$0xff]
        %v872 = vld [vmem:[%s870 + $0x8] sm:$0xff]
        %875 = vrot.lane.b32.xlu0 %v871, 32
        %v876 = vpop.permute.xlu0 %875
        %877 = vrot.lane.b32.xlu0 %v872, 32
        %v878 = vpop.permute.xlu0 %877
        %881 = vst.msk [vmem:[#allocation2 + $0x50] sm:$0xff] %vm723, %v876
        %882 = vst.msk [vmem:[#allocation2 + $0x58] sm:$0xff] %vm723, %v878
        %s883 = scalar_lea.vmem %s628, 256 [#allocation6]
        %v884 = vld [vmem:[%s883] sm:$0xff]
        %v885 = vld [vmem:[%s883 + $0x8] sm:$0xff]
        %888 = vrot.lane.b32.xlu0 %v884, 64
        %v889 = vpop.permute.xlu0 %888
        %890 = vrot.lane.b32.xlu0 %v885, 64
        %v891 = vpop.permute.xlu0 %890
        %894 = vst.msk [vmem:[#allocation2 + $0x50] sm:$0xff] %vm737, %v889
        %895 = vst.msk [vmem:[#allocation2 + $0x58] sm:$0xff] %vm737, %v891
        %s896 = scalar_lea.vmem %s628, 272 [#allocation6]
        %v897 = vld [vmem:[%s896] sm:$0xff]
        %v898 = vld [vmem:[%s896 + $0x8] sm:$0xff]
        %899 = vst.msk [vmem:[#allocation2 + $0x60] sm:$0xff] %vm743, %v897
        %900 = vst.msk [vmem:[#allocation2 + $0x68] sm:$0xff] %vm743, %v898
        %s901 = scalar_lea.vmem %s628, 288 [#allocation6]
        %v902 = vld [vmem:[%s901] sm:$0xff]
        %v903 = vld [vmem:[%s901 + $0x8] sm:$0xff]
        %906 = vrot.lane.b32.xlu0 %v902, 32
        %v907 = vpop.permute.xlu0 %906
        %908 = vrot.lane.b32.xlu0 %v903, 32
        %v909 = vpop.permute.xlu0 %908
        %912 = vst.msk [vmem:[#allocation2 + $0x60] sm:$0xff] %vm723, %v907
        %913 = vst.msk [vmem:[#allocation2 + $0x68] sm:$0xff] %vm723, %v909
        %s914 = scalar_lea.vmem %s628, 304 [#allocation6]
        %v915 = vld [vmem:[%s914] sm:$0xff]
        %v916 = vld [vmem:[%s914 + $0x8] sm:$0xff]
        %919 = vrot.lane.b32.xlu0 %v915, 64
        %v920 = vpop.permute.xlu0 %919
        %921 = vrot.lane.b32.xlu0 %v916, 64
        %v922 = vpop.permute.xlu0 %921
        %925 = vst.msk [vmem:[#allocation2 + $0x60] sm:$0xff] %vm737, %v920
        %926 = vst.msk [vmem:[#allocation2 + $0x68] sm:$0xff] %vm737, %v922
        %s927 = scalar_lea.vmem %s628, 320 [#allocation6]
        %v928 = vld [vmem:[%s927] sm:$0xff]
        %v929 = vld [vmem:[%s927 + $0x8] sm:$0xff]
        %930 = vst.msk [vmem:[#allocation2 + $0x70] sm:$0xff] %vm743, %v928
        %931 = vst.msk [vmem:[#allocation2 + $0x78] sm:$0xff] %vm743, %v929
        %s932 = scalar_lea.vmem %s628, 336 [#allocation6]
        %v933 = vld [vmem:[%s932] sm:$0xff]
        %v934 = vld [vmem:[%s932 + $0x8] sm:$0xff]
        %937 = vrot.lane.b32.xlu0 %v933, 32
        %v938 = vpop.permute.xlu0 %937
        %939 = vrot.lane.b32.xlu0 %v934, 32
        %v940 = vpop.permute.xlu0 %939
        %943 = vst.msk [vmem:[#allocation2 + $0x70] sm:$0xff] %vm723, %v938
        %944 = vst.msk [vmem:[#allocation2 + $0x78] sm:$0xff] %vm723, %v940
        %s945 = scalar_lea.vmem %s628, 352 [#allocation6]
        %v946 = vld [vmem:[%s945] sm:$0xff]
        %v947 = vld [vmem:[%s945 + $0x8] sm:$0xff]
        %950 = vrot.lane.b32.xlu0 %v946, 64
        %v951 = vpop.permute.xlu0 %950
        %952 = vrot.lane.b32.xlu0 %v947, 64
        %v953 = vpop.permute.xlu0 %952
        %956 = vst.msk [vmem:[#allocation2 + $0x70] sm:$0xff] %vm737, %v951
        %957 = vst.msk [vmem:[#allocation2 + $0x78] sm:$0xff] %vm737, %v953
        %s958 = scalar_lea.vmem %s628, 368 [#allocation6]
        %v959 = vld [vmem:[%s958] sm:$0xff]
        %v960 = vld [vmem:[%s958 + $0x8] sm:$0xff]
        %961 = vst.msk [vmem:[#allocation2 + $0x80] sm:$0xff] %vm743, %v959
        %962 = vst.msk [vmem:[#allocation2 + $0x88] sm:$0xff] %vm743, %v960
        %s963 = scalar_lea.vmem %s628, 384 [#allocation6]
        %v964 = vld [vmem:[%s963] sm:$0xff]
        %v965 = vld [vmem:[%s963 + $0x8] sm:$0xff]
        %968 = vrot.lane.b32.xlu0 %v964, 32
        %v969 = vpop.permute.xlu0 %968
        %970 = vrot.lane.b32.xlu0 %v965, 32
        %v971 = vpop.permute.xlu0 %970
        %974 = vst.msk [vmem:[#allocation2 + $0x80] sm:$0xff] %vm723, %v969
        %975 = vst.msk [vmem:[#allocation2 + $0x88] sm:$0xff] %vm723, %v971
        %s976 = scalar_lea.vmem %s628, 400 [#allocation6]
        %v977 = vld [vmem:[%s976] sm:$0xff]
        %v978 = vld [vmem:[%s976 + $0x8] sm:$0xff]
        %981 = vrot.lane.b32.xlu0 %v977, 64
        %v982 = vpop.permute.xlu0 %981
        %983 = vrot.lane.b32.xlu0 %v978, 64
        %v984 = vpop.permute.xlu0 %983
        %987 = vst.msk [vmem:[#allocation2 + $0x80] sm:$0xff] %vm737, %v982
        %988 = vst.msk [vmem:[#allocation2 + $0x88] sm:$0xff] %vm737, %v984
        %s989 = scalar_lea.vmem %s628, 416 [#allocation6]
        %v990 = vld [vmem:[%s989] sm:$0xff]
        %v991 = vld [vmem:[%s989 + $0x8] sm:$0xff]
        %992 = vst.msk [vmem:[#allocation2 + $0x90] sm:$0xff] %vm743, %v990
        %993 = vst.msk [vmem:[#allocation2 + $0x98] sm:$0xff] %vm743, %v991
        %s994 = scalar_lea.vmem %s628, 432 [#allocation6]
        %v995 = vld [vmem:[%s994] sm:$0xff]
        %v996 = vld [vmem:[%s994 + $0x8] sm:$0xff]
        %999 = vrot.lane.b32.xlu0 %v995, 32
        %v1000 = vpop.permute.xlu0 %999
        %1001 = vrot.lane.b32.xlu0 %v996, 32
        %v1002 = vpop.permute.xlu0 %1001
        %1005 = vst.msk [vmem:[#allocation2 + $0x90] sm:$0xff] %vm723, %v1000
        %1006 = vst.msk [vmem:[#allocation2 + $0x98] sm:$0xff] %vm723, %v1002
        %v1007 = vld [vmem:[#allocation2] sm:$0xff]
        %v1008 = vld [vmem:[#allocation2 + $0x8] sm:$0xff]
        %v1009 = vld [vmem:[#allocation2 + $0x10] sm:$0xff]
        %v1010 = vld [vmem:[#allocation2 + $0x18] sm:$0xff]
        %v1011 = vld [vmem:[#allocation2 + $0x20] sm:$0xff]
        %v1012 = vld [vmem:[#allocation2 + $0x28] sm:$0xff]
        %v1013 = vld [vmem:[#allocation2 + $0x30] sm:$0xff]
        %v1014 = vld [vmem:[#allocation2 + $0x38] sm:$0xff]
        %v1015 = vld [vmem:[#allocation2 + $0x40] sm:$0xff]
        %v1016 = vld [vmem:[#allocation2 + $0x48] sm:$0xff]
        %v1017 = vld [vmem:[#allocation2 + $0x50] sm:$0xff]
        %v1018 = vld [vmem:[#allocation2 + $0x58] sm:$0xff]
        %v1019 = vld [vmem:[#allocation2 + $0x60] sm:$0xff]
        %v1020 = vld [vmem:[#allocation2 + $0x68] sm:$0xff]
        %v1021 = vld [vmem:[#allocation2 + $0x70] sm:$0xff]
        %v1022 = vld [vmem:[#allocation2 + $0x78] sm:$0xff]
        %v1023 = vld [vmem:[#allocation2 + $0x80] sm:$0xff]
        %v1024 = vld [vmem:[#allocation2 + $0x88] sm:$0xff]
        %v1025 = vld [vmem:[#allocation2 + $0x90] sm:$0xff]
        %v1026 = vld [vmem:[#allocation2 + $0x98] sm:$0xff]
        %v1027 = vpack.c.bf16 %v1008, %v1007
        %v1028 = vpack.c.bf16 %v1010, %v1009
        %v1029 = vpack.c.bf16 %v1012, %v1011
        %v1030 = vpack.c.bf16 %v1014, %v1013
        %v1031 = vpack.c.bf16 %v1016, %v1015
        %v1032 = vpack.c.bf16 %v1018, %v1017
        %v1033 = vpack.c.bf16 %v1020, %v1019
        %v1034 = vpack.c.bf16 %v1022, %v1021
        %v1035 = vpack.c.bf16 %v1024, %v1023
        %v1036 = vpack.c.bf16 %v1026, %v1025
        %v1037 = vld [vmem:[%s1] sm:$0xff]
        %v1038 = vld [vmem:[%s1 + $0x8] sm:$0xff]
        %v1039 = vld [vmem:[%s1 + $0x10] sm:$0xff]
        %v1040 = vld [vmem:[%s1 + $0x18] sm:$0xff]
        %v1041 = vld [vmem:[%s1 + $0x20] sm:$0xff]
        %v1042 = vld [vmem:[%s1 + $0x28] sm:$0xff]
        %v1043 = vld [vmem:[%s1 + $0x30] sm:$0xff]
        %v1044 = vld [vmem:[%s1 + $0x38] sm:$0xff]
        %v1045 = vld [vmem:[%s1 + $0x40] sm:$0xff]
        %v1046 = vld [vmem:[%s1 + $0x48] sm:$0xff]
        %v1047 = vld [vmem:[%s1 + $0x50] sm:$0xff]
        %v1048 = vld [vmem:[%s1 + $0x58] sm:$0xff]
        %v1061 = vunpack.c.l.b16 %v1037
        %v1062 = vunpack.c.h.b16 %v1037
        %v1063 = vunpack.c.l.b16 %v1038
        %v1064 = vunpack.c.h.b16 %v1038
        %v1065 = vunpack.c.l.b16 %v1039
        %v1066 = vunpack.c.h.b16 %v1039
        %v1067 = vunpack.c.l.b16 %v1040
        %v1068 = vunpack.c.h.b16 %v1040
        %v1069 = vunpack.c.l.b16 %v1041
        %v1070 = vunpack.c.h.b16 %v1041
        %v1071 = vunpack.c.l.b16 %v1042
        %v1072 = vunpack.c.h.b16 %v1042
        %v1073 = vunpack.c.l.b16 %v1043
        %v1074 = vunpack.c.h.b16 %v1043
        %v1075 = vunpack.c.l.b16 %v1044
        %v1076 = vunpack.c.h.b16 %v1044
        %v1077 = vunpack.c.l.b16 %v1045
        %v1078 = vunpack.c.h.b16 %v1045
        %v1079 = vunpack.c.l.b16 %v1046
        %v1080 = vunpack.c.h.b16 %v1046
        %v1081 = vunpack.c.l.b16 %v1047
        %v1082 = vunpack.c.h.b16 %v1047
        %v1083 = vunpack.c.l.b16 %v1048
        %v1084 = vunpack.c.h.b16 %v1048
        %v1085 = vpack.c.b16 %v1063, %v1061
        %v1086 = vpack.c.b16 %v1064, %v1062
        %v1087 = vpack.c.b16 %v1067, %v1065
        %v1088 = vpack.c.b16 %v1068, %v1066
        %v1089 = vpack.c.b16 %v1071, %v1069
        %v1090 = vpack.c.b16 %v1072, %v1070
        %v1091 = vpack.c.b16 %v1075, %v1073
        %v1092 = vpack.c.b16 %v1076, %v1074
        %v1093 = vpack.c.b16 %v1079, %v1077
        %v1094 = vpack.c.b16 %v1080, %v1078
        %v1095 = vpack.c.b16 %v1083, %v1081
        %v1096 = vpack.c.b16 %v1084, %v1082
        %v1110 = vsel %vm674, %v1027, 0
        %v1113 = vsel %vm674, %v1028, 0
        %v1116 = vsel %vm674, %v1029, 0
        %v1119 = vsel %vm674, %v1030, 0
        %v1122 = vsel %vm674, %v1031, 0
        %v1125 = vsel %vm674, %v1032, 0
        %v1128 = vsel %vm674, %v1033, 0
        %v1131 = vsel %vm674, %v1034, 0
        %v1134 = vsel %vm674, %v1035, 0
        %v1137 = vsel %vm674, %v1036, 0
        %1139 = vmatprep.subr.bf16.mxu0 %v1086
        %1140 = vmatpush1.bf16.msra.mxu0 %v1085
        %1141 = vmatprep.subr.bf16.mxu0 %v1088
        %1142 = vmatpush1.bf16.msra.mxu0 %v1087
        %1143 = vmatprep.subr.bf16.mxu0 %v1090
        %1144 = vmatpush1.bf16.msra.mxu0 %v1089
        %1145 = vmatprep.subr.bf16.mxu0 %v1092
        %1146 = vmatpush1.bf16.msra.mxu0 %v1091
        %1147 = vmatprep.subr.bf16.mxu0 %v1094
        %1148 = vmatpush1.bf16.msra.mxu0 %v1093
        %1149 = vmatprep.subr.bf16.mxu0 %v1096
        %1150 = vmatpush1.bf16.msra.mxu0 %v1095
        %1151 = vmatprep.subr.bf16.mxu0 0
        %1152 = vmatpush1.bf16.msra.mxu0 0
        %1153 = vmatprep.subr.bf16.mxu0 0
        %1154 = vmatpush1.bf16.msra.mxu0 0
        %1155 = vmatprep.subr.bf16.mxu0 0
        %1156 = vmatpush1.bf16.msra.mxu0 0
        %1157 = vmatprep.subr.bf16.mxu0 0
        %1158 = vmatpush1.bf16.msra.mxu0 0
        %1159 = vmatprep.subr.bf16.mxu0 0
        %1160 = vmatpush1.bf16.msra.mxu0 0
        %1161 = vmatprep.subr.bf16.mxu0 0
        %1162 = vmatpush1.bf16.msra.mxu0 0
        %1163 = vmatprep.subr.bf16.mxu0 0
        %1164 = vmatpush1.bf16.msra.mxu0 0
        %1165 = vmatprep.subr.bf16.mxu0 0
        %1166 = vmatpush1.bf16.msra.mxu0 0
        %1167 = vmatprep.subr.bf16.mxu0 0
        %1168 = vmatpush1.bf16.msra.mxu0 0
        %1169 = vmatprep.subr.bf16.mxu0 0
        %1170 = vmatpush1.bf16.msra.mxu0 0
        %1171 = vmatprep.mubr.bf16.mxu0 0
        %1172 = vmatmul.mubr.bf16.gmra.mrb[0].mxu0 %v1110
        %v1173 = vpop.f32.mrb[0].mxu0
        %v1174 = vadd.f32 0.0, %v1173
        %v1175 = vpop.f32.mrb[0].mxu0
        %v1176 = vadd.f32 0.0, %v1175
        %v1177 = vpop.f32.mrb[0].mxu0
        %v1178 = vadd.f32 0.0, %v1177
        %v1179 = vpop.f32.mrb[0].mxu0
        %v1180 = vadd.f32 0.0, %v1179
        %1181 = vmatprep.mubr.bf16.mxu0 0
        %1182 = vmatmul.mubr.bf16.gmra.mrb[0].mxu0 %v1113
        %v1183 = vpop.f32.mrb[0].mxu0
        %v1184 = vadd.f32 0.0, %v1183
        %v1185 = vpop.f32.mrb[0].mxu0
        %v1186 = vadd.f32 0.0, %v1185
        %v1187 = vpop.f32.mrb[0].mxu0
        %v1188 = vadd.f32 0.0, %v1187
        %v1189 = vpop.f32.mrb[0].mxu0
        %v1190 = vadd.f32 0.0, %v1189
        %1191 = vmatprep.mubr.bf16.mxu0 0
        %1192 = vmatmul.mubr.bf16.gmra.mrb[0].mxu0 %v1116
        %v1193 = vpop.f32.mrb[0].mxu0
        %v1194 = vadd.f32 0.0, %v1193
        %v1195 = vpop.f32.mrb[0].mxu0
        %v1196 = vadd.f32 0.0, %v1195
        %v1197 = vpop.f32.mrb[0].mxu0
        %v1198 = vadd.f32 0.0, %v1197
        %v1199 = vpop.f32.mrb[0].mxu0
        %v1200 = vadd.f32 0.0, %v1199
        %1201 = vmatprep.mubr.bf16.mxu0 0
        %1202 = vmatmul.mubr.bf16.gmra.mrb[0].mxu0 %v1119
        %v1203 = vpop.f32.mrb[0].mxu0
        %v1204 = vadd.f32 0.0, %v1203
        %v1205 = vpop.f32.mrb[0].mxu0
        %v1206 = vadd.f32 0.0, %v1205
        %v1207 = vpop.f32.mrb[0].mxu0
        %v1208 = vadd.f32 0.0, %v1207
        %v1209 = vpop.f32.mrb[0].mxu0
        %v1210 = vadd.f32 0.0, %v1209
        %1211 = vmatprep.mubr.bf16.mxu0 0
        %1212 = vmatmul.mubr.bf16.gmra.mrb[0].mxu0 %v1122
        %v1213 = vpop.f32.mrb[0].mxu0
        %v1214 = vadd.f32 0.0, %v1213
        %v1215 = vpop.f32.mrb[0].mxu0
        %v1216 = vadd.f32 0.0, %v1215
        %v1217 = vpop.f32.mrb[0].mxu0
        %v1218 = vadd.f32 0.0, %v1217
        %v1219 = vpop.f32.mrb[0].mxu0
        %v1220 = vadd.f32 0.0, %v1219
        %1221 = vmatprep.mubr.bf16.mxu0 0
        %1222 = vmatmul.mubr.bf16.gmra.mrb[0].mxu0 %v1125
        %v1223 = vpop.f32.mrb[0].mxu0
        %v1224 = vadd.f32 0.0, %v1223
        %v1225 = vpop.f32.mrb[0].mxu0
        %v1226 = vadd.f32 0.0, %v1225
        %v1227 = vpop.f32.mrb[0].mxu0
        %v1228 = vadd.f32 0.0, %v1227
        %v1229 = vpop.f32.mrb[0].mxu0
        %v1230 = vadd.f32 0.0, %v1229
        %1231 = vmatprep.mubr.bf16.mxu0 0
        %1232 = vmatmul.mubr.bf16.gmra.mrb[0].mxu0 %v1128
        %v1233 = vpop.f32.mrb[0].mxu0
        %v1234 = vadd.f32 0.0, %v1233
        %v1235 = vpop.f32.mrb[0].mxu0
        %v1236 = vadd.f32 0.0, %v1235
        %v1237 = vpop.f32.mrb[0].mxu0
        %v1238 = vadd.f32 0.0, %v1237
        %v1239 = vpop.f32.mrb[0].mxu0
        %v1240 = vadd.f32 0.0, %v1239
        %1241 = vmatprep.mubr.bf16.mxu0 0
        %1242 = vmatmul.mubr.bf16.gmra.mrb[0].mxu0 %v1131
        %v1243 = vpop.f32.mrb[0].mxu0
        %v1244 = vadd.f32 0.0, %v1243
        %v1245 = vpop.f32.mrb[0].mxu0
        %v1246 = vadd.f32 0.0, %v1245
        %v1247 = vpop.f32.mrb[0].mxu0
        %v1248 = vadd.f32 0.0, %v1247
        %v1249 = vpop.f32.mrb[0].mxu0
        %v1250 = vadd.f32 0.0, %v1249
        %1251 = vmatprep.mubr.bf16.mxu0 0
        %1252 = vmatmul.mubr.bf16.gmra.mrb[0].mxu0 %v1134
        %v1253 = vpop.f32.mrb[0].mxu0
        %v1254 = vadd.f32 0.0, %v1253
        %v1255 = vpop.f32.mrb[0].mxu0
        %v1256 = vadd.f32 0.0, %v1255
        %v1257 = vpop.f32.mrb[0].mxu0
        %v1258 = vadd.f32 0.0, %v1257
        %v1259 = vpop.f32.mrb[0].mxu0
        %v1260 = vadd.f32 0.0, %v1259
        %1261 = vmatprep.mubr.bf16.mxu0 0
        %1262 = vmatmul.mubr.bf16.gmra.mrb[0].mxu0 %v1137
        %v1263 = vpop.f32.mrb[0].mxu0
        %v1264 = vadd.f32 0.0, %v1263
        %v1265 = vpop.f32.mrb[0].mxu0
        %v1266 = vadd.f32 0.0, %v1265
        %v1267 = vpop.f32.mrb[0].mxu0
        %v1268 = vadd.f32 0.0, %v1267
        %v1269 = vpop.f32.mrb[0].mxu0
        %v1270 = vadd.f32 0.0, %v1269
        %1271 = vdwg.mxu0
        %v1272 = vmax.f32 %v1174, %v1176
        %v1273 = vmax.f32 %v1178, %v1180
        %v1274 = vmax.f32 %v1184, %v1186
        %v1275 = vmax.f32 %v1188, %v1190
        %v1276 = vmax.f32 %v1272, %v1274
        %v1277 = vmax.f32 %v1273, %v1275
        %v1278 = vld [vmem:[%s2] sm:$0x1]
        %v1280 = vlaneseq
        %v1281 = vshrl.u32 %v1280, 7
        %v1282 = vsub.s32 0, %v1281
        %v1283 = vrot.slane %v1278, %v1282
        %v1285 = vadd.f32 %v1276, %v1283
        %v1286 = vadd.f32 %v1277, %v1283
        %v1287 = vmax.f32 %v1285, 0.0
        %v1288 = vmax.f32 %v1286, 0.0
        %v1289 = vmax.f32 %v1194, %v1196
        %v1290 = vmax.f32 %v1198, %v1200
        %v1291 = vmax.f32 %v1204, %v1206
        %v1292 = vmax.f32 %v1208, %v1210
        %v1293 = vmax.f32 %v1289, %v1291
        %v1294 = vmax.f32 %v1290, %v1292
        %v1295 = vadd.f32 %v1293, %v1283
        %v1296 = vadd.f32 %v1294, %v1283
        %v1297 = vmax.f32 %v1295, 0.0
        %v1298 = vmax.f32 %v1296, 0.0
        %v1299 = vmax.f32 %v1214, %v1216
        %v1300 = vmax.f32 %v1218, %v1220
        %v1301 = vmax.f32 %v1224, %v1226
        %v1302 = vmax.f32 %v1228, %v1230
        %v1303 = vmax.f32 %v1299, %v1301
        %v1304 = vmax.f32 %v1300, %v1302
        %v1305 = vadd.f32 %v1303, %v1283
        %v1306 = vadd.f32 %v1304, %v1283
        %v1307 = vmax.f32 %v1305, 0.0
        %v1308 = vmax.f32 %v1306, 0.0
        %v1309 = vmax.f32 %v1234, %v1236
        %v1310 = vmax.f32 %v1238, %v1240
        %v1311 = vmax.f32 %v1244, %v1246
        %v1312 = vmax.f32 %v1248, %v1250
        %v1313 = vmax.f32 %v1309, %v1311
        %v1314 = vmax.f32 %v1310, %v1312
        %v1315 = vadd.f32 %v1313, %v1283
        %v1316 = vadd.f32 %v1314, %v1283
        %v1317 = vmax.f32 %v1315, 0.0
        %v1318 = vmax.f32 %v1316, 0.0
        %v1319 = vmax.f32 %v1254, %v1256
        %v1320 = vmax.f32 %v1258, %v1260
        %v1321 = vmax.f32 %v1264, %v1266
        %v1322 = vmax.f32 %v1268, %v1270
        %v1323 = vmax.f32 %v1319, %v1321
        %v1324 = vmax.f32 %v1320, %v1322
        %v1325 = vadd.f32 %v1323, %v1283
        %v1326 = vadd.f32 %v1324, %v1283
        %v1327 = vmax.f32 %v1325, 0.0
        %v1328 = vmax.f32 %v1326, 0.0
        %1329 = vst [vmem:[#allocation3 + $0x8] sm:$0xff] %v1287
        %1330 = vst [vmem:[#allocation3 + $0x20] sm:$0xff] %v1288
        %1331 = vst [vmem:[#allocation3 + $0x10] sm:$0xff] %v1297
        %1332 = vst [vmem:[#allocation3 + $0x28] sm:$0xff] %v1298
        %1333 = vst [vmem:[#allocation3 + $0x30] sm:$0xff] %v1297
        %1334 = vst [vmem:[#allocation3 + $0x48] sm:$0xff] %v1298
        %1335 = vst [vmem:[#allocation3 + $0x38] sm:$0xff] %v1307
        %1336 = vst [vmem:[#allocation3 + $0x50] sm:$0xff] %v1308
        %1337 = vst [vmem:[#allocation3 + $0x40] sm:$0xff] %v1317
        %1338 = vst [vmem:[#allocation3 + $0x58] sm:$0xff] %v1318
        %1339 = vst [vmem:[#allocation3 + $0x60] sm:$0xff] %v1317
        %1340 = vst [vmem:[#allocation3 + $0x78] sm:$0xff] %v1318
        %1341 = vst [vmem:[#allocation3 + $0x68] sm:$0xff] %v1327
        %1342 = vst [vmem:[#allocation3 + $0x80] sm:$0xff] %v1328
        %v1343 = vld [vmem:[#allocation3] sm:$0xff]
        %v1344 = vld [vmem:[#allocation3 + $0x8] sm:$0xff]
        %v1345 = vld [vmem:[#allocation3 + $0x10] sm:$0xff]
        %v1346 = vld [vmem:[#allocation3 + $0x18] sm:$0xff]
        %v1347 = vld [vmem:[#allocation3 + $0x20] sm:$0xff]
        %v1348 = vld [vmem:[#allocation3 + $0x28] sm:$0xff]
        %v1349 = vld [vmem:[#allocation3 + $0x30] sm:$0xff]
        %v1350 = vld [vmem:[#allocation3 + $0x38] sm:$0xff]
        %v1351 = vld [vmem:[#allocation3 + $0x40] sm:$0xff]
        %v1352 = vld [vmem:[#allocation3 + $0x48] sm:$0xff]
        %v1353 = vld [vmem:[#allocation3 + $0x50] sm:$0xff]
        %v1354 = vld [vmem:[#allocation3 + $0x58] sm:$0xff]
        %v1355 = vld [vmem:[#allocation3 + $0x60] sm:$0xff]
        %v1356 = vld [vmem:[#allocation3 + $0x68] sm:$0xff]
        %v1357 = vld [vmem:[#allocation3 + $0x70] sm:$0xff]
        %v1358 = vld [vmem:[#allocation3 + $0x78] sm:$0xff]
        %v1359 = vld [vmem:[#allocation3 + $0x80] sm:$0xff]
        %v1360 = vld [vmem:[#allocation3 + $0x88] sm:$0xff]
        %v1361 = vpack.c.bf16 %v1346, %v1343
        %v1362 = vpack.c.bf16 %v1347, %v1344
        %v1363 = vpack.c.bf16 %v1348, %v1345
        %v1364 = vpack.c.bf16 %v1352, %v1349
        %v1365 = vpack.c.bf16 %v1353, %v1350
        %v1366 = vpack.c.bf16 %v1354, %v1351
        %v1367 = vpack.c.bf16 %v1358, %v1355
        %v1368 = vpack.c.bf16 %v1359, %v1356
        %v1369 = vpack.c.bf16 %v1360, %v1357
        %v1370 = vld [vmem:[%s3] sm:$0xff]
        %v1371 = vld [vmem:[%s3 + $0x8] sm:$0xff]
        %v1372 = vld [vmem:[%s3 + $0x10] sm:$0xff]
        %v1373 = vld [vmem:[%s3 + $0x18] sm:$0xff]
        %v1374 = vld [vmem:[%s3 + $0x20] sm:$0xff]
        %v1375 = vld [vmem:[%s3 + $0x28] sm:$0xff]
        %v1376 = vld [vmem:[%s3 + $0x30] sm:$0xff]
        %v1377 = vld [vmem:[%s3 + $0x38] sm:$0xff]
        %v1378 = vld [vmem:[%s3 + $0x40] sm:$0xff]
        %v1379 = vld [vmem:[%s3 + $0x48] sm:$0xff]
        %v1380 = vld [vmem:[%s3 + $0x50] sm:$0xff]
        %v1381 = vld [vmem:[%s3 + $0x58] sm:$0xff]
        %v1382 = vld [vmem:[%s3 + $0x60] sm:$0xff]
        %v1383 = vld [vmem:[%s3 + $0x68] sm:$0xff]
        %v1384 = vld [vmem:[%s3 + $0x70] sm:$0xff]
        %v1385 = vld [vmem:[%s3 + $0x78] sm:$0xff]
        %v1386 = vld [vmem:[%s3 + $0x80] sm:$0xff]
        %v1387 = vld [vmem:[%s3 + $0x88] sm:$0xff]
        %v1388 = vld [vmem:[%s3 + $0x90] sm:$0xff]
        %v1389 = vld [vmem:[%s3 + $0x98] sm:$0xff]
        %v1390 = vld [vmem:[%s3 + $0xa0] sm:$0xff]
        %v1391 = vld [vmem:[%s3 + $0xa8] sm:$0xff]
        %v1392 = vld [vmem:[%s3 + $0xb0] sm:$0xff]
        %v1393 = vld [vmem:[%s3 + $0xb8] sm:$0xff]
        %v1394 = vld [vmem:[%s3 + $0xc0] sm:$0xff]
        %v1395 = vld [vmem:[%s3 + $0xc8] sm:$0xff]
        %v1396 = vld [vmem:[%s3 + $0xd0] sm:$0xff]
        %v1397 = vld [vmem:[%s3 + $0xd8] sm:$0xff]
        %v1398 = vld [vmem:[%s3 + $0xe0] sm:$0xff]
        %v1399 = vld [vmem:[%s3 + $0xe8] sm:$0xff]
        %v1400 = vld [vmem:[%s3 + $0xf0] sm:$0xff]
        %v1401 = vld [vmem:[%s3 + $0xf8] sm:$0xff]
        %v1402 = vld [vmem:[%s3 + $0x100] sm:$0xff]
        %v1403 = vld [vmem:[%s3 + $0x108] sm:$0xff]
        %v1404 = vld [vmem:[%s3 + $0x110] sm:$0xff]
        %v1405 = vld [vmem:[%s3 + $0x118] sm:$0xff]
        %v1406 = vld [vmem:[%s3 + $0x120] sm:$0xff]
        %v1407 = vld [vmem:[%s3 + $0x128] sm:$0xff]
        %v1408 = vld [vmem:[%s3 + $0x130] sm:$0xff]
        %v1409 = vld [vmem:[%s3 + $0x138] sm:$0xff]
        %v1410 = vld [vmem:[%s3 + $0x140] sm:$0xff]
        %v1411 = vld [vmem:[%s3 + $0x148] sm:$0xff]
        %v1412 = vld [vmem:[%s3 + $0x150] sm:$0xff]
        %v1413 = vld [vmem:[%s3 + $0x158] sm:$0xff]
        %v1414 = vld [vmem:[%s3 + $0x160] sm:$0xff]
        %v1415 = vld [vmem:[%s3 + $0x168] sm:$0xff]
        %v1416 = vld [vmem:[%s3 + $0x170] sm:$0xff]
        %v1417 = vld [vmem:[%s3 + $0x178] sm:$0xff]
        %v1466 = vunpack.c.l.b16 %v1370
        %v1467 = vunpack.c.h.b16 %v1370
        %v1468 = vunpack.c.l.b16 %v1371
        %v1469 = vunpack.c.h.b16 %v1371
        %v1470 = vunpack.c.l.b16 %v1372
        %v1471 = vunpack.c.h.b16 %v1372
        %v1472 = vunpack.c.l.b16 %v1373
        %v1473 = vunpack.c.h.b16 %v1373
        %v1474 = vunpack.c.l.b16 %v1374
        %v1475 = vunpack.c.h.b16 %v1374
        %v1476 = vunpack.c.l.b16 %v1375
        %v1477 = vunpack.c.h.b16 %v1375
        %v1478 = vunpack.c.l.b16 %v1376
        %v1479 = vunpack.c.h.b16 %v1376
        %v1480 = vunpack.c.l.b16 %v1377
        %v1481 = vunpack.c.h.b16 %v1377
        %v1482 = vunpack.c.l.b16 %v1378
        %v1483 = vunpack.c.h.b16 %v1378
        %v1484 = vunpack.c.l.b16 %v1379
        %v1485 = vunpack.c.h.b16 %v1379
        %v1486 = vunpack.c.l.b16 %v1380
        %v1487 = vunpack.c.h.b16 %v1380
        %v1488 = vunpack.c.l.b16 %v1381
        %v1489 = vunpack.c.h.b16 %v1381
        %v1490 = vunpack.c.l.b16 %v1382
        %v1491 = vunpack.c.h.b16 %v1382
        %v1492 = vunpack.c.l.b16 %v1383
        %v1493 = vunpack.c.h.b16 %v1383
        %v1494 = vunpack.c.l.b16 %v1384
        %v1495 = vunpack.c.h.b16 %v1384
        %v1496 = vunpack.c.l.b16 %v1385
        %v1497 = vunpack.c.h.b16 %v1385
        %v1498 = vunpack.c.l.b16 %v1386
        %v1499 = vunpack.c.h.b16 %v1386
        %v1500 = vunpack.c.l.b16 %v1387
        %v1501 = vunpack.c.h.b16 %v1387
        %v1502 = vunpack.c.l.b16 %v1388
        %v1503 = vunpack.c.h.b16 %v1388
        %v1504 = vunpack.c.l.b16 %v1389
        %v1505 = vunpack.c.h.b16 %v1389
        %v1506 = vunpack.c.l.b16 %v1390
        %v1507 = vunpack.c.h.b16 %v1390
        %v1508 = vunpack.c.l.b16 %v1391
        %v1509 = vunpack.c.h.b16 %v1391
        %v1510 = vunpack.c.l.b16 %v1392
        %v1511 = vunpack.c.h.b16 %v1392
        %v1512 = vunpack.c.l.b16 %v1393
        %v1513 = vunpack.c.h.b16 %v1393
        %v1514 = vunpack.c.l.b16 %v1394
        %v1515 = vunpack.c.h.b16 %v1394
        %v1516 = vunpack.c.l.b16 %v1395
        %v1517 = vunpack.c.h.b16 %v1395
        %v1518 = vunpack.c.l.b16 %v1396
        %v1519 = vunpack.c.h.b16 %v1396
        %v1520 = vunpack.c.l.b16 %v1397
        %v1521 = vunpack.c.h.b16 %v1397
        %v1522 = vunpack.c.l.b16 %v1398
        %v1523 = vunpack.c.h.b16 %v1398
        %v1524 = vunpack.c.l.b16 %v1399
        %v1525 = vunpack.c.h.b16 %v1399
        %v1526 = vunpack.c.l.b16 %v1400
        %v1527 = vunpack.c.h.b16 %v1400
        %v1528 = vunpack.c.l.b16 %v1401
        %v1529 = vunpack.c.h.b16 %v1401
        %v1530 = vunpack.c.l.b16 %v1402
        %v1531 = vunpack.c.h.b16 %v1402
        %v1532 = vunpack.c.l.b16 %v1403
        %v1533 = vunpack.c.h.b16 %v1403
        %v1534 = vunpack.c.l.b16 %v1404
        %v1535 = vunpack.c.h.b16 %v1404
        %v1536 = vunpack.c.l.b16 %v1405
        %v1537 = vunpack.c.h.b16 %v1405
        %v1538 = vunpack.c.l.b16 %v1406
        %v1539 = vunpack.c.h.b16 %v1406
        %v1540 = vunpack.c.l.b16 %v1407
        %v1541 = vunpack.c.h.b16 %v1407
        %v1542 = vunpack.c.l.b16 %v1408
        %v1543 = vunpack.c.h.b16 %v1408
        %v1544 = vunpack.c.l.b16 %v1409
        %v1545 = vunpack.c.h.b16 %v1409
        %v1546 = vunpack.c.l.b16 %v1410
        %v1547 = vunpack.c.h.b16 %v1410
        %v1548 = vunpack.c.l.b16 %v1411
        %v1549 = vunpack.c.h.b16 %v1411
        %v1550 = vunpack.c.l.b16 %v1412
        %v1551 = vunpack.c.h.b16 %v1412
        %v1552 = vunpack.c.l.b16 %v1413
        %v1553 = vunpack.c.h.b16 %v1413
        %v1554 = vunpack.c.l.b16 %v1414
        %v1555 = vunpack.c.h.b16 %v1414
        %v1556 = vunpack.c.l.b16 %v1415
        %v1557 = vunpack.c.h.b16 %v1415
        %v1558 = vunpack.c.l.b16 %v1416
        %v1559 = vunpack.c.h.b16 %v1416
        %v1560 = vunpack.c.l.b16 %v1417
        %v1561 = vunpack.c.h.b16 %v1417
        %v1562 = vpack.c.b16 %v1468, %v1466
        %v1563 = vpack.c.b16 %v1469, %v1467
        %v1564 = vpack.c.b16 %v1472, %v1470
        %v1565 = vpack.c.b16 %v1473, %v1471
        %v1566 = vpack.c.b16 %v1476, %v1474
        %v1567 = vpack.c.b16 %v1477, %v1475
        %v1568 = vpack.c.b16 %v1480, %v1478
        %v1569 = vpack.c.b16 %v1481, %v1479
        %v1570 = vpack.c.b16 %v1484, %v1482
        %v1571 = vpack.c.b16 %v1485, %v1483
        %v1572 = vpack.c.b16 %v1488, %v1486
        %v1573 = vpack.c.b16 %v1489, %v1487
        %v1574 = vpack.c.b16 %v1492, %v1490
        %v1575 = vpack.c.b16 %v1493, %v1491
        %v1576 = vpack.c.b16 %v1496, %v1494
        %v1577 = vpack.c.b16 %v1497, %v1495
        %v1578 = vpack.c.b16 %v1500, %v1498
        %v1579 = vpack.c.b16 %v1501, %v1499
        %v1580 = vpack.c.b16 %v1504, %v1502
        %v1581 = vpack.c.b16 %v1505, %v1503
        %v1582 = vpack.c.b16 %v1508, %v1506
        %v1583 = vpack.c.b16 %v1509, %v1507
        %v1584 = vpack.c.b16 %v1512, %v1510
        %v1585 = vpack.c.b16 %v1513, %v1511
        %v1586 = vpack.c.b16 %v1516, %v1514
        %v1587 = vpack.c.b16 %v1517, %v1515
        %v1588 = vpack.c.b16 %v1520, %v1518
        %v1589 = vpack.c.b16 %v1521, %v1519
        %v1590 = vpack.c.b16 %v1524, %v1522
        %v1591 = vpack.c.b16 %v1525, %v1523
        %v1592 = vpack.c.b16 %v1528, %v1526
        %v1593 = vpack.c.b16 %v1529, %v1527
        %v1594 = vpack.c.b16 %v1532, %v1530
        %v1595 = vpack.c.b16 %v1533, %v1531
        %v1596 = vpack.c.b16 %v1536, %v1534
        %v1597 = vpack.c.b16 %v1537, %v1535
        %v1598 = vpack.c.b16 %v1540, %v1538
        %v1599 = vpack.c.b16 %v1541, %v1539
        %v1600 = vpack.c.b16 %v1544, %v1542
        %v1601 = vpack.c.b16 %v1545, %v1543
        %v1602 = vpack.c.b16 %v1548, %v1546
        %v1603 = vpack.c.b16 %v1549, %v1547
        %v1604 = vpack.c.b16 %v1552, %v1550
        %v1605 = vpack.c.b16 %v1553, %v1551
        %v1606 = vpack.c.b16 %v1556, %v1554
        %v1607 = vpack.c.b16 %v1557, %v1555
        %v1608 = vpack.c.b16 %v1560, %v1558
        %v1609 = vpack.c.b16 %v1561, %v1559
        %1658 = vmatprep.subr.bf16.mxu0 %v1563
        %1659 = vmatpush1.bf16.msra.mxu0 %v1562
        %1660 = vmatprep.subr.bf16.mxu0 %v1565
        %1661 = vmatpush1.bf16.msra.mxu0 %v1564
        %1662 = vmatprep.subr.bf16.mxu0 %v1567
        %1663 = vmatpush1.bf16.msra.mxu0 %v1566
        %1664 = vmatprep.subr.bf16.mxu0 %v1569
        %1665 = vmatpush1.bf16.msra.mxu0 %v1568
        %1666 = vmatprep.subr.bf16.mxu0 %v1571
        %1667 = vmatpush1.bf16.msra.mxu0 %v1570
        %1668 = vmatprep.subr.bf16.mxu0 %v1573
        %1669 = vmatpush1.bf16.msra.mxu0 %v1572
        %1670 = vmatprep.subr.bf16.mxu0 %v1575
        %1671 = vmatpush1.bf16.msra.mxu0 %v1574
        %1672 = vmatprep.subr.bf16.mxu0 %v1577
        %1673 = vmatpush1.bf16.msra.mxu0 %v1576
        %1674 = vmatprep.subr.bf16.mxu0 %v1579
        %1675 = vmatpush1.bf16.msra.mxu0 %v1578
        %1676 = vmatprep.subr.bf16.mxu0 %v1581
        %1677 = vmatpush1.bf16.msra.mxu0 %v1580
        %1678 = vmatprep.subr.bf16.mxu0 %v1583
        %1679 = vmatpush1.bf16.msra.mxu0 %v1582
        %1680 = vmatprep.subr.bf16.mxu0 %v1585
        %1681 = vmatpush1.bf16.msra.mxu0 %v1584
        %1682 = vmatprep.subr.bf16.mxu0 %v1587
        %1683 = vmatpush1.bf16.msra.mxu0 %v1586
        %1684 = vmatprep.subr.bf16.mxu0 %v1589
        %1685 = vmatpush1.bf16.msra.mxu0 %v1588
        %1686 = vmatprep.subr.bf16.mxu0 %v1591
        %1687 = vmatpush1.bf16.msra.mxu0 %v1590
        %1688 = vmatprep.subr.bf16.mxu0 %v1593
        %1689 = vmatpush1.bf16.msra.mxu0 %v1592
        %1690 = vmatprep.mubr.bf16.mxu0 %v1362
        %1691 = vmatmul.mubr.bf16.gmra.mrb[0].mxu0 %v1361
        %v1692 = vpop.f32.mrb[0].mxu0
        %v1693 = vadd.f32 0.0, %v1692
        %v1694 = vpop.f32.mrb[0].mxu0
        %v1695 = vadd.f32 0.0, %v1694
        %v1696 = vpop.f32.mrb[0].mxu0
        %v1697 = vadd.f32 0.0, %v1696
        %v1698 = vpop.f32.mrb[0].mxu0
        %v1699 = vadd.f32 0.0, %v1698
        %1700 = vmatprep.mubr.bf16.mxu0 %v1365
        %1701 = vmatmul.mubr.bf16.gmra.mrb[0].mxu0 %v1364
        %v1702 = vpop.f32.mrb[0].mxu0
        %v1703 = vadd.f32 0.0, %v1702
        %v1704 = vpop.f32.mrb[0].mxu0
        %v1705 = vadd.f32 0.0, %v1704
        %v1706 = vpop.f32.mrb[0].mxu0
        %v1707 = vadd.f32 0.0, %v1706
        %v1708 = vpop.f32.mrb[0].mxu0
        %v1709 = vadd.f32 0.0, %v1708
        %1710 = vmatprep.mubr.bf16.mxu0 %v1368
        %1711 = vmatmul.mubr.bf16.gmra.mrb[0].mxu0 %v1367
        %v1712 = vpop.f32.mrb[0].mxu0
        %v1713 = vadd.f32 0.0, %v1712
        %v1714 = vpop.f32.mrb[0].mxu0
        %v1715 = vadd.f32 0.0, %v1714
        %v1716 = vpop.f32.mrb[0].mxu0
        %v1717 = vadd.f32 0.0, %v1716
        %v1718 = vpop.f32.mrb[0].mxu0
        %v1719 = vadd.f32 0.0, %v1718
        %1720 = vdwg.mxu0
        %1721 = vmatprep.subr.bf16.mxu0 %v1595
        %1722 = vmatpush1.bf16.msra.mxu0 %v1594
        %1723 = vmatprep.subr.bf16.mxu0 %v1597
        %1724 = vmatpush1.bf16.msra.mxu0 %v1596
        %1725 = vmatprep.subr.bf16.mxu0 %v1599
        %1726 = vmatpush1.bf16.msra.mxu0 %v1598
        %1727 = vmatprep.subr.bf16.mxu0 %v1601
        %1728 = vmatpush1.bf16.msra.mxu0 %v1600
        %1729 = vmatprep.subr.bf16.mxu0 %v1603
        %1730 = vmatpush1.bf16.msra.mxu0 %v1602
        %1731 = vmatprep.subr.bf16.mxu0 %v1605
        %1732 = vmatpush1.bf16.msra.mxu0 %v1604
        %1733 = vmatprep.subr.bf16.mxu0 %v1607
        %1734 = vmatpush1.bf16.msra.mxu0 %v1606
        %1735 = vmatprep.subr.bf16.mxu0 %v1609
        %1736 = vmatpush1.bf16.msra.mxu0 %v1608
        %1737 = vmatprep.subr.bf16.mxu0 0
        %1738 = vmatpush1.bf16.msra.mxu0 0
        %1739 = vmatprep.subr.bf16.mxu0 0
        %1740 = vmatpush1.bf16.msra.mxu0 0
        %1741 = vmatprep.subr.bf16.mxu0 0
        %1742 = vmatpush1.bf16.msra.mxu0 0
        %1743 = vmatprep.subr.bf16.mxu0 0
        %1744 = vmatpush1.bf16.msra.mxu0 0
        %1745 = vmatprep.subr.bf16.mxu0 0
        %1746 = vmatpush1.bf16.msra.mxu0 0
        %1747 = vmatprep.subr.bf16.mxu0 0
        %1748 = vmatpush1.bf16.msra.mxu0 0
        %1749 = vmatprep.subr.bf16.mxu0 0
        %1750 = vmatpush1.bf16.msra.mxu0 0
        %1751 = vmatprep.subr.bf16.mxu0 0
        %1752 = vmatpush1.bf16.msra.mxu0 0
        %1753 = vmatprep.mubr.bf16.mxu0 0
        %1754 = vmatmul.mubr.bf16.gmra.mrb[0].mxu0 %v1363
        %v1755 = vpop.f32.mrb[0].mxu0
        %v1756 = vadd.f32 %v1693, %v1755
        %v1757 = vpop.f32.mrb[0].mxu0
        %v1758 = vadd.f32 %v1695, %v1757
        %v1759 = vpop.f32.mrb[0].mxu0
        %v1760 = vadd.f32 %v1697, %v1759
        %v1761 = vpop.f32.mrb[0].mxu0
        %v1762 = vadd.f32 %v1699, %v1761
        %1763 = vmatprep.mubr.bf16.mxu0 0
        %1764 = vmatmul.mubr.bf16.gmra.mrb[0].mxu0 %v1366
        %v1765 = vpop.f32.mrb[0].mxu0
        %v1766 = vadd.f32 %v1703, %v1765
        %v1767 = vpop.f32.mrb[0].mxu0
        %v1768 = vadd.f32 %v1705, %v1767
        %v1769 = vpop.f32.mrb[0].mxu0
        %v1770 = vadd.f32 %v1707, %v1769
        %v1771 = vpop.f32.mrb[0].mxu0
        %v1772 = vadd.f32 %v1709, %v1771
        %1773 = vmatprep.mubr.bf16.mxu0 0
        %1774 = vmatmul.mubr.bf16.gmra.mrb[0].mxu0 %v1369
        %v1775 = vpop.f32.mrb[0].mxu0
        %v1776 = vadd.f32 %v1713, %v1775
        %v1777 = vpop.f32.mrb[0].mxu0
        %v1778 = vadd.f32 %v1715, %v1777
        %v1779 = vpop.f32.mrb[0].mxu0
        %v1780 = vadd.f32 %v1717, %v1779
        %v1781 = vpop.f32.mrb[0].mxu0
        %v1782 = vadd.f32 %v1719, %v1781
        %1783 = vdwg.mxu0
        %v1784 = vmax.f32 %v1756, %v1758
        %v1785 = vmax.f32 %v1760, %v1762
        %v1786 = vmax.f32 %v1766, %v1768
        %v1787 = vmax.f32 %v1770, %v1772
        %v1788 = vmax.f32 %v1776, %v1778
        %v1789 = vmax.f32 %v1780, %v1782
        %v1790 = vmax.f32 %v1784, %v1786
        %v1791 = vmax.f32 %v1785, %v1787
        %v1792 = vld [vmem:[%s4] sm:$0x1]
        %v1794 = vlaneseq
        %v1795 = vshrl.u32 %v1794, 7
        %v1796 = vsub.s32 0, %v1795
        %v1797 = vrot.slane %v1792, %v1796
        %v1799 = vadd.f32 %v1790, %v1797
        %v1800 = vadd.f32 %v1791, %v1797
        %v1801 = vmax.f32 %v1799, 0.0
        %v1802 = vmax.f32 %v1800, 0.0
        %1803 = vst [vmem:[%s663] sm:$0xff] %v1801
        %1804 = vst [vmem:[%s663 + $0x8] sm:$0xff] %v1802
        %v1805 = vmax.f32 %v1786, %v1788
        %v1806 = vmax.f32 %v1787, %v1789
        %v1807 = vld [vmem:[%s4] sm:$0x1]
        %v1809 = vlaneseq
        %v1810 = vshrl.u32 %v1809, 7
        %v1811 = vsub.s32 0, %v1810
        %v1812 = vrot.slane %v1807, %v1811
        %v1814 = vadd.f32 %v1805, %v1812
        %v1815 = vadd.f32 %v1806, %v1812
        %v1816 = vmax.f32 %v1814, 0.0
        %v1817 = vmax.f32 %v1815, 0.0
        %s1818 = scalar_lea.vmem %s663, 16 [#allocation7]
        %1819 = vst [vmem:[%s1818] sm:$0xff] %v1816
        %1820 = vst [vmem:[%s1818 + $0x8] sm:$0xff] %v1817
        %v1821 = vpack.c.bf16 %v1802, %v1801
        %v1822 = vpack.c.bf16 %v1817, %v1816
        %v1823 = vld [vmem:[%s5] sm:$0xff]
        %v1824 = vld [vmem:[%s5 + $0x8] sm:$0xf]
        %v1825 = vld [vmem:[%s5 + $0xc] sm:$0xff]
        %v1826 = vld [vmem:[%s5 + $0x14] sm:$0xf]
        %v1827 = vld [vmem:[%s5 + $0x18] sm:$0xff]
        %v1828 = vld [vmem:[%s5 + $0x20] sm:$0xf]
        %v1829 = vld [vmem:[%s5 + $0x24] sm:$0xff]
        %v1830 = vld [vmem:[%s5 + $0x2c] sm:$0xf]
        %v1831 = vld [vmem:[%s5 + $0x30] sm:$0xff]
        %v1832 = vld [vmem:[%s5 + $0x38] sm:$0xf]
        %v1833 = vld [vmem:[%s5 + $0x3c] sm:$0xff]
        %v1834 = vld [vmem:[%s5 + $0x44] sm:$0xf]
        %v1835 = vld [vmem:[%s5 + $0x48] sm:$0xff]
        %v1836 = vld [vmem:[%s5 + $0x50] sm:$0xf]
        %v1837 = vld [vmem:[%s5 + $0x54] sm:$0xff]
        %v1838 = vld [vmem:[%s5 + $0x5c] sm:$0xf]
        %v1839 = vld [vmem:[%s5 + $0x60] sm:$0xff]
        %v1840 = vld [vmem:[%s5 + $0x68] sm:$0xf]
        %v1841 = vld [vmem:[%s5 + $0x6c] sm:$0xff]
        %v1842 = vld [vmem:[%s5 + $0x74] sm:$0xf]
        %v1843 = vld [vmem:[%s5 + $0x78] sm:$0xff]
        %v1844 = vld [vmem:[%s5 + $0x80] sm:$0xf]
        %v1845 = vld [vmem:[%s5 + $0x84] sm:$0xff]
        %v1846 = vld [vmem:[%s5 + $0x8c] sm:$0xf]
        %v1847 = vld [vmem:[%s5 + $0x90] sm:$0xff]
        %v1848 = vld [vmem:[%s5 + $0x98] sm:$0xf]
        %v1849 = vld [vmem:[%s5 + $0x9c] sm:$0xff]
        %v1850 = vld [vmem:[%s5 + $0xa4] sm:$0xf]
        %v1851 = vld [vmem:[%s5 + $0xa8] sm:$0xff]
        %v1852 = vld [vmem:[%s5 + $0xb0] sm:$0xf]
        %v1853 = vld [vmem:[%s5 + $0xb4] sm:$0xff]
        %v1854 = vld [vmem:[%s5 + $0xbc] sm:$0xf]
        %v1887 = vunpack.c.l.b16 %v1823
        %v1888 = vunpack.c.h.b16 %v1823
        %v1889 = vunpack.c.l.b16 %v1824
        %v1890 = vunpack.c.l.b16 %v1825
        %v1891 = vunpack.c.h.b16 %v1825
        %v1892 = vunpack.c.l.b16 %v1826
        %v1893 = vunpack.c.l.b16 %v1827
        %v1894 = vunpack.c.h.b16 %v1827
        %v1895 = vunpack.c.l.b16 %v1828
        %v1896 = vunpack.c.l.b16 %v1829
        %v1897 = vunpack.c.h.b16 %v1829
        %v1898 = vunpack.c.l.b16 %v1830
        %v1899 = vunpack.c.l.b16 %v1831
        %v1900 = vunpack.c.h.b16 %v1831
        %v1901 = vunpack.c.l.b16 %v1832
        %v1902 = vunpack.c.l.b16 %v1833
        %v1903 = vunpack.c.h.b16 %v1833
        %v1904 = vunpack.c.l.b16 %v1834
        %v1905 = vunpack.c.l.b16 %v1835
        %v1906 = vunpack.c.h.b16 %v1835
        %v1907 = vunpack.c.l.b16 %v1836
        %v1908 = vunpack.c.l.b16 %v1837
        %v1909 = vunpack.c.h.b16 %v1837
        %v1910 = vunpack.c.l.b16 %v1838
        %v1911 = vunpack.c.l.b16 %v1839
        %v1912 = vunpack.c.h.b16 %v1839
        %v1913 = vunpack.c.l.b16 %v1840
        %v1914 = vunpack.c.l.b16 %v1841
        %v1915 = vunpack.c.h.b16 %v1841
        %v1916 = vunpack.c.l.b16 %v1842
        %v1917 = vunpack.c.l.b16 %v1843
        %v1918 = vunpack.c.h.b16 %v1843
        %v1919 = vunpack.c.l.b16 %v1844
        %v1920 = vunpack.c.l.b16 %v1845
        %v1921 = vunpack.c.h.b16 %v1845
        %v1922 = vunpack.c.l.b16 %v1846
        %v1923 = vunpack.c.l.b16 %v1847
        %v1924 = vunpack.c.h.b16 %v1847
        %v1925 = vunpack.c.l.b16 %v1848
        %v1926 = vunpack.c.l.b16 %v1849
        %v1927 = vunpack.c.h.b16 %v1849
        %v1928 = vunpack.c.l.b16 %v1850
        %v1929 = vunpack.c.l.b16 %v1851
        %v1930 = vunpack.c.h.b16 %v1851
        %v1931 = vunpack.c.l.b16 %v1852
        %v1932 = vunpack.c.l.b16 %v1853
        %v1933 = vunpack.c.h.b16 %v1853
        %v1934 = vunpack.c.l.b16 %v1854
        %v1935 = vpack.c.b16 %v1890, %v1887
        %v1936 = vpack.c.b16 %v1891, %v1888
        %v1937 = vpack.c.b16 %v1892, %v1889
        %v1938 = vpack.c.b16 %v1896, %v1893
        %v1939 = vpack.c.b16 %v1897, %v1894
        %v1940 = vpack.c.b16 %v1898, %v1895
        %v1941 = vpack.c.b16 %v1902, %v1899
        %v1942 = vpack.c.b16 %v1903, %v1900
        %v1943 = vpack.c.b16 %v1904, %v1901
        %v1944 = vpack.c.b16 %v1908, %v1905
        %v1945 = vpack.c.b16 %v1909, %v1906
        %v1946 = vpack.c.b16 %v1910, %v1907
        %v1947 = vpack.c.b16 %v1914, %v1911
        %v1948 = vpack.c.b16 %v1915, %v1912
        %v1949 = vpack.c.b16 %v1916, %v1913
        %v1950 = vpack.c.b16 %v1920, %v1917
        %v1951 = vpack.c.b16 %v1921, %v1918
        %v1952 = vpack.c.b16 %v1922, %v1919
        %v1953 = vpack.c.b16 %v1926, %v1923
        %v1954 = vpack.c.b16 %v1927, %v1924
        %v1955 = vpack.c.b16 %v1928, %v1925
        %v1956 = vpack.c.b16 %v1932, %v1929
        %v1957 = vpack.c.b16 %v1933, %v1930
        %v1958 = vpack.c.b16 %v1934, %v1931
        %1983 = vmatprep.subr.bf16.mxu0 %v1936
        %1984 = vmatpush1.bf16.msra.mxu0 %v1935
        %1985 = vmatprep.subr.bf16.mxu0 %v1939
        %1986 = vmatpush1.bf16.msra.mxu0 %v1938
        %1987 = vmatprep.subr.bf16.mxu0 %v1942
        %1988 = vmatpush1.bf16.msra.mxu0 %v1941
        %1989 = vmatprep.subr.bf16.mxu0 %v1945
        %1990 = vmatpush1.bf16.msra.mxu0 %v1944
        %1991 = vmatprep.subr.bf16.mxu0 %v1948
        %1992 = vmatpush1.bf16.msra.mxu0 %v1947
        %1993 = vmatprep.subr.bf16.mxu0 %v1951
        %1994 = vmatpush1.bf16.msra.mxu0 %v1950
        %1995 = vmatprep.subr.bf16.mxu0 %v1954
        %1996 = vmatpush1.bf16.msra.mxu0 %v1953
        %1997 = vmatprep.subr.bf16.mxu0 %v1957
        %1998 = vmatpush1.bf16.msra.mxu0 %v1956
        %1999 = vmatprep.subr.bf16.mxu0 0
        %2000 = vmatpush1.bf16.msra.mxu0 0
        %2001 = vmatprep.subr.bf16.mxu0 0
        %2002 = vmatpush1.bf16.msra.mxu0 0
        %2003 = vmatprep.subr.bf16.mxu0 0
        %2004 = vmatpush1.bf16.msra.mxu0 0
        %2005 = vmatprep.subr.bf16.mxu0 0
        %2006 = vmatpush1.bf16.msra.mxu0 0
        %2007 = vmatprep.subr.bf16.mxu0 0
        %2008 = vmatpush1.bf16.msra.mxu0 0
        %2009 = vmatprep.subr.bf16.mxu0 0
        %2010 = vmatpush1.bf16.msra.mxu0 0
        %2011 = vmatprep.subr.bf16.mxu0 0
        %2012 = vmatpush1.bf16.msra.mxu0 0
        %2013 = vmatprep.subr.bf16.mxu0 0
        %2014 = vmatpush1.bf16.msra.mxu0 0
        %2015 = vmatprep.mubr.bf16.mxu0 0
        %2016 = vmatmul.mubr.bf16.gmra.mrb[0].mxu0 %v1821
        %v2017 = vpop.f32.mrb[0].mxu0
        %v2018 = vadd.f32 0.0, %v2017
        %v2019 = vpop.f32.mrb[0].mxu0
        %v2020 = vadd.f32 0.0, %v2019
        %v2021 = vpop.f32.mrb[0].mxu0
        %v2022 = vadd.f32 0.0, %v2021
        %v2023 = vpop.f32.mrb[0].mxu0
        %v2024 = vadd.f32 0.0, %v2023
        %2025 = vmatprep.mubr.bf16.mxu0 0
        %2026 = vmatmul.mubr.bf16.gmra.mrb[0].mxu0 %v1822
        %v2027 = vpop.f32.mrb[0].mxu0
        %v2028 = vadd.f32 0.0, %v2027
        %v2029 = vpop.f32.mrb[0].mxu0
        %v2030 = vadd.f32 0.0, %v2029
        %v2031 = vpop.f32.mrb[0].mxu0
        %v2032 = vadd.f32 0.0, %v2031
        %v2033 = vpop.f32.mrb[0].mxu0
        %v2034 = vadd.f32 0.0, %v2033
        %2035 = vdwg.mxu0
        %2036 = vmatprep.subr.bf16.mxu0 0
        %2037 = vmatpush1.bf16.msra.mxu0 %v1937
        %2038 = vmatprep.subr.bf16.mxu0 0
        %2039 = vmatpush1.bf16.msra.mxu0 %v1940
        %2040 = vmatprep.subr.bf16.mxu0 0
        %2041 = vmatpush1.bf16.msra.mxu0 %v1943
        %2042 = vmatprep.subr.bf16.mxu0 0
        %2043 = vmatpush1.bf16.msra.mxu0 %v1946
        %2044 = vmatprep.subr.bf16.mxu0 0
        %2045 = vmatpush1.bf16.msra.mxu0 %v1949
        %2046 = vmatprep.subr.bf16.mxu0 0
        %2047 = vmatpush1.bf16.msra.mxu0 %v1952
        %2048 = vmatprep.subr.bf16.mxu0 0
        %2049 = vmatpush1.bf16.msra.mxu0 %v1955
        %2050 = vmatprep.subr.bf16.mxu0 0
        %2051 = vmatpush1.bf16.msra.mxu0 %v1958
        %2052 = vmatprep.subr.bf16.mxu0 0
        %2053 = vmatpush1.bf16.msra.mxu0 0
        %2054 = vmatprep.subr.bf16.mxu0 0
        %2055 = vmatpush1.bf16.msra.mxu0 0
        %2056 = vmatprep.subr.bf16.mxu0 0
        %2057 = vmatpush1.bf16.msra.mxu0 0
        %2058 = vmatprep.subr.bf16.mxu0 0
        %2059 = vmatpush1.bf16.msra.mxu0 0
        %2060 = vmatprep.subr.bf16.mxu0 0
        %2061 = vmatpush1.bf16.msra.mxu0 0
        %2062 = vmatprep.subr.bf16.mxu0 0
        %2063 = vmatpush1.bf16.msra.mxu0 0
        %2064 = vmatprep.subr.bf16.mxu0 0
        %2065 = vmatpush1.bf16.msra.mxu0 0
        %2066 = vmatprep.subr.bf16.mxu0 0
        %2067 = vmatpush1.bf16.msra.mxu0 0
        %2068 = vmatprep.mubr.bf16.mxu0 0
        %2069 = vmatmul.mubr.bf16.gmra.mrb[0].mxu0 %v1821
        %v2070 = vpop.f32.mrb[0].mxu0
        %v2071 = vadd.f32 0.0, %v2070
        %v2072 = vpop.f32.mrb[0].mxu0
        %v2073 = vpop.f32.mrb[0].mxu0
        %v2074 = vadd.f32 0.0, %v2073
        %v2075 = vpop.f32.mrb[0].mxu0
        %2076 = vmatprep.mubr.bf16.mxu0 0
        %2077 = vmatmul.mubr.bf16.gmra.mrb[0].mxu0 %v1822
        %v2078 = vpop.f32.mrb[0].mxu0
        %v2079 = vadd.f32 0.0, %v2078
        %v2080 = vpop.f32.mrb[0].mxu0
        %v2081 = vpop.f32.mrb[0].mxu0
        %v2082 = vadd.f32 0.0, %v2081
        %v2083 = vpop.f32.mrb[0].mxu0
        %2084 = vdwg.mxu0
        %v2085 = vld [vmem:[%s6] sm:$0x1]
        %v2087 = vlaneseq
        %v2088 = vshrl.u32 %v2087, 7
        %v2089 = vsub.s32 0, %v2088
        %v2090 = vrot.slane %v2085, %v2089
        %v2092 = vadd.f32 %v2018, %v2090
        %v2093 = vadd.f32 %v2022, %v2090
        %v2094 = vmax.f32 %v2092, 0.0
        %v2095 = vmax.f32 %v2093, 0.0
        %2096 = vst [vmem:[#allocation4] sm:$0xff] %v2094
        %2097 = vst [vmem:[#allocation4 + $0x8] sm:$0xff] %v2095
        %v2098 = vld [vmem:[%s6] sm:$0x1]
        %v2100 = vlaneseq
        %v2101 = vshrl.u32 %v2100, 7
        %v2102 = vsub.s32 0, %v2101
        %v2103 = vrot.slane %v2098, %v2102
        %v2105 = vadd.f32 %v2020, %v2103
        %v2106 = vadd.f32 %v2024, %v2103
        %v2107 = vmax.f32 %v2105, 0.0
        %v2108 = vmax.f32 %v2106, 0.0
        %2109 = vst [vmem:[#allocation4 + $0x10] sm:$0xff] %v2107
        %2110 = vst [vmem:[#allocation4 + $0x18] sm:$0xff] %v2108
        %v2111 = vadd.f32 %v2028, %v2071
        %v2112 = vadd.f32 %v2032, %v2074
        %v2113 = vld [vmem:[%s6] sm:$0x1]
        %v2115 = vlaneseq
        %v2116 = vshrl.u32 %v2115, 7
        %v2117 = vsub.s32 0, %v2116
        %v2118 = vrot.slane %v2113, %v2117
        %v2120 = vadd.f32 %v2111, %v2118
        %v2121 = vadd.f32 %v2112, %v2118
        %v2122 = vmax.f32 %v2120, 0.0
        %v2123 = vmax.f32 %v2121, 0.0
        %2124 = vst [vmem:[#allocation4 + $0x20] sm:$0xff] %v2122
        %2125 = vst [vmem:[#allocation4 + $0x28] sm:$0xff] %v2123
        %v2126 = vld [vmem:[%s6] sm:$0x1]
        %v2128 = vlaneseq
        %v2129 = vshrl.u32 %v2128, 7
        %v2130 = vsub.s32 0, %v2129
        %v2131 = vrot.slane %v2126, %v2130
        %v2133 = vadd.f32 %v2030, %v2131
        %v2134 = vadd.f32 %v2034, %v2131
        %v2135 = vmax.f32 %v2133, 0.0
        %v2136 = vmax.f32 %v2134, 0.0
        %2137 = vst [vmem:[#allocation4 + $0x30] sm:$0xff] %v2135
        %2138 = vst [vmem:[#allocation4 + $0x38] sm:$0xff] %v2136
        %v2139 = vld [vmem:[%s6] sm:$0x1]
        %v2141 = vlaneseq
        %v2142 = vshrl.u32 %v2141, 7
        %v2143 = vsub.s32 0, %v2142
        %v2144 = vrot.slane %v2139, %v2143
        %v2146 = vadd.f32 %v2079, %v2144
        %v2147 = vadd.f32 %v2082, %v2144
        %v2148 = vmax.f32 %v2146, 0.0
        %v2149 = vmax.f32 %v2147, 0.0
        %2150 = vst [vmem:[#allocation4 + $0x40] sm:$0xff] %v2148
        %2151 = vst [vmem:[#allocation4 + $0x48] sm:$0xff] %v2149
        %v2152 = vld [vmem:[#allocation4] sm:$0xff]
        %v2153 = vld [vmem:[#allocation4 + $0x8] sm:$0xff]
        %v2154 = vld [vmem:[#allocation4 + $0x10] sm:$0xff]
        %v2155 = vld [vmem:[#allocation4 + $0x18] sm:$0xff]
        %v2156 = vld [vmem:[#allocation4 + $0x20] sm:$0xff]
        %v2157 = vld [vmem:[#allocation4 + $0x28] sm:$0xff]
        %v2158 = vld [vmem:[#allocation4 + $0x30] sm:$0xff]
        %v2159 = vld [vmem:[#allocation4 + $0x38] sm:$0xff]
        %v2160 = vld [vmem:[#allocation4 + $0x40] sm:$0xff]
        %v2161 = vld [vmem:[#allocation4 + $0x48] sm:$0xff]
        %v2162 = vpack.c.bf16 %v2153, %v2152
        %v2163 = vpack.c.bf16 %v2155, %v2154
        %v2164 = vpack.c.bf16 %v2157, %v2156
        %v2165 = vpack.c.bf16 %v2159, %v2158
        %v2166 = vpack.c.bf16 %v2161, %v2160
        %v2167 = vld [vmem:[%s7] sm:$0xff]
        %v2168 = vld [vmem:[%s7 + $0x8] sm:$0xff]
        %v2169 = vld [vmem:[%s7 + $0x10] sm:$0xf]
        %v2170 = vld [vmem:[%s7 + $0x14] sm:$0xff]
        %v2171 = vld [vmem:[%s7 + $0x1c] sm:$0xff]
        %v2172 = vld [vmem:[%s7 + $0x24] sm:$0xf]
        %v2173 = vld [vmem:[%s7 + $0x28] sm:$0xff]
        %v2174 = vld [vmem:[%s7 + $0x30] sm:$0xff]
        %v2175 = vld [vmem:[%s7 + $0x38] sm:$0xf]
        %v2176 = vld [vmem:[%s7 + $0x3c] sm:$0xff]
        %v2177 = vld [vmem:[%s7 + $0x44] sm:$0xff]
        %v2178 = vld [vmem:[%s7 + $0x4c] sm:$0xf]
        %v2179 = vld [vmem:[%s7 + $0x50] sm:$0xff]
        %v2180 = vld [vmem:[%s7 + $0x58] sm:$0xff]
        %v2181 = vld [vmem:[%s7 + $0x60] sm:$0xf]
        %v2182 = vld [vmem:[%s7 + $0x64] sm:$0xff]
        %v2183 = vld [vmem:[%s7 + $0x6c] sm:$0xff]
        %v2184 = vld [vmem:[%s7 + $0x74] sm:$0xf]
        %v2185 = vld [vmem:[%s7 + $0x78] sm:$0xff]
        %v2186 = vld [vmem:[%s7 + $0x80] sm:$0xff]
        %v2187 = vld [vmem:[%s7 + $0x88] sm:$0xf]
        %v2188 = vld [vmem:[%s7 + $0x8c] sm:$0xff]
        %v2189 = vld [vmem:[%s7 + $0x94] sm:$0xff]
        %v2190 = vld [vmem:[%s7 + $0x9c] sm:$0xf]
        %v2191 = vld [vmem:[%s7 + $0xa0] sm:$0xff]
        %v2192 = vld [vmem:[%s7 + $0xa8] sm:$0xff]
        %v2193 = vld [vmem:[%s7 + $0xb0] sm:$0xf]
        %v2194 = vld [vmem:[%s7 + $0xb4] sm:$0xff]
        %v2195 = vld [vmem:[%s7 + $0xbc] sm:$0xff]
        %v2196 = vld [vmem:[%s7 + $0xc4] sm:$0xf]
        %v2197 = vld [vmem:[%s7 + $0xc8] sm:$0xff]
        %v2198 = vld [vmem:[%s7 + $0xd0] sm:$0xff]
        %v2199 = vld [vmem:[%s7 + $0xd8] sm:$0xf]
        %v2200 = vld [vmem:[%s7 + $0xdc] sm:$0xff]
        %v2201 = vld [vmem:[%s7 + $0xe4] sm:$0xff]
        %v2202 = vld [vmem:[%s7 + $0xec] sm:$0xf]
        %v2203 = vld [vmem:[%s7 + $0xf0] sm:$0xff]
        %v2204 = vld [vmem:[%s7 + $0xf8] sm:$0xff]
        %v2205 = vld [vmem:[%s7 + $0x100] sm:$0xf]
        %v2206 = vld [vmem:[%s7 + $0x104] sm:$0xff]
        %v2207 = vld [vmem:[%s7 + $0x10c] sm:$0xff]
        %v2208 = vld [vmem:[%s7 + $0x114] sm:$0xf]
        %v2209 = vld [vmem:[%s7 + $0x118] sm:$0xff]
        %v2210 = vld [vmem:[%s7 + $0x120] sm:$0xff]
        %v2211 = vld [vmem:[%s7 + $0x128] sm:$0xf]
        %v2212 = vld [vmem:[%s7 + $0x12c] sm:$0xff]
        %v2213 = vld [vmem:[%s7 + $0x134] sm:$0xff]
        %v2214 = vld [vmem:[%s7 + $0x13c] sm:$0xf]
        %v2263 = vunpack.c.l.b16 %v2167
        %v2264 = vunpack.c.h.b16 %v2167
        %v2265 = vunpack.c.l.b16 %v2168
        %v2266 = vunpack.c.h.b16 %v2168
        %v2267 = vunpack.c.l.b16 %v2169
        %v2268 = vunpack.c.l.b16 %v2170
        %v2269 = vunpack.c.h.b16 %v2170
        %v2270 = vunpack.c.l.b16 %v2171
        %v2271 = vunpack.c.h.b16 %v2171
        %v2272 = vunpack.c.l.b16 %v2172
        %v2273 = vunpack.c.l.b16 %v2173
        %v2274 = vunpack.c.h.b16 %v2173
        %v2275 = vunpack.c.l.b16 %v2174
        %v2276 = vunpack.c.h.b16 %v2174
        %v2277 = vunpack.c.l.b16 %v2175
        %v2278 = vunpack.c.l.b16 %v2176
        %v2279 = vunpack.c.h.b16 %v2176
        %v2280 = vunpack.c.l.b16 %v2177
        %v2281 = vunpack.c.h.b16 %v2177
        %v2282 = vunpack.c.l.b16 %v2178
        %v2283 = vunpack.c.l.b16 %v2179
        %v2284 = vunpack.c.h.b16 %v2179
        %v2285 = vunpack.c.l.b16 %v2180
        %v2286 = vunpack.c.h.b16 %v2180
        %v2287 = vunpack.c.l.b16 %v2181
        %v2288 = vunpack.c.l.b16 %v2182
        %v2289 = vunpack.c.h.b16 %v2182
        %v2290 = vunpack.c.l.b16 %v2183
        %v2291 = vunpack.c.h.b16 %v2183
        %v2292 = vunpack.c.l.b16 %v2184
        %v2293 = vunpack.c.l.b16 %v2185
        %v2294 = vunpack.c.h.b16 %v2185
        %v2295 = vunpack.c.l.b16 %v2186
        %v2296 = vunpack.c.h.b16 %v2186
        %v2297 = vunpack.c.l.b16 %v2187
        %v2298 = vunpack.c.l.b16 %v2188
        %v2299 = vunpack.c.h.b16 %v2188
        %v2300 = vunpack.c.l.b16 %v2189
        %v2301 = vunpack.c.h.b16 %v2189
        %v2302 = vunpack.c.l.b16 %v2190
        %v2303 = vunpack.c.l.b16 %v2191
        %v2304 = vunpack.c.h.b16 %v2191
        %v2305 = vunpack.c.l.b16 %v2192
        %v2306 = vunpack.c.h.b16 %v2192
        %v2307 = vunpack.c.l.b16 %v2193
        %v2308 = vunpack.c.l.b16 %v2194
        %v2309 = vunpack.c.h.b16 %v2194
        %v2310 = vunpack.c.l.b16 %v2195
        %v2311 = vunpack.c.h.b16 %v2195
        %v2312 = vunpack.c.l.b16 %v2196
        %v2313 = vunpack.c.l.b16 %v2197
        %v2314 = vunpack.c.h.b16 %v2197
        %v2315 = vunpack.c.l.b16 %v2198
        %v2316 = vunpack.c.h.b16 %v2198
        %v2317 = vunpack.c.l.b16 %v2199
        %v2318 = vunpack.c.l.b16 %v2200
        %v2319 = vunpack.c.h.b16 %v2200
        %v2320 = vunpack.c.l.b16 %v2201
        %v2321 = vunpack.c.h.b16 %v2201
        %v2322 = vunpack.c.l.b16 %v2202
        %v2323 = vunpack.c.l.b16 %v2203
        %v2324 = vunpack.c.h.b16 %v2203
        %v2325 = vunpack.c.l.b16 %v2204
        %v2326 = vunpack.c.h.b16 %v2204
        %v2327 = vunpack.c.l.b16 %v2205
        %v2328 = vunpack.c.l.b16 %v2206
        %v2329 = vunpack.c.h.b16 %v2206
        %v2330 = vunpack.c.l.b16 %v2207
        %v2331 = vunpack.c.h.b16 %v2207
        %v2332 = vunpack.c.l.b16 %v2208
        %v2333 = vunpack.c.l.b16 %v2209
        %v2334 = vunpack.c.h.b16 %v2209
        %v2335 = vunpack.c.l.b16 %v2210
        %v2336 = vunpack.c.h.b16 %v2210
        %v2337 = vunpack.c.l.b16 %v2211
        %v2338 = vunpack.c.l.b16 %v2212
        %v2339 = vunpack.c.h.b16 %v2212
        %v2340 = vunpack.c.l.b16 %v2213
        %v2341 = vunpack.c.h.b16 %v2213
        %v2342 = vunpack.c.l.b16 %v2214
        %v2343 = vpack.c.b16 %v2268, %v2263
        %v2344 = vpack.c.b16 %v2269, %v2264
        %v2345 = vpack.c.b16 %v2270, %v2265
        %v2346 = vpack.c.b16 %v2271, %v2266
        %v2347 = vpack.c.b16 %v2272, %v2267
        %v2348 = vpack.c.b16 %v2278, %v2273
        %v2349 = vpack.c.b16 %v2279, %v2274
        %v2350 = vpack.c.b16 %v2280, %v2275
        %v2351 = vpack.c.b16 %v2281, %v2276
        %v2352 = vpack.c.b16 %v2282, %v2277
        %v2353 = vpack.c.b16 %v2288, %v2283
        %v2354 = vpack.c.b16 %v2289, %v2284
        %v2355 = vpack.c.b16 %v2290, %v2285
        %v2356 = vpack.c.b16 %v2291, %v2286
        %v2357 = vpack.c.b16 %v2292, %v2287
        %v2358 = vpack.c.b16 %v2298, %v2293
        %v2359 = vpack.c.b16 %v2299, %v2294
        %v2360 = vpack.c.b16 %v2300, %v2295
        %v2361 = vpack.c.b16 %v2301, %v2296
        %v2362 = vpack.c.b16 %v2302, %v2297
        %v2363 = vpack.c.b16 %v2308, %v2303
        %v2364 = vpack.c.b16 %v2309, %v2304
        %v2365 = vpack.c.b16 %v2310, %v2305
        %v2366 = vpack.c.b16 %v2311, %v2306
        %v2367 = vpack.c.b16 %v2312, %v2307
        %v2368 = vpack.c.b16 %v2318, %v2313
        %v2369 = vpack.c.b16 %v2319, %v2314
        %v2370 = vpack.c.b16 %v2320, %v2315
        %v2371 = vpack.c.b16 %v2321, %v2316
        %v2372 = vpack.c.b16 %v2322, %v2317
        %v2373 = vpack.c.b16 %v2328, %v2323
        %v2374 = vpack.c.b16 %v2329, %v2324
        %v2375 = vpack.c.b16 %v2330, %v2325
        %v2376 = vpack.c.b16 %v2331, %v2326
        %v2377 = vpack.c.b16 %v2332, %v2327
        %v2378 = vpack.c.b16 %v2338, %v2333
        %v2379 = vpack.c.b16 %v2339, %v2334
        %v2380 = vpack.c.b16 %v2340, %v2335
        %v2381 = vpack.c.b16 %v2341, %v2336
        %v2382 = vpack.c.b16 %v2342, %v2337
        %2423 = vmatprep.subr.bf16.mxu0 %v2344
        %2424 = vmatpush1.bf16.msra.mxu0 %v2343
        %2425 = vmatprep.subr.bf16.mxu0 %v2349
        %2426 = vmatpush1.bf16.msra.mxu0 %v2348
        %2427 = vmatprep.subr.bf16.mxu0 %v2354
        %2428 = vmatpush1.bf16.msra.mxu0 %v2353
        %2429 = vmatprep.subr.bf16.mxu0 %v2359
        %2430 = vmatpush1.bf16.msra.mxu0 %v2358
        %2431 = vmatprep.subr.bf16.mxu0 %v2364
        %2432 = vmatpush1.bf16.msra.mxu0 %v2363
        %2433 = vmatprep.subr.bf16.mxu0 %v2369
        %2434 = vmatpush1.bf16.msra.mxu0 %v2368
        %2435 = vmatprep.subr.bf16.mxu0 %v2374
        %2436 = vmatpush1.bf16.msra.mxu0 %v2373
        %2437 = vmatprep.subr.bf16.mxu0 %v2379
        %2438 = vmatpush1.bf16.msra.mxu0 %v2378
        %2439 = vmatprep.subr.bf16.mxu0 0
        %2440 = vmatpush1.bf16.msra.mxu0 0
        %2441 = vmatprep.subr.bf16.mxu0 0
        %2442 = vmatpush1.bf16.msra.mxu0 0
        %2443 = vmatprep.subr.bf16.mxu0 0
        %2444 = vmatpush1.bf16.msra.mxu0 0
        %2445 = vmatprep.subr.bf16.mxu0 0
        %2446 = vmatpush1.bf16.msra.mxu0 0
        %2447 = vmatprep.subr.bf16.mxu0 0
        %2448 = vmatpush1.bf16.msra.mxu0 0
        %2449 = vmatprep.subr.bf16.mxu0 0
        %2450 = vmatpush1.bf16.msra.mxu0 0
        %2451 = vmatprep.subr.bf16.mxu0 0
        %2452 = vmatpush1.bf16.msra.mxu0 0
        %2453 = vmatprep.subr.bf16.mxu0 0
        %2454 = vmatpush1.bf16.msra.mxu0 0
        %2455 = vmatprep.mubr.bf16.mxu0 0
        %2456 = vmatmul.mubr.bf16.gmra.mrb[0].mxu0 %v2162
        %v2457 = vpop.f32.mrb[0].mxu0
        %v2458 = vpop.f32.mrb[0].mxu0
        %v2459 = vadd.f32 0.0, %v2458
        %v2460 = vpop.f32.mrb[0].mxu0
        %v2461 = vpop.f32.mrb[0].mxu0
        %v2462 = vadd.f32 0.0, %v2461
        %2463 = vmatprep.mubr.bf16.mxu0 0
        %2464 = vmatmul.mubr.bf16.gmra.mrb[0].mxu0 %v2163
        %v2465 = vpop.f32.mrb[0].mxu0
        %v2466 = vadd.f32 0.0, %v2465
        %v2467 = vpop.f32.mrb[0].mxu0
        %v2468 = vadd.f32 0.0, %v2467
        %v2469 = vpop.f32.mrb[0].mxu0
        %v2470 = vadd.f32 0.0, %v2469
        %v2471 = vpop.f32.mrb[0].mxu0
        %v2472 = vadd.f32 0.0, %v2471
        %2473 = vmatprep.mubr.bf16.mxu0 0
        %2474 = vmatmul.mubr.bf16.gmra.mrb[0].mxu0 %v2164
        %v2475 = vpop.f32.mrb[0].mxu0
        %v2476 = vadd.f32 0.0, %v2475
        %v2477 = vpop.f32.mrb[0].mxu0
        %v2478 = vadd.f32 0.0, %v2477
        %v2479 = vpop.f32.mrb[0].mxu0
        %v2480 = vadd.f32 0.0, %v2479
        %v2481 = vpop.f32.mrb[0].mxu0
        %v2482 = vadd.f32 0.0, %v2481
        %2483 = vmatprep.mubr.bf16.mxu0 0
        %2484 = vmatmul.mubr.bf16.gmra.mrb[0].mxu0 %v2165
        %v2485 = vpop.f32.mrb[0].mxu0
        %v2486 = vadd.f32 0.0, %v2485
        %v2487 = vpop.f32.mrb[0].mxu0
        %v2488 = vadd.f32 0.0, %v2487
        %v2489 = vpop.f32.mrb[0].mxu0
        %v2490 = vadd.f32 0.0, %v2489
        %v2491 = vpop.f32.mrb[0].mxu0
        %v2492 = vadd.f32 0.0, %v2491
        %2493 = vmatprep.mubr.bf16.mxu0 0
        %2494 = vmatmul.mubr.bf16.gmra.mrb[0].mxu0 %v2166
        %v2495 = vpop.f32.mrb[0].mxu0
        %v2496 = vadd.f32 0.0, %v2495
        %v2497 = vpop.f32.mrb[0].mxu0
        %v2498 = vadd.f32 0.0, %v2497
        %v2499 = vpop.f32.mrb[0].mxu0
        %v2500 = vadd.f32 0.0, %v2499
        %v2501 = vpop.f32.mrb[0].mxu0
        %v2502 = vadd.f32 0.0, %v2501
        %2503 = vdwg.mxu0
        %2504 = vmatprep.subr.bf16.mxu0 %v2346
        %2505 = vmatpush1.bf16.msra.mxu0 %v2345
        %2506 = vmatprep.subr.bf16.mxu0 %v2351
        %2507 = vmatpush1.bf16.msra.mxu0 %v2350
        %2508 = vmatprep.subr.bf16.mxu0 %v2356
        %2509 = vmatpush1.bf16.msra.mxu0 %v2355
        %2510 = vmatprep.subr.bf16.mxu0 %v2361
        %2511 = vmatpush1.bf16.msra.mxu0 %v2360
        %2512 = vmatprep.subr.bf16.mxu0 %v2366
        %2513 = vmatpush1.bf16.msra.mxu0 %v2365
        %2514 = vmatprep.subr.bf16.mxu0 %v2371
        %2515 = vmatpush1.bf16.msra.mxu0 %v2370
        %2516 = vmatprep.subr.bf16.mxu0 %v2376
        %2517 = vmatpush1.bf16.msra.mxu0 %v2375
        %2518 = vmatprep.subr.bf16.mxu0 %v2381
        %2519 = vmatpush1.bf16.msra.mxu0 %v2380
        %2520 = vmatprep.subr.bf16.mxu0 0
        %2521 = vmatpush1.bf16.msra.mxu0 0
        %2522 = vmatprep.subr.bf16.mxu0 0
        %2523 = vmatpush1.bf16.msra.mxu0 0
        %2524 = vmatprep.subr.bf16.mxu0 0
        %2525 = vmatpush1.bf16.msra.mxu0 0
        %2526 = vmatprep.subr.bf16.mxu0 0
        %2527 = vmatpush1.bf16.msra.mxu0 0
        %2528 = vmatprep.subr.bf16.mxu0 0
        %2529 = vmatpush1.bf16.msra.mxu0 0
        %2530 = vmatprep.subr.bf16.mxu0 0
        %2531 = vmatpush1.bf16.msra.mxu0 0
        %2532 = vmatprep.subr.bf16.mxu0 0
        %2533 = vmatpush1.bf16.msra.mxu0 0
        %2534 = vmatprep.subr.bf16.mxu0 0
        %2535 = vmatpush1.bf16.msra.mxu0 0
        %2536 = vmatprep.mubr.bf16.mxu0 0
        %2537 = vmatmul.mubr.bf16.gmra.mrb[0].mxu0 %v2162
        %v2538 = vpop.f32.mrb[0].mxu0
        %v2539 = vadd.f32 0.0, %v2538
        %v2540 = vpop.f32.mrb[0].mxu0
        %v2541 = vadd.f32 0.0, %v2540
        %v2542 = vpop.f32.mrb[0].mxu0
        %v2543 = vadd.f32 0.0, %v2542
        %v2544 = vpop.f32.mrb[0].mxu0
        %v2545 = vadd.f32 0.0, %v2544
        %2546 = vmatprep.mubr.bf16.mxu0 0
        %2547 = vmatmul.mubr.bf16.gmra.mrb[0].mxu0 %v2163
        %v2548 = vpop.f32.mrb[0].mxu0
        %v2549 = vadd.f32 0.0, %v2548
        %v2550 = vpop.f32.mrb[0].mxu0
        %v2551 = vadd.f32 0.0, %v2550
        %v2552 = vpop.f32.mrb[0].mxu0
        %v2553 = vadd.f32 0.0, %v2552
        %v2554 = vpop.f32.mrb[0].mxu0
        %v2555 = vadd.f32 0.0, %v2554
        %2556 = vmatprep.mubr.bf16.mxu0 0
        %2557 = vmatmul.mubr.bf16.gmra.mrb[0].mxu0 %v2164
        %v2558 = vpop.f32.mrb[0].mxu0
        %v2559 = vadd.f32 0.0, %v2558
        %v2560 = vpop.f32.mrb[0].mxu0
        %v2561 = vadd.f32 0.0, %v2560
        %v2562 = vpop.f32.mrb[0].mxu0
        %v2563 = vadd.f32 0.0, %v2562
        %v2564 = vpop.f32.mrb[0].mxu0
        %v2565 = vadd.f32 0.0, %v2564
        %2566 = vmatprep.mubr.bf16.mxu0 0
        %2567 = vmatmul.mubr.bf16.gmra.mrb[0].mxu0 %v2165
        %v2568 = vpop.f32.mrb[0].mxu0
        %v2569 = vadd.f32 0.0, %v2568
        %v2570 = vpop.f32.mrb[0].mxu0
        %v2571 = vadd.f32 0.0, %v2570
        %v2572 = vpop.f32.mrb[0].mxu0
        %v2573 = vadd.f32 0.0, %v2572
        %v2574 = vpop.f32.mrb[0].mxu0
        %v2575 = vadd.f32 0.0, %v2574
        %2576 = vmatprep.mubr.bf16.mxu0 0
        %2577 = vmatmul.mubr.bf16.gmra.mrb[0].mxu0 %v2166
        %v2578 = vpop.f32.mrb[0].mxu0
        %v2579 = vadd.f32 0.0, %v2578
        %v2580 = vpop.f32.mrb[0].mxu0
        %v2581 = vadd.f32 0.0, %v2580
        %v2582 = vpop.f32.mrb[0].mxu0
        %v2583 = vadd.f32 0.0, %v2582
        %v2584 = vpop.f32.mrb[0].mxu0
        %v2585 = vadd.f32 0.0, %v2584
        %2586 = vdwg.mxu0
        %2587 = vmatprep.subr.bf16.mxu0 0
        %2588 = vmatpush1.bf16.msra.mxu0 %v2347
        %2589 = vmatprep.subr.bf16.mxu0 0
        %2590 = vmatpush1.bf16.msra.mxu0 %v2352
        %2591 = vmatprep.subr.bf16.mxu0 0
        %2592 = vmatpush1.bf16.msra.mxu0 %v2357
        %2593 = vmatprep.subr.bf16.mxu0 0
        %2594 = vmatpush1.bf16.msra.mxu0 %v2362
        %2595 = vmatprep.subr.bf16.mxu0 0
        %2596 = vmatpush1.bf16.msra.mxu0 %v2367
        %2597 = vmatprep.subr.bf16.mxu0 0
        %2598 = vmatpush1.bf16.msra.mxu0 %v2372
        %2599 = vmatprep.subr.bf16.mxu0 0
        %2600 = vmatpush1.bf16.msra.mxu0 %v2377
        %2601 = vmatprep.subr.bf16.mxu0 0
        %2602 = vmatpush1.bf16.msra.mxu0 %v2382
        %2603 = vmatprep.subr.bf16.mxu0 0
        %2604 = vmatpush1.bf16.msra.mxu0 0
        %2605 = vmatprep.subr.bf16.mxu0 0
        %2606 = vmatpush1.bf16.msra.mxu0 0
        %2607 = vmatprep.subr.bf16.mxu0 0
        %2608 = vmatpush1.bf16.msra.mxu0 0
        %2609 = vmatprep.subr.bf16.mxu0 0
        %2610 = vmatpush1.bf16.msra.mxu0 0
        %2611 = vmatprep.subr.bf16.mxu0 0
        %2612 = vmatpush1.bf16.msra.mxu0 0
        %2613 = vmatprep.subr.bf16.mxu0 0
        %2614 = vmatpush1.bf16.msra.mxu0 0
        %2615 = vmatprep.subr.bf16.mxu0 0
        %2616 = vmatpush1.bf16.msra.mxu0 0
        %2617 = vmatprep.subr.bf16.mxu0 0
        %2618 = vmatpush1.bf16.msra.mxu0 0
        %2619 = vmatprep.mubr.bf16.mxu0 0
        %2620 = vmatmul.mubr.bf16.gmra.mrb[0].mxu0 %v2162
        %v2621 = vpop.f32.mrb[0].mxu0
        %v2622 = vadd.f32 0.0, %v2621
        %v2623 = vpop.f32.mrb[0].mxu0
        %v2624 = vpop.f32.mrb[0].mxu0
        %v2625 = vadd.f32 0.0, %v2624
        %v2626 = vpop.f32.mrb[0].mxu0
        %2627 = vmatprep.mubr.bf16.mxu0 0
        %2628 = vmatmul.mubr.bf16.gmra.mrb[0].mxu0 %v2163
        %v2629 = vpop.f32.mrb[0].mxu0
        %v2630 = vadd.f32 0.0, %v2629
        %v2631 = vpop.f32.mrb[0].mxu0
        %v2632 = vpop.f32.mrb[0].mxu0
        %v2633 = vadd.f32 0.0, %v2632
        %v2634 = vpop.f32.mrb[0].mxu0
        %2635 = vmatprep.mubr.bf16.mxu0 0
        %2636 = vmatmul.mubr.bf16.gmra.mrb[0].mxu0 %v2164
        %v2637 = vpop.f32.mrb[0].mxu0
        %v2638 = vadd.f32 0.0, %v2637
        %v2639 = vpop.f32.mrb[0].mxu0
        %v2640 = vpop.f32.mrb[0].mxu0
        %v2641 = vadd.f32 0.0, %v2640
        %v2642 = vpop.f32.mrb[0].mxu0
        %2643 = vmatprep.mubr.bf16.mxu0 0
        %2644 = vmatmul.mubr.bf16.gmra.mrb[0].mxu0 %v2165
        %v2645 = vpop.f32.mrb[0].mxu0
        %v2646 = vadd.f32 0.0, %v2645
        %v2647 = vpop.f32.mrb[0].mxu0
        %v2648 = vpop.f32.mrb[0].mxu0
        %v2649 = vadd.f32 0.0, %v2648
        %v2650 = vpop.f32.mrb[0].mxu0
        %2651 = vmatprep.mubr.bf16.mxu0 0
        %2652 = vmatmul.mubr.bf16.gmra.mrb[0].mxu0 %v2166
        %v2653 = vpop.f32.mrb[0].mxu0
        %v2654 = vpop.f32.mrb[0].mxu0
        %v2655 = vpop.f32.mrb[0].mxu0
        %v2656 = vpop.f32.mrb[0].mxu0
        %2657 = vdwg.mxu0
        %v2658 = vld [vmem:[%s8] sm:$0x1]
        %v2660 = vlaneseq
        %v2661 = vshrl.u32 %v2660, 7
        %v2662 = vsub.s32 0, %v2661
        %v2663 = vrot.slane %v2658, %v2662
        %v2665 = vadd.f32 %v2459, %v2663
        %v2666 = vadd.f32 %v2462, %v2663
        %v2667 = vmax.f32 %v2665, 0.0
        %v2668 = vmax.f32 %v2666, 0.0
        %2669 = vst [vmem:[#allocation5] sm:$0xff] %v2667
        %2670 = vst [vmem:[#allocation5 + $0x8] sm:$0xff] %v2668
        %v2671 = vld [vmem:[%s8] sm:$0x1]
        %v2673 = vlaneseq
        %v2674 = vshrl.u32 %v2673, 7
        %v2675 = vsub.s32 0, %v2674
        %v2676 = vrot.slane %v2671, %v2675
        %v2678 = vadd.f32 %v2539, %v2676
        %v2679 = vadd.f32 %v2543, %v2676
        %v2680 = vmax.f32 %v2678, 0.0
        %v2681 = vmax.f32 %v2679, 0.0
        %2682 = vst [vmem:[#allocation5 + $0x10] sm:$0xff] %v2680
        %2683 = vst [vmem:[#allocation5 + $0x18] sm:$0xff] %v2681
        %v2684 = vadd.f32 %v2466, %v2541
        %v2685 = vadd.f32 %v2470, %v2545
        %v2686 = vld [vmem:[%s8] sm:$0x1]
        %v2688 = vlaneseq
        %v2689 = vshrl.u32 %v2688, 7
        %v2690 = vsub.s32 0, %v2689
        %v2691 = vrot.slane %v2686, %v2690
        %v2693 = vadd.f32 %v2684, %v2691
        %v2694 = vadd.f32 %v2685, %v2691
        %v2695 = vmax.f32 %v2693, 0.0
        %v2696 = vmax.f32 %v2694, 0.0
        %2697 = vst [vmem:[#allocation5 + $0x20] sm:$0xff] %v2695
        %2698 = vst [vmem:[#allocation5 + $0x28] sm:$0xff] %v2696
        %v2699 = vadd.f32 %v2468, %v2622
        %v2700 = vadd.f32 %v2472, %v2625
        %v2701 = vld [vmem:[%s8] sm:$0x1]
        %v2703 = vlaneseq
        %v2704 = vshrl.u32 %v2703, 7
        %v2705 = vsub.s32 0, %v2704
        %v2706 = vrot.slane %v2701, %v2705
        %v2708 = vadd.f32 %v2699, %v2706
        %v2709 = vadd.f32 %v2700, %v2706
        %v2710 = vmax.f32 %v2708, 0.0
        %v2711 = vmax.f32 %v2709, 0.0
        %2712 = vst [vmem:[#allocation5 + $0x30] sm:$0xff] %v2710
        %2713 = vst [vmem:[#allocation5 + $0x38] sm:$0xff] %v2711
        %v2714 = vld [vmem:[%s8] sm:$0x1]
        %v2716 = vlaneseq
        %v2717 = vshrl.u32 %v2716, 7
        %v2718 = vsub.s32 0, %v2717
        %v2719 = vrot.slane %v2714, %v2718
        %v2721 = vadd.f32 %v2549, %v2719
        %v2722 = vadd.f32 %v2553, %v2719
        %v2723 = vmax.f32 %v2721, 0.0
        %v2724 = vmax.f32 %v2722, 0.0
        %2725 = vst [vmem:[#allocation5 + $0x40] sm:$0xff] %v2723
        %2726 = vst [vmem:[#allocation5 + $0x48] sm:$0xff] %v2724
        %v2727 = vadd.f32 %v2476, %v2551
        %v2728 = vadd.f32 %v2480, %v2555
        %v2729 = vld [vmem:[%s8] sm:$0x1]
        %v2731 = vlaneseq
        %v2732 = vshrl.u32 %v2731, 7
        %v2733 = vsub.s32 0, %v2732
        %v2734 = vrot.slane %v2729, %v2733
        %v2736 = vadd.f32 %v2727, %v2734
        %v2737 = vadd.f32 %v2728, %v2734
        %v2738 = vmax.f32 %v2736, 0.0
        %v2739 = vmax.f32 %v2737, 0.0
        %2740 = vst [vmem:[#allocation5 + $0x50] sm:$0xff] %v2738
        %2741 = vst [vmem:[#allocation5 + $0x58] sm:$0xff] %v2739
        %v2742 = vadd.f32 %v2478, %v2630
        %v2743 = vadd.f32 %v2482, %v2633
        %v2744 = vld [vmem:[%s8] sm:$0x1]
        %v2746 = vlaneseq
        %v2747 = vshrl.u32 %v2746, 7
        %v2748 = vsub.s32 0, %v2747
        %v2749 = vrot.slane %v2744, %v2748
        %v2751 = vadd.f32 %v2742, %v2749
        %v2752 = vadd.f32 %v2743, %v2749
        %v2753 = vmax.f32 %v2751, 0.0
        %v2754 = vmax.f32 %v2752, 0.0
        %2755 = vst [vmem:[#allocation5 + $0x60] sm:$0xff] %v2753
        %2756 = vst [vmem:[#allocation5 + $0x68] sm:$0xff] %v2754
        %v2757 = vld [vmem:[%s8] sm:$0x1]
        %v2759 = vlaneseq
        %v2760 = vshrl.u32 %v2759, 7
        %v2761 = vsub.s32 0, %v2760
        %v2762 = vrot.slane %v2757, %v2761
        %v2764 = vadd.f32 %v2559, %v2762
        %v2765 = vadd.f32 %v2563, %v2762
        %v2766 = vmax.f32 %v2764, 0.0
        %v2767 = vmax.f32 %v2765, 0.0
        %2768 = vst [vmem:[#allocation5 + $0x70] sm:$0xff] %v2766
        %2769 = vst [vmem:[#allocation5 + $0x78] sm:$0xff] %v2767
        %v2770 = vadd.f32 %v2486, %v2561
        %v2771 = vadd.f32 %v2490, %v2565
        %v2772 = vld [vmem:[%s8] sm:$0x1]
        %v2774 = vlaneseq
        %v2775 = vshrl.u32 %v2774, 7
        %v2776 = vsub.s32 0, %v2775
        %v2777 = vrot.slane %v2772, %v2776
        %v2779 = vadd.f32 %v2770, %v2777
        %v2780 = vadd.f32 %v2771, %v2777
        %v2781 = vmax.f32 %v2779, 0.0
        %v2782 = vmax.f32 %v2780, 0.0
        %2783 = vst [vmem:[#allocation5 + $0x80] sm:$0xff] %v2781
        %2784 = vst [vmem:[#allocation5 + $0x88] sm:$0xff] %v2782
        %v2785 = vadd.f32 %v2488, %v2638
        %v2786 = vadd.f32 %v2492, %v2641
        %v2787 = vld [vmem:[%s8] sm:$0x1]
        %v2789 = vlaneseq
        %v2790 = vshrl.u32 %v2789, 7
        %v2791 = vsub.s32 0, %v2790
        %v2792 = vrot.slane %v2787, %v2791
        %v2794 = vadd.f32 %v2785, %v2792
        %v2795 = vadd.f32 %v2786, %v2792
        %v2796 = vmax.f32 %v2794, 0.0
        %v2797 = vmax.f32 %v2795, 0.0
        %2798 = vst [vmem:[#allocation5 + $0x90] sm:$0xff] %v2796
        %2799 = vst [vmem:[#allocation5 + $0x98] sm:$0xff] %v2797
        %v2800 = vld [vmem:[%s8] sm:$0x1]
        %v2802 = vlaneseq
        %v2803 = vshrl.u32 %v2802, 7
        %v2804 = vsub.s32 0, %v2803
        %v2805 = vrot.slane %v2800, %v2804
        %v2807 = vadd.f32 %v2569, %v2805
        %v2808 = vadd.f32 %v2573, %v2805
        %v2809 = vmax.f32 %v2807, 0.0
        %v2810 = vmax.f32 %v2808, 0.0
        %2811 = vst [vmem:[#allocation5 + $0xa0] sm:$0xff] %v2809
        %2812 = vst [vmem:[#allocation5 + $0xa8] sm:$0xff] %v2810
        %v2813 = vadd.f32 %v2496, %v2571
        %v2814 = vadd.f32 %v2500, %v2575
        %v2815 = vld [vmem:[%s8] sm:$0x1]
        %v2817 = vlaneseq
        %v2818 = vshrl.u32 %v2817, 7
        %v2819 = vsub.s32 0, %v2818
        %v2820 = vrot.slane %v2815, %v2819
        %v2822 = vadd.f32 %v2813, %v2820
        %v2823 = vadd.f32 %v2814, %v2820
        %v2824 = vmax.f32 %v2822, 0.0
        %v2825 = vmax.f32 %v2823, 0.0
        %2826 = vst [vmem:[#allocation5 + $0xb0] sm:$0xff] %v2824
        %2827 = vst [vmem:[#allocation5 + $0xb8] sm:$0xff] %v2825
        %v2828 = vadd.f32 %v2498, %v2646
        %v2829 = vadd.f32 %v2502, %v2649
        %v2830 = vld [vmem:[%s8] sm:$0x1]
        %v2832 = vlaneseq
        %v2833 = vshrl.u32 %v2832, 7
        %v2834 = vsub.s32 0, %v2833
        %v2835 = vrot.slane %v2830, %v2834
        %v2837 = vadd.f32 %v2828, %v2835
        %v2838 = vadd.f32 %v2829, %v2835
        %v2839 = vmax.f32 %v2837, 0.0
        %v2840 = vmax.f32 %v2838, 0.0
        %2841 = vst [vmem:[#allocation5 + $0xc0] sm:$0xff] %v2839
        %2842 = vst [vmem:[#allocation5 + $0xc8] sm:$0xff] %v2840
        %v2843 = vld [vmem:[%s8] sm:$0x1]
        %v2845 = vlaneseq
        %v2846 = vshrl.u32 %v2845, 7
        %v2847 = vsub.s32 0, %v2846
        %v2848 = vrot.slane %v2843, %v2847
        %v2850 = vadd.f32 %v2579, %v2848
        %v2851 = vadd.f32 %v2583, %v2848
        %v2852 = vmax.f32 %v2850, 0.0
        %v2853 = vmax.f32 %v2851, 0.0
        %2854 = vst [vmem:[#allocation5 + $0xd0] sm:$0xff] %v2852
        %2855 = vst [vmem:[#allocation5 + $0xd8] sm:$0xff] %v2853
        %v2856 = vld [vmem:[%s8] sm:$0x1]
        %v2858 = vlaneseq
        %v2859 = vshrl.u32 %v2858, 7
        %v2860 = vsub.s32 0, %v2859
        %v2861 = vrot.slane %v2856, %v2860
        %v2863 = vadd.f32 %v2581, %v2861
        %v2864 = vadd.f32 %v2585, %v2861
        %v2865 = vmax.f32 %v2863, 0.0
        %v2866 = vmax.f32 %v2864, 0.0
        %2867 = vst [vmem:[#allocation5 + $0xe0] sm:$0xff] %v2865
        %2868 = vst [vmem:[#allocation5 + $0xe8] sm:$0xff] %v2866
        %v2869 = vld [vmem:[#allocation5] sm:$0xff]
        %v2870 = vld [vmem:[#allocation5 + $0x8] sm:$0xff]
        %v2871 = vld [vmem:[#allocation5 + $0x10] sm:$0xff]
        %v2872 = vld [vmem:[#allocation5 + $0x18] sm:$0xff]
        %v2873 = vld [vmem:[#allocation5 + $0x20] sm:$0xff]
        %v2874 = vld [vmem:[#allocation5 + $0x28] sm:$0xff]
        %v2875 = vld [vmem:[#allocation5 + $0x30] sm:$0xff]
        %v2876 = vld [vmem:[#allocation5 + $0x38] sm:$0xff]
        %v2877 = vld [vmem:[#allocation5 + $0x40] sm:$0xff]
        %v2878 = vld [vmem:[#allocation5 + $0x48] sm:$0xff]
        %v2879 = vld [vmem:[#allocation5 + $0x50] sm:$0xff]
        %v2880 = vld [vmem:[#allocation5 + $0x58] sm:$0xff]
        %v2881 = vld [vmem:[#allocation5 + $0x60] sm:$0xff]
        %v2882 = vld [vmem:[#allocation5 + $0x68] sm:$0xff]
        %v2883 = vld [vmem:[#allocation5 + $0x70] sm:$0xff]
        %v2884 = vld [vmem:[#allocation5 + $0x78] sm:$0xff]
        %v2885 = vld [vmem:[#allocation5 + $0x80] sm:$0xff]
        %v2886 = vld [vmem:[#allocation5 + $0x88] sm:$0xff]
        %v2887 = vld [vmem:[#allocation5 + $0x90] sm:$0xff]
        %v2888 = vld [vmem:[#allocation5 + $0x98] sm:$0xff]
        %v2889 = vld [vmem:[#allocation5 + $0xa0] sm:$0xff]
        %v2890 = vld [vmem:[#allocation5 + $0xa8] sm:$0xff]
        %v2891 = vld [vmem:[#allocation5 + $0xb0] sm:$0xff]
        %v2892 = vld [vmem:[#allocation5 + $0xb8] sm:$0xff]
        %v2893 = vld [vmem:[#allocation5 + $0xc0] sm:$0xff]
        %v2894 = vld [vmem:[#allocation5 + $0xc8] sm:$0xff]
        %v2895 = vld [vmem:[#allocation5 + $0xd0] sm:$0xff]
        %v2896 = vld [vmem:[#allocation5 + $0xd8] sm:$0xff]
        %v2897 = vld [vmem:[#allocation5 + $0xe0] sm:$0xff]
        %v2898 = vld [vmem:[#allocation5 + $0xe8] sm:$0xff]
        %v2899 = vpack.c.bf16 %v2870, %v2869
        %v2900 = vpack.c.bf16 %v2872, %v2871
        %v2901 = vpack.c.bf16 %v2874, %v2873
        %v2902 = vpack.c.bf16 %v2876, %v2875
        %v2903 = vpack.c.bf16 %v2878, %v2877
        %v2904 = vpack.c.bf16 %v2880, %v2879
        %v2905 = vpack.c.bf16 %v2882, %v2881
        %v2906 = vpack.c.bf16 %v2884, %v2883
        %v2907 = vpack.c.bf16 %v2886, %v2885
        %v2908 = vpack.c.bf16 %v2888, %v2887
        %v2909 = vpack.c.bf16 %v2890, %v2889
        %v2910 = vpack.c.bf16 %v2892, %v2891
        %v2911 = vpack.c.bf16 %v2894, %v2893
        %v2912 = vpack.c.bf16 %v2896, %v2895
        %v2913 = vpack.c.bf16 %v2898, %v2897
        %v2914 = vld [vmem:[%s9] sm:$0xff]
        %v2915 = vld [vmem:[%s9 + $0x8] sm:$0xff]
        %v2916 = vld [vmem:[%s9 + $0x10] sm:$0xff]
        %v2917 = vld [vmem:[%s9 + $0x18] sm:$0xff]
        %v2918 = vld [vmem:[%s9 + $0x20] sm:$0xff]
        %v2919 = vld [vmem:[%s9 + $0x28] sm:$0xff]
        %v2920 = vld [vmem:[%s9 + $0x30] sm:$0xff]
        %v2921 = vld [vmem:[%s9 + $0x38] sm:$0xff]
        %v2922 = vld [vmem:[%s9 + $0x40] sm:$0xff]
        %v2923 = vld [vmem:[%s9 + $0x48] sm:$0xff]
        %v2924 = vld [vmem:[%s9 + $0x50] sm:$0xff]
        %v2925 = vld [vmem:[%s9 + $0x58] sm:$0xff]
        %v2926 = vld [vmem:[%s9 + $0x60] sm:$0xff]
        %v2927 = vld [vmem:[%s9 + $0x68] sm:$0xff]
        %v2928 = vld [vmem:[%s9 + $0x70] sm:$0xff]
        %v2929 = vld [vmem:[%s9 + $0x78] sm:$0xff]
        %v2946 = vunpack.c.l.b16 %v2914
        %v2947 = vunpack.c.h.b16 %v2914
        %v2948 = vunpack.c.l.b16 %v2915
        %v2949 = vunpack.c.h.b16 %v2915
        %v2950 = vunpack.c.l.b16 %v2916
        %v2951 = vunpack.c.h.b16 %v2916
        %v2952 = vunpack.c.l.b16 %v2917
        %v2953 = vunpack.c.h.b16 %v2917
        %v2954 = vunpack.c.l.b16 %v2918
        %v2955 = vunpack.c.h.b16 %v2918
        %v2956 = vunpack.c.l.b16 %v2919
        %v2957 = vunpack.c.h.b16 %v2919
        %v2958 = vunpack.c.l.b16 %v2920
        %v2959 = vunpack.c.h.b16 %v2920
        %v2960 = vunpack.c.l.b16 %v2921
        %v2961 = vunpack.c.h.b16 %v2921
        %v2962 = vunpack.c.l.b16 %v2922
        %v2963 = vunpack.c.h.b16 %v2922
        %v2964 = vunpack.c.l.b16 %v2923
        %v2965 = vunpack.c.h.b16 %v2923
        %v2966 = vunpack.c.l.b16 %v2924
        %v2967 = vunpack.c.h.b16 %v2924
        %v2968 = vunpack.c.l.b16 %v2925
        %v2969 = vunpack.c.h.b16 %v2925
        %v2970 = vunpack.c.l.b16 %v2926
        %v2971 = vunpack.c.h.b16 %v2926
        %v2972 = vunpack.c.l.b16 %v2927
        %v2973 = vunpack.c.h.b16 %v2927
        %v2974 = vunpack.c.l.b16 %v2928
        %v2975 = vunpack.c.h.b16 %v2928
        %v2976 = vunpack.c.l.b16 %v2929
        %v2977 = vunpack.c.h.b16 %v2929
        %v2978 = vpack.c.b16 %v2948, %v2946
        %v2979 = vpack.c.b16 %v2949, %v2947
        %v2980 = vpack.c.b16 %v2952, %v2950
        %v2981 = vpack.c.b16 %v2953, %v2951
        %v2982 = vpack.c.b16 %v2956, %v2954
        %v2983 = vpack.c.b16 %v2957, %v2955
        %v2984 = vpack.c.b16 %v2960, %v2958
        %v2985 = vpack.c.b16 %v2961, %v2959
        %v2986 = vpack.c.b16 %v2964, %v2962
        %v2987 = vpack.c.b16 %v2965, %v2963
        %v2988 = vpack.c.b16 %v2968, %v2966
        %v2989 = vpack.c.b16 %v2969, %v2967
        %v2990 = vpack.c.b16 %v2972, %v2970
        %v2991 = vpack.c.b16 %v2973, %v2971
        %v2992 = vpack.c.b16 %v2976, %v2974
        %v2993 = vpack.c.b16 %v2977, %v2975
        %3010 = vmatprep.subr.bf16.mxu0 %v2979
        %3011 = vmatpush1.bf16.msra.mxu0 %v2978
        %3012 = vmatprep.subr.bf16.mxu0 %v2981
        %3013 = vmatpush1.bf16.msra.mxu0 %v2980
        %3014 = vmatprep.subr.bf16.mxu0 %v2983
        %3015 = vmatpush1.bf16.msra.mxu0 %v2982
        %3016 = vmatprep.subr.bf16.mxu0 %v2985
        %3017 = vmatpush1.bf16.msra.mxu0 %v2984
        %3018 = vmatprep.subr.bf16.mxu0 %v2987
        %3019 = vmatpush1.bf16.msra.mxu0 %v2986
        %3020 = vmatprep.subr.bf16.mxu0 %v2989
        %3021 = vmatpush1.bf16.msra.mxu0 %v2988
        %3022 = vmatprep.subr.bf16.mxu0 %v2991
        %3023 = vmatpush1.bf16.msra.mxu0 %v2990
        %3024 = vmatprep.subr.bf16.mxu0 %v2993
        %3025 = vmatpush1.bf16.msra.mxu0 %v2992
        %3026 = vmatprep.subr.bf16.mxu0 0
        %3027 = vmatpush1.bf16.msra.mxu0 0
        %3028 = vmatprep.subr.bf16.mxu0 0
        %3029 = vmatpush1.bf16.msra.mxu0 0
        %3030 = vmatprep.subr.bf16.mxu0 0
        %3031 = vmatpush1.bf16.msra.mxu0 0
        %3032 = vmatprep.subr.bf16.mxu0 0
        %3033 = vmatpush1.bf16.msra.mxu0 0
        %3034 = vmatprep.subr.bf16.mxu0 0
        %3035 = vmatpush1.bf16.msra.mxu0 0
        %3036 = vmatprep.subr.bf16.mxu0 0
        %3037 = vmatpush1.bf16.msra.mxu0 0
        %3038 = vmatprep.subr.bf16.mxu0 0
        %3039 = vmatpush1.bf16.msra.mxu0 0
        %3040 = vmatprep.subr.bf16.mxu0 0
        %3041 = vmatpush1.bf16.msra.mxu0 0
        %3042 = vmatprep.mubr.bf16.mxu0 0
        %3043 = vmatmul.mubr.bf16.gmra.mrb[0].mxu0 %v2899
        %v3044 = vpop.f32.mrb[0].mxu0
        %v3045 = vpop.f32.mrb[0].mxu0
        %v3046 = vadd.f32 0.0, %v3045
        %v3047 = vpop.f32.mrb[0].mxu0
        %v3048 = vpop.f32.mrb[0].mxu0
        %v3049 = vadd.f32 0.0, %v3048
        %3050 = vmatprep.mubr.bf16.mxu0 0
        %3051 = vmatmul.mubr.bf16.gmra.mrb[0].mxu0 %v2900
        %v3052 = vpop.f32.mrb[0].mxu0
        %v3053 = vadd.f32 0.0, %v3052
        %v3054 = vpop.f32.mrb[0].mxu0
        %v3055 = vadd.f32 0.0, %v3054
        %v3056 = vpop.f32.mrb[0].mxu0
        %v3057 = vadd.f32 0.0, %v3056
        %v3058 = vpop.f32.mrb[0].mxu0
        %v3059 = vadd.f32 0.0, %v3058
        %3060 = vmatprep.mubr.bf16.mxu0 0
        %3061 = vmatmul.mubr.bf16.gmra.mrb[0].mxu0 %v2901
        %v3062 = vpop.f32.mrb[0].mxu0
        %v3063 = vadd.f32 0.0, %v3062
        %v3064 = vpop.f32.mrb[0].mxu0
        %v3065 = vadd.f32 0.0, %v3064
        %v3066 = vpop.f32.mrb[0].mxu0
        %v3067 = vadd.f32 0.0, %v3066
        %v3068 = vpop.f32.mrb[0].mxu0
        %v3069 = vadd.f32 0.0, %v3068
        %3070 = vmatprep.mubr.bf16.mxu0 0
        %3071 = vmatmul.mubr.bf16.gmra.mrb[0].mxu0 %v2902
        %v3072 = vpop.f32.mrb[0].mxu0
        %v3073 = vadd.f32 0.0, %v3072
        %v3074 = vpop.f32.mrb[0].mxu0
        %v3075 = vadd.f32 0.0, %v3074
        %v3076 = vpop.f32.mrb[0].mxu0
        %v3077 = vadd.f32 0.0, %v3076
        %v3078 = vpop.f32.mrb[0].mxu0
        %v3079 = vadd.f32 0.0, %v3078
        %3080 = vmatprep.mubr.bf16.mxu0 0
        %3081 = vmatmul.mubr.bf16.gmra.mrb[0].mxu0 %v2903
        %v3082 = vpop.f32.mrb[0].mxu0
        %v3083 = vadd.f32 0.0, %v3082
        %v3084 = vpop.f32.mrb[0].mxu0
        %v3085 = vadd.f32 0.0, %v3084
        %v3086 = vpop.f32.mrb[0].mxu0
        %v3087 = vadd.f32 0.0, %v3086
        %v3088 = vpop.f32.mrb[0].mxu0
        %v3089 = vadd.f32 0.0, %v3088
        %3090 = vmatprep.mubr.bf16.mxu0 0
        %3091 = vmatmul.mubr.bf16.gmra.mrb[0].mxu0 %v2904
        %v3092 = vpop.f32.mrb[0].mxu0
        %v3093 = vadd.f32 0.0, %v3092
        %v3094 = vpop.f32.mrb[0].mxu0
        %v3095 = vadd.f32 0.0, %v3094
        %v3096 = vpop.f32.mrb[0].mxu0
        %v3097 = vadd.f32 0.0, %v3096
        %v3098 = vpop.f32.mrb[0].mxu0
        %v3099 = vadd.f32 0.0, %v3098
        %3100 = vmatprep.mubr.bf16.mxu0 0
        %3101 = vmatmul.mubr.bf16.gmra.mrb[0].mxu0 %v2905
        %v3102 = vpop.f32.mrb[0].mxu0
        %v3103 = vadd.f32 0.0, %v3102
        %v3104 = vpop.f32.mrb[0].mxu0
        %v3105 = vadd.f32 0.0, %v3104
        %v3106 = vpop.f32.mrb[0].mxu0
        %v3107 = vadd.f32 0.0, %v3106
        %v3108 = vpop.f32.mrb[0].mxu0
        %v3109 = vadd.f32 0.0, %v3108
        %3110 = vmatprep.mubr.bf16.mxu0 0
        %3111 = vmatmul.mubr.bf16.gmra.mrb[0].mxu0 %v2906
        %v3112 = vpop.f32.mrb[0].mxu0
        %v3113 = vadd.f32 0.0, %v3112
        %v3114 = vpop.f32.mrb[0].mxu0
        %v3115 = vadd.f32 0.0, %v3114
        %v3116 = vpop.f32.mrb[0].mxu0
        %v3117 = vadd.f32 0.0, %v3116
        %v3118 = vpop.f32.mrb[0].mxu0
        %v3119 = vadd.f32 0.0, %v3118
        %3120 = vmatprep.mubr.bf16.mxu0 0
        %3121 = vmatmul.mubr.bf16.gmra.mrb[0].mxu0 %v2907
        %v3122 = vpop.f32.mrb[0].mxu0
        %v3123 = vadd.f32 0.0, %v3122
        %v3124 = vpop.f32.mrb[0].mxu0
        %v3125 = vadd.f32 0.0, %v3124
        %v3126 = vpop.f32.mrb[0].mxu0
        %v3127 = vadd.f32 0.0, %v3126
        %v3128 = vpop.f32.mrb[0].mxu0
        %v3129 = vadd.f32 0.0, %v3128
        %3130 = vmatprep.mubr.bf16.mxu0 0
        %3131 = vmatmul.mubr.bf16.gmra.mrb[0].mxu0 %v2908
        %v3132 = vpop.f32.mrb[0].mxu0
        %v3133 = vadd.f32 0.0, %v3132
        %v3134 = vpop.f32.mrb[0].mxu0
        %v3135 = vadd.f32 0.0, %v3134
        %v3136 = vpop.f32.mrb[0].mxu0
        %v3137 = vadd.f32 0.0, %v3136
        %v3138 = vpop.f32.mrb[0].mxu0
        %v3139 = vadd.f32 0.0, %v3138
        %3140 = vmatprep.mubr.bf16.mxu0 0
        %3141 = vmatmul.mubr.bf16.gmra.mrb[0].mxu0 %v2909
        %v3142 = vpop.f32.mrb[0].mxu0
        %v3143 = vadd.f32 0.0, %v3142
        %v3144 = vpop.f32.mrb[0].mxu0
        %v3145 = vadd.f32 0.0, %v3144
        %v3146 = vpop.f32.mrb[0].mxu0
        %v3147 = vadd.f32 0.0, %v3146
        %v3148 = vpop.f32.mrb[0].mxu0
        %v3149 = vadd.f32 0.0, %v3148
        %3150 = vmatprep.mubr.bf16.mxu0 0
        %3151 = vmatmul.mubr.bf16.gmra.mrb[0].mxu0 %v2910
        %v3152 = vpop.f32.mrb[0].mxu0
        %v3153 = vadd.f32 0.0, %v3152
        %v3154 = vpop.f32.mrb[0].mxu0
        %v3155 = vadd.f32 0.0, %v3154
        %v3156 = vpop.f32.mrb[0].mxu0
        %v3157 = vadd.f32 0.0, %v3156
        %v3158 = vpop.f32.mrb[0].mxu0
        %v3159 = vadd.f32 0.0, %v3158
        %3160 = vmatprep.mubr.bf16.mxu0 0
        %3161 = vmatmul.mubr.bf16.gmra.mrb[0].mxu0 %v2911
        %v3162 = vpop.f32.mrb[0].mxu0
        %v3163 = vadd.f32 0.0, %v3162
        %v3164 = vpop.f32.mrb[0].mxu0
        %v3165 = vadd.f32 0.0, %v3164
        %v3166 = vpop.f32.mrb[0].mxu0
        %v3167 = vadd.f32 0.0, %v3166
        %v3168 = vpop.f32.mrb[0].mxu0
        %v3169 = vadd.f32 0.0, %v3168
        %3170 = vmatprep.mubr.bf16.mxu0 0
        %3171 = vmatmul.mubr.bf16.gmra.mrb[0].mxu0 %v2912
        %v3172 = vpop.f32.mrb[0].mxu0
        %v3173 = vadd.f32 0.0, %v3172
        %v3174 = vpop.f32.mrb[0].mxu0
        %v3175 = vadd.f32 0.0, %v3174
        %v3176 = vpop.f32.mrb[0].mxu0
        %v3177 = vadd.f32 0.0, %v3176
        %v3178 = vpop.f32.mrb[0].mxu0
        %v3179 = vadd.f32 0.0, %v3178
        %3180 = vmatprep.mubr.bf16.mxu0 0
        %3181 = vmatmul.mubr.bf16.gmra.mrb[0].mxu0 %v2913
        %v3182 = vpop.f32.mrb[0].mxu0
        %v3183 = vadd.f32 0.0, %v3182
        %v3184 = vpop.f32.mrb[0].mxu0
        %v3185 = vpop.f32.mrb[0].mxu0
        %v3186 = vadd.f32 0.0, %v3185
        %v3187 = vpop.f32.mrb[0].mxu0
        %3188 = vdwg.mxu0
        %v3189 = vld [vmem:[%s10] sm:$0x1]
        %v3191 = vlaneseq
        %v3192 = vshrl.u32 %v3191, 7
        %v3193 = vsub.s32 0, %v3192
        %v3194 = vrot.slane %v3189, %v3193
        %v3196 = vadd.f32 %v3046, %v3194
        %v3197 = vadd.f32 %v3049, %v3194
        %v3198 = vtanh.pop %v3196
        %v3199 = vtanh.pop %v3197
        %3200 = vst [vmem:[%s669] sm:$0xff] %v3198
        %3201 = vst [vmem:[%s669 + $0x8] sm:$0xff] %v3199
        %v3202 = vld [vmem:[%s10] sm:$0x1]
        %v3204 = vlaneseq
        %v3205 = vshrl.u32 %v3204, 7
        %v3206 = vsub.s32 0, %v3205
        %v3207 = vrot.slane %v3202, %v3206
        %v3209 = vadd.f32 %v3053, %v3207
        %v3210 = vadd.f32 %v3057, %v3207
        %v3211 = vtanh.pop %v3209
        %v3212 = vtanh.pop %v3210
        %s3213 = scalar_lea.vmem %s669, 16 [#allocation8]
        %3214 = vst [vmem:[%s3213] sm:$0xff] %v3211
        %3215 = vst [vmem:[%s3213 + $0x8] sm:$0xff] %v3212
        %v3216 = vld [vmem:[%s10] sm:$0x1]
        %v3218 = vlaneseq
        %v3219 = vshrl.u32 %v3218, 7
        %v3220 = vsub.s32 0, %v3219
        %v3221 = vrot.slane %v3216, %v3220
        %v3223 = vadd.f32 %v3055, %v3221
        %v3224 = vadd.f32 %v3059, %v3221
        %v3225 = vtanh.pop %v3223
        %v3226 = vtanh.pop %v3224
        %s3227 = scalar_lea.vmem %s669, 32 [#allocation8]
        %3228 = vst [vmem:[%s3227] sm:$0xff] %v3225
        %3229 = vst [vmem:[%s3227 + $0x8] sm:$0xff] %v3226
        %v3230 = vld [vmem:[%s10] sm:$0x1]
        %v3232 = vlaneseq
        %v3233 = vshrl.u32 %v3232, 7
        %v3234 = vsub.s32 0, %v3233
        %v3235 = vrot.slane %v3230, %v3234
        %v3237 = vadd.f32 %v3063, %v3235
        %v3238 = vadd.f32 %v3067, %v3235
        %v3239 = vtanh.pop %v3237
        %v3240 = vtanh.pop %v3238
        %s3241 = scalar_lea.vmem %s669, 48 [#allocation8]
        %3242 = vst [vmem:[%s3241] sm:$0xff] %v3239
        %3243 = vst [vmem:[%s3241 + $0x8] sm:$0xff] %v3240
        %v3244 = vld [vmem:[%s10] sm:$0x1]
        %v3246 = vlaneseq
        %v3247 = vshrl.u32 %v3246, 7
        %v3248 = vsub.s32 0, %v3247
        %v3249 = vrot.slane %v3244, %v3248
        %v3251 = vadd.f32 %v3065, %v3249
        %v3252 = vadd.f32 %v3069, %v3249
        %v3253 = vtanh.pop %v3251
        %v3254 = vtanh.pop %v3252
        %s3255 = scalar_lea.vmem %s669, 64 [#allocation8]
        %3256 = vst [vmem:[%s3255] sm:$0xff] %v3253
        %3257 = vst [vmem:[%s3255 + $0x8] sm:$0xff] %v3254
        %v3258 = vld [vmem:[%s10] sm:$0x1]
        %v3260 = vlaneseq
        %v3261 = vshrl.u32 %v3260, 7
        %v3262 = vsub.s32 0, %v3261
        %v3263 = vrot.slane %v3258, %v3262
        %v3265 = vadd.f32 %v3073, %v3263
        %v3266 = vadd.f32 %v3077, %v3263
        %v3267 = vtanh.pop %v3265
        %v3268 = vtanh.pop %v3266
        %s3269 = scalar_lea.vmem %s669, 80 [#allocation8]
        %3270 = vst [vmem:[%s3269] sm:$0xff] %v3267
        %3271 = vst [vmem:[%s3269 + $0x8] sm:$0xff] %v3268
        %v3272 = vld [vmem:[%s10] sm:$0x1]
        %v3274 = vlaneseq
        %v3275 = vshrl.u32 %v3274, 7
        %v3276 = vsub.s32 0, %v3275
        %v3277 = vrot.slane %v3272, %v3276
        %v3279 = vadd.f32 %v3075, %v3277
        %v3280 = vadd.f32 %v3079, %v3277
        %v3281 = vtanh.pop %v3279
        %v3282 = vtanh.pop %v3280
        %s3283 = scalar_lea.vmem %s669, 96 [#allocation8]
        %3284 = vst [vmem:[%s3283] sm:$0xff] %v3281
        %3285 = vst [vmem:[%s3283 + $0x8] sm:$0xff] %v3282
        %v3286 = vld [vmem:[%s10] sm:$0x1]
        %v3288 = vlaneseq
        %v3289 = vshrl.u32 %v3288, 7
        %v3290 = vsub.s32 0, %v3289
        %v3291 = vrot.slane %v3286, %v3290
        %v3293 = vadd.f32 %v3083, %v3291
        %v3294 = vadd.f32 %v3087, %v3291
        %v3295 = vtanh.pop %v3293
        %v3296 = vtanh.pop %v3294
        %s3297 = scalar_lea.vmem %s669, 112 [#allocation8]
        %3298 = vst [vmem:[%s3297] sm:$0xff] %v3295
        %3299 = vst [vmem:[%s3297 + $0x8] sm:$0xff] %v3296
        %v3300 = vld [vmem:[%s10] sm:$0x1]
        %v3302 = vlaneseq
        %v3303 = vshrl.u32 %v3302, 7
        %v3304 = vsub.s32 0, %v3303
        %v3305 = vrot.slane %v3300, %v3304
        %v3307 = vadd.f32 %v3085, %v3305
        %v3308 = vadd.f32 %v3089, %v3305
        %v3309 = vtanh.pop %v3307
        %v3310 = vtanh.pop %v3308
        %s3311 = scalar_lea.vmem %s669, 128 [#allocation8]
        %3312 = vst [vmem:[%s3311] sm:$0xff] %v3309
        %3313 = vst [vmem:[%s3311 + $0x8] sm:$0xff] %v3310
        %v3314 = vld [vmem:[%s10] sm:$0x1]
        %v3316 = vlaneseq
        %v3317 = vshrl.u32 %v3316, 7
        %v3318 = vsub.s32 0, %v3317
        %v3319 = vrot.slane %v3314, %v3318
        %v3321 = vadd.f32 %v3093, %v3319
        %v3322 = vadd.f32 %v3097, %v3319
        %v3323 = vtanh.pop %v3321
        %v3324 = vtanh.pop %v3322
        %s3325 = scalar_lea.vmem %s669, 144 [#allocation8]
        %3326 = vst [vmem:[%s3325] sm:$0xff] %v3323
        %3327 = vst [vmem:[%s3325 + $0x8] sm:$0xff] %v3324
        %v3328 = vld [vmem:[%s10] sm:$0x1]
        %v3330 = vlaneseq
        %v3331 = vshrl.u32 %v3330, 7
        %v3332 = vsub.s32 0, %v3331
        %v3333 = vrot.slane %v3328, %v3332
        %v3335 = vadd.f32 %v3095, %v3333
        %v3336 = vadd.f32 %v3099, %v3333
        %v3337 = vtanh.pop %v3335
        %v3338 = vtanh.pop %v3336
        %s3339 = scalar_lea.vmem %s669, 160 [#allocation8]
        %3340 = vst [vmem:[%s3339] sm:$0xff] %v3337
        %3341 = vst [vmem:[%s3339 + $0x8] sm:$0xff] %v3338
        %v3342 = vld [vmem:[%s10] sm:$0x1]
        %v3344 = vlaneseq
        %v3345 = vshrl.u32 %v3344, 7
        %v3346 = vsub.s32 0, %v3345
        %v3347 = vrot.slane %v3342, %v3346
        %v3349 = vadd.f32 %v3103, %v3347
        %v3350 = vadd.f32 %v3107, %v3347
        %v3351 = vtanh.pop %v3349
        %v3352 = vtanh.pop %v3350
        %s3353 = scalar_lea.vmem %s669, 176 [#allocation8]
        %3354 = vst [vmem:[%s3353] sm:$0xff] %v3351
        %3355 = vst [vmem:[%s3353 + $0x8] sm:$0xff] %v3352
        %v3356 = vld [vmem:[%s10] sm:$0x1]
        %v3358 = vlaneseq
        %v3359 = vshrl.u32 %v3358, 7
        %v3360 = vsub.s32 0, %v3359
        %v3361 = vrot.slane %v3356, %v3360
        %v3363 = vadd.f32 %v3105, %v3361
        %v3364 = vadd.f32 %v3109, %v3361
        %v3365 = vtanh.pop %v3363
        %v3366 = vtanh.pop %v3364
        %s3367 = scalar_lea.vmem %s669, 192 [#allocation8]
        %3368 = vst [vmem:[%s3367] sm:$0xff] %v3365
        %3369 = vst [vmem:[%s3367 + $0x8] sm:$0xff] %v3366
        %v3370 = vld [vmem:[%s10] sm:$0x1]
        %v3372 = vlaneseq
        %v3373 = vshrl.u32 %v3372, 7
        %v3374 = vsub.s32 0, %v3373
        %v3375 = vrot.slane %v3370, %v3374
        %v3377 = vadd.f32 %v3113, %v3375
        %v3378 = vadd.f32 %v3117, %v3375
        %v3379 = vtanh.pop %v3377
        %v3380 = vtanh.pop %v3378
        %s3381 = scalar_lea.vmem %s669, 208 [#allocation8]
        %3382 = vst [vmem:[%s3381] sm:$0xff] %v3379
        %3383 = vst [vmem:[%s3381 + $0x8] sm:$0xff] %v3380
        %v3384 = vld [vmem:[%s10] sm:$0x1]
        %v3386 = vlaneseq
        %v3387 = vshrl.u32 %v3386, 7
        %v3388 = vsub.s32 0, %v3387
        %v3389 = vrot.slane %v3384, %v3388
        %v3391 = vadd.f32 %v3115, %v3389
        %v3392 = vadd.f32 %v3119, %v3389
        %v3393 = vtanh.pop %v3391
        %v3394 = vtanh.pop %v3392
        %s3395 = scalar_lea.vmem %s669, 224 [#allocation8]
        %3396 = vst [vmem:[%s3395] sm:$0xff] %v3393
        %3397 = vst [vmem:[%s3395 + $0x8] sm:$0xff] %v3394
        %v3398 = vld [vmem:[%s10] sm:$0x1]
        %v3400 = vlaneseq
        %v3401 = vshrl.u32 %v3400, 7
        %v3402 = vsub.s32 0, %v3401
        %v3403 = vrot.slane %v3398, %v3402
        %v3405 = vadd.f32 %v3123, %v3403
        %v3406 = vadd.f32 %v3127, %v3403
        %v3407 = vtanh.pop %v3405
        %v3408 = vtanh.pop %v3406
        %s3409 = scalar_lea.vmem %s669, 240 [#allocation8]
        %3410 = vst [vmem:[%s3409] sm:$0xff] %v3407
        %3411 = vst [vmem:[%s3409 + $0x8] sm:$0xff] %v3408
        %v3412 = vld [vmem:[%s10] sm:$0x1]
        %v3414 = vlaneseq
        %v3415 = vshrl.u32 %v3414, 7
        %v3416 = vsub.s32 0, %v3415
        %v3417 = vrot.slane %v3412, %v3416
        %v3419 = vadd.f32 %v3125, %v3417
        %v3420 = vadd.f32 %v3129, %v3417
        %v3421 = vtanh.pop %v3419
        %v3422 = vtanh.pop %v3420
        %s3423 = scalar_lea.vmem %s669, 256 [#allocation8]
        %3424 = vst [vmem:[%s3423] sm:$0xff] %v3421
        %3425 = vst [vmem:[%s3423 + $0x8] sm:$0xff] %v3422
        %v3426 = vld [vmem:[%s10] sm:$0x1]
        %v3428 = vlaneseq
        %v3429 = vshrl.u32 %v3428, 7
        %v3430 = vsub.s32 0, %v3429
        %v3431 = vrot.slane %v3426, %v3430
        %v3433 = vadd.f32 %v3133, %v3431
        %v3434 = vadd.f32 %v3137, %v3431
        %v3435 = vtanh.pop %v3433
        %v3436 = vtanh.pop %v3434
        %s3437 = scalar_lea.vmem %s669, 272 [#allocation8]
        %3438 = vst [vmem:[%s3437] sm:$0xff] %v3435
        %3439 = vst [vmem:[%s3437 + $0x8] sm:$0xff] %v3436
        %v3440 = vld [vmem:[%s10] sm:$0x1]
        %v3442 = vlaneseq
        %v3443 = vshrl.u32 %v3442, 7
        %v3444 = vsub.s32 0, %v3443
        %v3445 = vrot.slane %v3440, %v3444
        %v3447 = vadd.f32 %v3135, %v3445
        %v3448 = vadd.f32 %v3139, %v3445
        %v3449 = vtanh.pop %v3447
        %v3450 = vtanh.pop %v3448
        %s3451 = scalar_lea.vmem %s669, 288 [#allocation8]
        %3452 = vst [vmem:[%s3451] sm:$0xff] %v3449
        %3453 = vst [vmem:[%s3451 + $0x8] sm:$0xff] %v3450
        %v3454 = vld [vmem:[%s10] sm:$0x1]
        %v3456 = vlaneseq
        %v3457 = vshrl.u32 %v3456, 7
        %v3458 = vsub.s32 0, %v3457
        %v3459 = vrot.slane %v3454, %v3458
        %v3461 = vadd.f32 %v3143, %v3459
        %v3462 = vadd.f32 %v3147, %v3459
        %v3463 = vtanh.pop %v3461
        %v3464 = vtanh.pop %v3462
        %s3465 = scalar_lea.vmem %s669, 304 [#allocation8]
        %3466 = vst [vmem:[%s3465] sm:$0xff] %v3463
        %3467 = vst [vmem:[%s3465 + $0x8] sm:$0xff] %v3464
        %v3468 = vld [vmem:[%s10] sm:$0x1]
        %v3470 = vlaneseq
        %v3471 = vshrl.u32 %v3470, 7
        %v3472 = vsub.s32 0, %v3471
        %v3473 = vrot.slane %v3468, %v3472
        %v3475 = vadd.f32 %v3145, %v3473
        %v3476 = vadd.f32 %v3149, %v3473
        %v3477 = vtanh.pop %v3475
        %v3478 = vtanh.pop %v3476
        %s3479 = scalar_lea.vmem %s669, 320 [#allocation8]
        %3480 = vst [vmem:[%s3479] sm:$0xff] %v3477
        %3481 = vst [vmem:[%s3479 + $0x8] sm:$0xff] %v3478
        %v3482 = vld [vmem:[%s10] sm:$0x1]
        %v3484 = vlaneseq
        %v3485 = vshrl.u32 %v3484, 7
        %v3486 = vsub.s32 0, %v3485
        %v3487 = vrot.slane %v3482, %v3486
        %v3489 = vadd.f32 %v3153, %v3487
        %v3490 = vadd.f32 %v3157, %v3487
        %v3491 = vtanh.pop %v3489
        %v3492 = vtanh.pop %v3490
        %s3493 = scalar_lea.vmem %s669, 336 [#allocation8]
        %3494 = vst [vmem:[%s3493] sm:$0xff] %v3491
        %3495 = vst [vmem:[%s3493 + $0x8] sm:$0xff] %v3492
        %v3496 = vld [vmem:[%s10] sm:$0x1]
        %v3498 = vlaneseq
        %v3499 = vshrl.u32 %v3498, 7
        %v3500 = vsub.s32 0, %v3499
        %v3501 = vrot.slane %v3496, %v3500
        %v3503 = vadd.f32 %v3155, %v3501
        %v3504 = vadd.f32 %v3159, %v3501
        %v3505 = vtanh.pop %v3503
        %v3506 = vtanh.pop %v3504
        %s3507 = scalar_lea.vmem %s669, 352 [#allocation8]
        %3508 = vst [vmem:[%s3507] sm:$0xff] %v3505
        %3509 = vst [vmem:[%s3507 + $0x8] sm:$0xff] %v3506
        %v3510 = vld [vmem:[%s10] sm:$0x1]
        %v3512 = vlaneseq
        %v3513 = vshrl.u32 %v3512, 7
        %v3514 = vsub.s32 0, %v3513
        %v3515 = vrot.slane %v3510, %v3514
        %v3517 = vadd.f32 %v3163, %v3515
        %v3518 = vadd.f32 %v3167, %v3515
        %v3519 = vtanh.pop %v3517
        %v3520 = vtanh.pop %v3518
        %s3521 = scalar_lea.vmem %s669, 368 [#allocation8]
        %3522 = vst [vmem:[%s3521] sm:$0xff] %v3519
        %3523 = vst [vmem:[%s3521 + $0x8] sm:$0xff] %v3520
        %v3524 = vld [vmem:[%s10] sm:$0x1]
        %v3526 = vlaneseq
        %v3527 = vshrl.u32 %v3526, 7
        %v3528 = vsub.s32 0, %v3527
        %v3529 = vrot.slane %v3524, %v3528
        %v3531 = vadd.f32 %v3165, %v3529
        %v3532 = vadd.f32 %v3169, %v3529
        %v3533 = vtanh.pop %v3531
        %v3534 = vtanh.pop %v3532
        %s3535 = scalar_lea.vmem %s669, 384 [#allocation8]
        %3536 = vst [vmem:[%s3535] sm:$0xff] %v3533
        %3537 = vst [vmem:[%s3535 + $0x8] sm:$0xff] %v3534
        %v3538 = vld [vmem:[%s10] sm:$0x1]
        %v3540 = vlaneseq
        %v3541 = vshrl.u32 %v3540, 7
        %v3542 = vsub.s32 0, %v3541
        %v3543 = vrot.slane %v3538, %v3542
        %v3545 = vadd.f32 %v3173, %v3543
        %v3546 = vadd.f32 %v3177, %v3543
        %v3547 = vtanh.pop %v3545
        %v3548 = vtanh.pop %v3546
        %s3549 = scalar_lea.vmem %s669, 400 [#allocation8]
        %3550 = vst [vmem:[%s3549] sm:$0xff] %v3547
        %3551 = vst [vmem:[%s3549 + $0x8] sm:$0xff] %v3548
        %v3552 = vld [vmem:[%s10] sm:$0x1]
        %v3554 = vlaneseq
        %v3555 = vshrl.u32 %v3554, 7
        %v3556 = vsub.s32 0, %v3555
        %v3557 = vrot.slane %v3552, %v3556
        %v3559 = vadd.f32 %v3175, %v3557
        %v3560 = vadd.f32 %v3179, %v3557
        %v3561 = vtanh.pop %v3559
        %v3562 = vtanh.pop %v3560
        %s3563 = scalar_lea.vmem %s669, 416 [#allocation8]
        %3564 = vst [vmem:[%s3563] sm:$0xff] %v3561
        %3565 = vst [vmem:[%s3563 + $0x8] sm:$0xff] %v3562
        %v3566 = vld [vmem:[%s10] sm:$0x1]
        %v3568 = vlaneseq
        %v3569 = vshrl.u32 %v3568, 7
        %v3570 = vsub.s32 0, %v3569
        %v3571 = vrot.slane %v3566, %v3570
        %v3573 = vadd.f32 %v3183, %v3571
        %v3574 = vadd.f32 %v3186, %v3571
        %v3575 = vtanh.pop %v3573
        %v3576 = vtanh.pop %v3574
        %s3577 = scalar_lea.vmem %s669, 432 [#allocation8]
        %3578 = vst [vmem:[%s3577] sm:$0xff] %v3575
        %3579 = vst [vmem:[%s3577 + $0x8] sm:$0xff] %v3576
        %s3580 = sand.u32 %s268, 1
        %s3581 = sand.u32 %s268, 1
        %s3582 = smul.addr %s3581, 32
        %s3583 = scalar_lea.vmem [#allocation7], %s3582
        %s3584 = sand.u32 %s294, 1
        %s3585 = sand.u32 %s294, 1
        %s3586 = smul.addr %s3585, 448
        %s3587 = scalar_lea.vmem [#allocation8], %s3586
        // Predicated region
        $region103: #{autoencoder_forward.1} parent=97 // pred_check
          %p3588 = pneg %p278
        $region104: #{autoencoder_forward.1} parent=97 // pred_check_branch
          %3590 = sbr.rel (%p3588) target = $region106
        $region105: #{autoencoder_forward.1} parent=97 // pred_region
          %s3591 = smul.u32 2, %s24
          %s3592 = smul.addr %s3591, 8
          %s3593 = scalar_lea.vmem %s11, %s3592
          // Predicated region
          $region107: #{autoencoder_forward.1} parent=105 // pred_check
            _
          $region108: #{autoencoder_forward.1} parent=105 // pred_check_branch
            %3595 = sbr.rel (0) target = $region110
          $region109: #{autoencoder_forward.1} parent=105 // pred_region
            // Predicated region
            $region111: #{autoencoder_forward.1} parent=109 // pred_check
              _
            $region112: #{autoencoder_forward.1} parent=109 // pred_check_branch
              %3597 = sbr.rel (0) target = $region114
            $region113: #{autoencoder_forward.1} parent=109 // pred_region
              // Predicated region
              $region126: #{autoencoder_forward.1} parent=113 // pred_check
                _
              $region127: #{autoencoder_forward.1} parent=113 // pred_check_branch
                %3618 = sbr.rel (0) target = $region129
              $region128: #{autoencoder_forward.1} parent=113 // pred_region
                loop: start=0, step=1, limit=1
                $region130: #{autoencoder_forward.1} parent=128 // loop_pre_header
                  _
                $region131: #{autoencoder_forward.1} parent=128 // loop_header
                  %s3620 = sphi 0, %s3624
                  %p3621 = scmp.ge.s32.totalorder %s3620, 1
                  %s3625 = sphi %s3583, %s3583
                  %s3626 = sphi %s3593, %s3593
                $region132: #{autoencoder_forward.1} parent=128 // loop_header_branch
                  %3623 = sbr.rel (%p3621) target = $region136
                $region133: #{autoencoder_forward.1} parent=128 // loop_body
                  %v3627 = vld [vmem:[%s3625] sm:$0xff]
                  %3628 = vst [vmem:[%s3626] sm:$0xff] %v3627
                  %v3629 = vld [vmem:[%s3625 + $0x8] sm:$0xff]
                  %3630 = vst [vmem:[%s3626 + $0x8] sm:$0xff] %v3629
                  %v3631 = vld [vmem:[%s3625 + $0x10] sm:$0xff]
                  %3632 = vst [vmem:[%s3626 + $0x20] sm:$0xff] %v3631
                  %v3633 = vld [vmem:[%s3625 + $0x18] sm:$0xff]
                  %3634 = vst [vmem:[%s3626 + $0x28] sm:$0xff] %v3633
                $region134: #{autoencoder_forward.1} parent=128 // loop_footer
                  %s3624 = sadd.s32 1, %s3620
                $region135: #{autoencoder_forward.1} parent=128 // loop_footer_branch
                  %3619 = sbr.rel target = $region131
                $region136: #{autoencoder_forward.1} parent=128 // loop_exit
                  _
              $region129: #{autoencoder_forward.1} parent=113 // pred_fallthru
                _
              // Predicated region
              $region137: #{autoencoder_forward.1} parent=113 // pred_check
                _
              $region138: #{autoencoder_forward.1} parent=113 // pred_check_branch
                %3636 = sbr.rel target = $region140
              $region139: #{autoencoder_forward.1} parent=113 // pred_region
                _
              $region140: #{autoencoder_forward.1} parent=113 // pred_fallthru
                _
            $region114: #{autoencoder_forward.1} parent=109 // pred_fallthru
              _
            // Predicated region
            $region115: #{autoencoder_forward.1} parent=109 // pred_check
              _
            $region116: #{autoencoder_forward.1} parent=109 // pred_check_branch
              %3599 = sbr.rel target = $region118
            $region117: #{autoencoder_forward.1} parent=109 // pred_region
              loop: start=0, step=1, limit=1
              $region119: #{autoencoder_forward.1} parent=117 // loop_pre_header
                _
              $region120: #{autoencoder_forward.1} parent=117 // loop_header
                %s3602 = sphi 0, %s3606
                %p3603 = scmp.ge.s32.totalorder %s3602, 1
                %s3607 = sphi %s3583, %s3583
                %s3608 = sphi %s3593, %s3593
              $region121: #{autoencoder_forward.1} parent=117 // loop_header_branch
                %3605 = sbr.rel (%p3603) target = $region125
              $region122: #{autoencoder_forward.1} parent=117 // loop_body
                %v3609 = vld [vmem:[%s3607] sm:$0xff]
                %3610 = vst [vmem:[%s3608] sm:$0xff] %v3609
                %v3611 = vld [vmem:[%s3607 + $0x8] sm:$0xff]
                %3612 = vst [vmem:[%s3608 + $0x8] sm:$0xff] %v3611
                %v3613 = vld [vmem:[%s3607 + $0x10] sm:$0xff]
                %3614 = vst [vmem:[%s3608 + $0x20] sm:$0xff] %v3613
                %v3615 = vld [vmem:[%s3607 + $0x18] sm:$0xff]
                %3616 = vst [vmem:[%s3608 + $0x28] sm:$0xff] %v3615
              $region123: #{autoencoder_forward.1} parent=117 // loop_footer
                %s3606 = sadd.s32 1, %s3602
              $region124: #{autoencoder_forward.1} parent=117 // loop_footer_branch
                %3601 = sbr.rel target = $region120
              $region125: #{autoencoder_forward.1} parent=117 // loop_exit
                _
            $region118: #{autoencoder_forward.1} parent=109 // pred_fallthru
              _
          $region110: #{autoencoder_forward.1} parent=105 // pred_fallthru
            _
          %3637 = vnop
        $region106: #{autoencoder_forward.1} parent=97 // pred_fallthru
          _
        // Predicated region
        $region141: #{autoencoder_forward.1} parent=97 // pred_check
          %p3638 = pneg %p304
        $region142: #{autoencoder_forward.1} parent=97 // pred_check_branch
          %3640 = sbr.rel (%p3638) target = $region144
        $region143: #{autoencoder_forward.1} parent=97 // pred_region
          %s3641 = smul.u32 2, %s24
          %s3642 = smul.addr %s3641, 8
          %s3643 = scalar_lea.vmem %s12, %s3642
          // Predicated region
          $region145: #{autoencoder_forward.1} parent=143 // pred_check
            _
          $region146: #{autoencoder_forward.1} parent=143 // pred_check_branch
            %3645 = sbr.rel (0) target = $region148
          $region147: #{autoencoder_forward.1} parent=143 // pred_region
            // Predicated region
            $region149: #{autoencoder_forward.1} parent=147 // pred_check
              _
            $region150: #{autoencoder_forward.1} parent=147 // pred_check_branch
              %3647 = sbr.rel (0) target = $region152
            $region151: #{autoencoder_forward.1} parent=147 // pred_region
              // Predicated region
              $region164: #{autoencoder_forward.1} parent=151 // pred_check
                _
              $region165: #{autoencoder_forward.1} parent=151 // pred_check_branch
                %3772 = sbr.rel (0) target = $region167
              $region166: #{autoencoder_forward.1} parent=151 // pred_region
                loop: start=0, step=1, limit=1
                $region168: #{autoencoder_forward.1} parent=166 // loop_pre_header
                  _
                $region169: #{autoencoder_forward.1} parent=166 // loop_header
                  %s3774 = sphi 0, %s3778
                  %p3775 = scmp.ge.s32.totalorder %s3774, 1
                  %s3779 = sphi %s3587, %s3587
                  %s3780 = sphi %s3643, %s3643
                $region170: #{autoencoder_forward.1} parent=166 // loop_header_branch
                  %3777 = sbr.rel (%p3775) target = $region174
                $region171: #{autoencoder_forward.1} parent=166 // loop_body
                  %v3781 = vld [vmem:[%s3779] sm:$0xff]
                  %3782 = vst [vmem:[%s3780] sm:$0xff] %v3781
                  %v3783 = vld [vmem:[%s3779 + $0x8] sm:$0xff]
                  %3784 = vst [vmem:[%s3780 + $0x8] sm:$0xff] %v3783
                  %v3785 = vld [vmem:[%s3779 + $0x10] sm:$0xff]
                  %3786 = vst [vmem:[%s3780 + $0x20] sm:$0xff] %v3785
                  %v3787 = vld [vmem:[%s3779 + $0x18] sm:$0xff]
                  %3788 = vst [vmem:[%s3780 + $0x28] sm:$0xff] %v3787
                  %v3789 = vld [vmem:[%s3779 + $0x20] sm:$0xff]
                  %3790 = vst [vmem:[%s3780 + $0x40] sm:$0xff] %v3789
                  %v3791 = vld [vmem:[%s3779 + $0x28] sm:$0xff]
                  %3792 = vst [vmem:[%s3780 + $0x48] sm:$0xff] %v3791
                  %v3793 = vld [vmem:[%s3779 + $0x30] sm:$0xff]
                  %3794 = vst [vmem:[%s3780 + $0x60] sm:$0xff] %v3793
                  %v3795 = vld [vmem:[%s3779 + $0x38] sm:$0xff]
                  %3796 = vst [vmem:[%s3780 + $0x68] sm:$0xff] %v3795
                  %v3797 = vld [vmem:[%s3779 + $0x40] sm:$0xff]
                  %3798 = vst [vmem:[%s3780 + $0x80] sm:$0xff] %v3797
                  %v3799 = vld [vmem:[%s3779 + $0x48] sm:$0xff]
                  %3800 = vst [vmem:[%s3780 + $0x88] sm:$0xff] %v3799
                  %v3801 = vld [vmem:[%s3779 + $0x50] sm:$0xff]
                  %3802 = vst [vmem:[%s3780 + $0xa0] sm:$0xff] %v3801
                  %v3803 = vld [vmem:[%s3779 + $0x58] sm:$0xff]
                  %3804 = vst [vmem:[%s3780 + $0xa8] sm:$0xff] %v3803
                  %v3805 = vld [vmem:[%s3779 + $0x60] sm:$0xff]
                  %3806 = vst [vmem:[%s3780 + $0xc0] sm:$0xff] %v3805
                  %v3807 = vld [vmem:[%s3779 + $0x68] sm:$0xff]
                  %3808 = vst [vmem:[%s3780 + $0xc8] sm:$0xff] %v3807
                  %v3809 = vld [vmem:[%s3779 + $0x70] sm:$0xff]
                  %3810 = vst [vmem:[%s3780 + $0xe0] sm:$0xff] %v3809
                  %v3811 = vld [vmem:[%s3779 + $0x78] sm:$0xff]
                  %3812 = vst [vmem:[%s3780 + $0xe8] sm:$0xff] %v3811
                  %v3813 = vld [vmem:[%s3779 + $0x80] sm:$0xff]
                  %3814 = vst [vmem:[%s3780 + $0x100] sm:$0xff] %v3813
                  %v3815 = vld [vmem:[%s3779 + $0x88] sm:$0xff]
                  %3816 = vst [vmem:[%s3780 + $0x108] sm:$0xff] %v3815
                  %v3817 = vld [vmem:[%s3779 + $0x90] sm:$0xff]
                  %3818 = vst [vmem:[%s3780 + $0x120] sm:$0xff] %v3817
                  %v3819 = vld [vmem:[%s3779 + $0x98] sm:$0xff]
                  %3820 = vst [vmem:[%s3780 + $0x128] sm:$0xff] %v3819
                  %v3821 = vld [vmem:[%s3779 + $0xa0] sm:$0xff]
                  %3822 = vst [vmem:[%s3780 + $0x140] sm:$0xff] %v3821
                  %v3823 = vld [vmem:[%s3779 + $0xa8] sm:$0xff]
                  %3824 = vst [vmem:[%s3780 + $0x148] sm:$0xff] %v3823
                  %v3825 = vld [vmem:[%s3779 + $0xb0] sm:$0xff]
                  %3826 = vst [vmem:[%s3780 + $0x160] sm:$0xff] %v3825
                  %v3827 = vld [vmem:[%s3779 + $0xb8] sm:$0xff]
                  %3828 = vst [vmem:[%s3780 + $0x168] sm:$0xff] %v3827
                  %v3829 = vld [vmem:[%s3779 + $0xc0] sm:$0xff]
                  %3830 = vst [vmem:[%s3780 + $0x180] sm:$0xff] %v3829
                  %v3831 = vld [vmem:[%s3779 + $0xc8] sm:$0xff]
                  %3832 = vst [vmem:[%s3780 + $0x188] sm:$0xff] %v3831
                  %v3833 = vld [vmem:[%s3779 + $0xd0] sm:$0xff]
                  %3834 = vst [vmem:[%s3780 + $0x1a0] sm:$0xff] %v3833
                  %v3835 = vld [vmem:[%s3779 + $0xd8] sm:$0xff]
                  %3836 = vst [vmem:[%s3780 + $0x1a8] sm:$0xff] %v3835
                  %v3837 = vld [vmem:[%s3779 + $0xe0] sm:$0xff]
                  %3838 = vst [vmem:[%s3780 + $0x1c0] sm:$0xff] %v3837
                  %v3839 = vld [vmem:[%s3779 + $0xe8] sm:$0xff]
                  %3840 = vst [vmem:[%s3780 + $0x1c8] sm:$0xff] %v3839
                  %v3841 = vld [vmem:[%s3779 + $0xf0] sm:$0xff]
                  %3842 = vst [vmem:[%s3780 + $0x1e0] sm:$0xff] %v3841
                  %v3843 = vld [vmem:[%s3779 + $0xf8] sm:$0xff]
                  %3844 = vst [vmem:[%s3780 + $0x1e8] sm:$0xff] %v3843
                  %v3845 = vld [vmem:[%s3779 + $0x100] sm:$0xff]
                  %3846 = vst [vmem:[%s3780 + $0x200] sm:$0xff] %v3845
                  %v3847 = vld [vmem:[%s3779 + $0x108] sm:$0xff]
                  %3848 = vst [vmem:[%s3780 + $0x208] sm:$0xff] %v3847
                  %v3849 = vld [vmem:[%s3779 + $0x110] sm:$0xff]
                  %3850 = vst [vmem:[%s3780 + $0x220] sm:$0xff] %v3849
                  %v3851 = vld [vmem:[%s3779 + $0x118] sm:$0xff]
                  %3852 = vst [vmem:[%s3780 + $0x228] sm:$0xff] %v3851
                  %v3853 = vld [vmem:[%s3779 + $0x120] sm:$0xff]
                  %3854 = vst [vmem:[%s3780 + $0x240] sm:$0xff] %v3853
                  %v3855 = vld [vmem:[%s3779 + $0x128] sm:$0xff]
                  %3856 = vst [vmem:[%s3780 + $0x248] sm:$0xff] %v3855
                  %v3857 = vld [vmem:[%s3779 + $0x130] sm:$0xff]
                  %3858 = vst [vmem:[%s3780 + $0x260] sm:$0xff] %v3857
                  %v3859 = vld [vmem:[%s3779 + $0x138] sm:$0xff]
                  %3860 = vst [vmem:[%s3780 + $0x268] sm:$0xff] %v3859
                  %v3861 = vld [vmem:[%s3779 + $0x140] sm:$0xff]
                  %3862 = vst [vmem:[%s3780 + $0x280] sm:$0xff] %v3861
                  %v3863 = vld [vmem:[%s3779 + $0x148] sm:$0xff]
                  %3864 = vst [vmem:[%s3780 + $0x288] sm:$0xff] %v3863
                  %v3865 = vld [vmem:[%s3779 + $0x150] sm:$0xff]
                  %3866 = vst [vmem:[%s3780 + $0x2a0] sm:$0xff] %v3865
                  %v3867 = vld [vmem:[%s3779 + $0x158] sm:$0xff]
                  %3868 = vst [vmem:[%s3780 + $0x2a8] sm:$0xff] %v3867
                  %v3869 = vld [vmem:[%s3779 + $0x160] sm:$0xff]
                  %3870 = vst [vmem:[%s3780 + $0x2c0] sm:$0xff] %v3869
                  %v3871 = vld [vmem:[%s3779 + $0x168] sm:$0xff]
                  %3872 = vst [vmem:[%s3780 + $0x2c8] sm:$0xff] %v3871
                  %v3873 = vld [vmem:[%s3779 + $0x170] sm:$0xff]
                  %3874 = vst [vmem:[%s3780 + $0x2e0] sm:$0xff] %v3873
                  %v3875 = vld [vmem:[%s3779 + $0x178] sm:$0xff]
                  %3876 = vst [vmem:[%s3780 + $0x2e8] sm:$0xff] %v3875
                  %v3877 = vld [vmem:[%s3779 + $0x180] sm:$0xff]
                  %3878 = vst [vmem:[%s3780 + $0x300] sm:$0xff] %v3877
                  %v3879 = vld [vmem:[%s3779 + $0x188] sm:$0xff]
                  %3880 = vst [vmem:[%s3780 + $0x308] sm:$0xff] %v3879
                  %v3881 = vld [vmem:[%s3779 + $0x190] sm:$0xff]
                  %3882 = vst [vmem:[%s3780 + $0x320] sm:$0xff] %v3881
                  %v3883 = vld [vmem:[%s3779 + $0x198] sm:$0xff]
                  %3884 = vst [vmem:[%s3780 + $0x328] sm:$0xff] %v3883
                  %v3885 = vld [vmem:[%s3779 + $0x1a0] sm:$0xff]
                  %3886 = vst [vmem:[%s3780 + $0x340] sm:$0xff] %v3885
                  %v3887 = vld [vmem:[%s3779 + $0x1a8] sm:$0xff]
                  %3888 = vst [vmem:[%s3780 + $0x348] sm:$0xff] %v3887
                  %v3889 = vld [vmem:[%s3779 + $0x1b0] sm:$0xff]
                  %3890 = vst [vmem:[%s3780 + $0x360] sm:$0xff] %v3889
                  %v3891 = vld [vmem:[%s3779 + $0x1b8] sm:$0xff]
                  %3892 = vst [vmem:[%s3780 + $0x368] sm:$0xff] %v3891
                $region172: #{autoencoder_forward.1} parent=166 // loop_footer
                  %s3778 = sadd.s32 1, %s3774
                $region173: #{autoencoder_forward.1} parent=166 // loop_footer_branch
                  %3773 = sbr.rel target = $region169
                $region174: #{autoencoder_forward.1} parent=166 // loop_exit
                  _
              $region167: #{autoencoder_forward.1} parent=151 // pred_fallthru
                _
              // Predicated region
              $region175: #{autoencoder_forward.1} parent=151 // pred_check
                _
              $region176: #{autoencoder_forward.1} parent=151 // pred_check_branch
                %3894 = sbr.rel target = $region178
              $region177: #{autoencoder_forward.1} parent=151 // pred_region
                _
              $region178: #{autoencoder_forward.1} parent=151 // pred_fallthru
                _
            $region152: #{autoencoder_forward.1} parent=147 // pred_fallthru
              _
            // Predicated region
            $region153: #{autoencoder_forward.1} parent=147 // pred_check
              _
            $region154: #{autoencoder_forward.1} parent=147 // pred_check_branch
              %3649 = sbr.rel target = $region156
            $region155: #{autoencoder_forward.1} parent=147 // pred_region
              loop: start=0, step=1, limit=1
              $region157: #{autoencoder_forward.1} parent=155 // loop_pre_header
                _
              $region158: #{autoencoder_forward.1} parent=155 // loop_header
                %s3652 = sphi 0, %s3656
                %p3653 = scmp.ge.s32.totalorder %s3652, 1
                %s3657 = sphi %s3587, %s3587
                %s3658 = sphi %s3643, %s3643
              $region159: #{autoencoder_forward.1} parent=155 // loop_header_branch
                %3655 = sbr.rel (%p3653) target = $region163
              $region160: #{autoencoder_forward.1} parent=155 // loop_body
                %v3659 = vld [vmem:[%s3657] sm:$0xff]
                %3660 = vst [vmem:[%s3658] sm:$0xff] %v3659
                %v3661 = vld [vmem:[%s3657 + $0x8] sm:$0xff]
                %3662 = vst [vmem:[%s3658 + $0x8] sm:$0xff] %v3661
                %v3663 = vld [vmem:[%s3657 + $0x10] sm:$0xff]
                %3664 = vst [vmem:[%s3658 + $0x20] sm:$0xff] %v3663
                %v3665 = vld [vmem:[%s3657 + $0x18] sm:$0xff]
                %3666 = vst [vmem:[%s3658 + $0x28] sm:$0xff] %v3665
                %v3667 = vld [vmem:[%s3657 + $0x20] sm:$0xff]
                %3668 = vst [vmem:[%s3658 + $0x40] sm:$0xff] %v3667
                %v3669 = vld [vmem:[%s3657 + $0x28] sm:$0xff]
                %3670 = vst [vmem:[%s3658 + $0x48] sm:$0xff] %v3669
                %v3671 = vld [vmem:[%s3657 + $0x30] sm:$0xff]
                %3672 = vst [vmem:[%s3658 + $0x60] sm:$0xff] %v3671
                %v3673 = vld [vmem:[%s3657 + $0x38] sm:$0xff]
                %3674 = vst [vmem:[%s3658 + $0x68] sm:$0xff] %v3673
                %v3675 = vld [vmem:[%s3657 + $0x40] sm:$0xff]
                %3676 = vst [vmem:[%s3658 + $0x80] sm:$0xff] %v3675
                %v3677 = vld [vmem:[%s3657 + $0x48] sm:$0xff]
                %3678 = vst [vmem:[%s3658 + $0x88] sm:$0xff] %v3677
                %v3679 = vld [vmem:[%s3657 + $0x50] sm:$0xff]
                %3680 = vst [vmem:[%s3658 + $0xa0] sm:$0xff] %v3679
                %v3681 = vld [vmem:[%s3657 + $0x58] sm:$0xff]
                %3682 = vst [vmem:[%s3658 + $0xa8] sm:$0xff] %v3681
                %v3683 = vld [vmem:[%s3657 + $0x60] sm:$0xff]
                %3684 = vst [vmem:[%s3658 + $0xc0] sm:$0xff] %v3683
                %v3685 = vld [vmem:[%s3657 + $0x68] sm:$0xff]
                %3686 = vst [vmem:[%s3658 + $0xc8] sm:$0xff] %v3685
                %v3687 = vld [vmem:[%s3657 + $0x70] sm:$0xff]
                %3688 = vst [vmem:[%s3658 + $0xe0] sm:$0xff] %v3687
                %v3689 = vld [vmem:[%s3657 + $0x78] sm:$0xff]
                %3690 = vst [vmem:[%s3658 + $0xe8] sm:$0xff] %v3689
                %v3691 = vld [vmem:[%s3657 + $0x80] sm:$0xff]
                %3692 = vst [vmem:[%s3658 + $0x100] sm:$0xff] %v3691
                %v3693 = vld [vmem:[%s3657 + $0x88] sm:$0xff]
                %3694 = vst [vmem:[%s3658 + $0x108] sm:$0xff] %v3693
                %v3695 = vld [vmem:[%s3657 + $0x90] sm:$0xff]
                %3696 = vst [vmem:[%s3658 + $0x120] sm:$0xff] %v3695
                %v3697 = vld [vmem:[%s3657 + $0x98] sm:$0xff]
                %3698 = vst [vmem:[%s3658 + $0x128] sm:$0xff] %v3697
                %v3699 = vld [vmem:[%s3657 + $0xa0] sm:$0xff]
                %3700 = vst [vmem:[%s3658 + $0x140] sm:$0xff] %v3699
                %v3701 = vld [vmem:[%s3657 + $0xa8] sm:$0xff]
                %3702 = vst [vmem:[%s3658 + $0x148] sm:$0xff] %v3701
                %v3703 = vld [vmem:[%s3657 + $0xb0] sm:$0xff]
                %3704 = vst [vmem:[%s3658 + $0x160] sm:$0xff] %v3703
                %v3705 = vld [vmem:[%s3657 + $0xb8] sm:$0xff]
                %3706 = vst [vmem:[%s3658 + $0x168] sm:$0xff] %v3705
                %v3707 = vld [vmem:[%s3657 + $0xc0] sm:$0xff]
                %3708 = vst [vmem:[%s3658 + $0x180] sm:$0xff] %v3707
                %v3709 = vld [vmem:[%s3657 + $0xc8] sm:$0xff]
                %3710 = vst [vmem:[%s3658 + $0x188] sm:$0xff] %v3709
                %v3711 = vld [vmem:[%s3657 + $0xd0] sm:$0xff]
                %3712 = vst [vmem:[%s3658 + $0x1a0] sm:$0xff] %v3711
                %v3713 = vld [vmem:[%s3657 + $0xd8] sm:$0xff]
                %3714 = vst [vmem:[%s3658 + $0x1a8] sm:$0xff] %v3713
                %v3715 = vld [vmem:[%s3657 + $0xe0] sm:$0xff]
                %3716 = vst [vmem:[%s3658 + $0x1c0] sm:$0xff] %v3715
                %v3717 = vld [vmem:[%s3657 + $0xe8] sm:$0xff]
                %3718 = vst [vmem:[%s3658 + $0x1c8] sm:$0xff] %v3717
                %v3719 = vld [vmem:[%s3657 + $0xf0] sm:$0xff]
                %3720 = vst [vmem:[%s3658 + $0x1e0] sm:$0xff] %v3719
                %v3721 = vld [vmem:[%s3657 + $0xf8] sm:$0xff]
                %3722 = vst [vmem:[%s3658 + $0x1e8] sm:$0xff] %v3721
                %v3723 = vld [vmem:[%s3657 + $0x100] sm:$0xff]
                %3724 = vst [vmem:[%s3658 + $0x200] sm:$0xff] %v3723
                %v3725 = vld [vmem:[%s3657 + $0x108] sm:$0xff]
                %3726 = vst [vmem:[%s3658 + $0x208] sm:$0xff] %v3725
                %v3727 = vld [vmem:[%s3657 + $0x110] sm:$0xff]
                %3728 = vst [vmem:[%s3658 + $0x220] sm:$0xff] %v3727
                %v3729 = vld [vmem:[%s3657 + $0x118] sm:$0xff]
                %3730 = vst [vmem:[%s3658 + $0x228] sm:$0xff] %v3729
                %v3731 = vld [vmem:[%s3657 + $0x120] sm:$0xff]
                %3732 = vst [vmem:[%s3658 + $0x240] sm:$0xff] %v3731
                %v3733 = vld [vmem:[%s3657 + $0x128] sm:$0xff]
                %3734 = vst [vmem:[%s3658 + $0x248] sm:$0xff] %v3733
                %v3735 = vld [vmem:[%s3657 + $0x130] sm:$0xff]
                %3736 = vst [vmem:[%s3658 + $0x260] sm:$0xff] %v3735
                %v3737 = vld [vmem:[%s3657 + $0x138] sm:$0xff]
                %3738 = vst [vmem:[%s3658 + $0x268] sm:$0xff] %v3737
                %v3739 = vld [vmem:[%s3657 + $0x140] sm:$0xff]
                %3740 = vst [vmem:[%s3658 + $0x280] sm:$0xff] %v3739
                %v3741 = vld [vmem:[%s3657 + $0x148] sm:$0xff]
                %3742 = vst [vmem:[%s3658 + $0x288] sm:$0xff] %v3741
                %v3743 = vld [vmem:[%s3657 + $0x150] sm:$0xff]
                %3744 = vst [vmem:[%s3658 + $0x2a0] sm:$0xff] %v3743
                %v3745 = vld [vmem:[%s3657 + $0x158] sm:$0xff]
                %3746 = vst [vmem:[%s3658 + $0x2a8] sm:$0xff] %v3745
                %v3747 = vld [vmem:[%s3657 + $0x160] sm:$0xff]
                %3748 = vst [vmem:[%s3658 + $0x2c0] sm:$0xff] %v3747
                %v3749 = vld [vmem:[%s3657 + $0x168] sm:$0xff]
                %3750 = vst [vmem:[%s3658 + $0x2c8] sm:$0xff] %v3749
                %v3751 = vld [vmem:[%s3657 + $0x170] sm:$0xff]
                %3752 = vst [vmem:[%s3658 + $0x2e0] sm:$0xff] %v3751
                %v3753 = vld [vmem:[%s3657 + $0x178] sm:$0xff]
                %3754 = vst [vmem:[%s3658 + $0x2e8] sm:$0xff] %v3753
                %v3755 = vld [vmem:[%s3657 + $0x180] sm:$0xff]
                %3756 = vst [vmem:[%s3658 + $0x300] sm:$0xff] %v3755
                %v3757 = vld [vmem:[%s3657 + $0x188] sm:$0xff]
                %3758 = vst [vmem:[%s3658 + $0x308] sm:$0xff] %v3757
                %v3759 = vld [vmem:[%s3657 + $0x190] sm:$0xff]
                %3760 = vst [vmem:[%s3658 + $0x320] sm:$0xff] %v3759
                %v3761 = vld [vmem:[%s3657 + $0x198] sm:$0xff]
                %3762 = vst [vmem:[%s3658 + $0x328] sm:$0xff] %v3761
                %v3763 = vld [vmem:[%s3657 + $0x1a0] sm:$0xff]
                %3764 = vst [vmem:[%s3658 + $0x340] sm:$0xff] %v3763
                %v3765 = vld [vmem:[%s3657 + $0x1a8] sm:$0xff]
                %3766 = vst [vmem:[%s3658 + $0x348] sm:$0xff] %v3765
                %v3767 = vld [vmem:[%s3657 + $0x1b0] sm:$0xff]
                %3768 = vst [vmem:[%s3658 + $0x360] sm:$0xff] %v3767
                %v3769 = vld [vmem:[%s3657 + $0x1b8] sm:$0xff]
                %3770 = vst [vmem:[%s3658 + $0x368] sm:$0xff] %v3769
              $region161: #{autoencoder_forward.1} parent=155 // loop_footer
                %s3656 = sadd.s32 1, %s3652
              $region162: #{autoencoder_forward.1} parent=155 // loop_footer_branch
                %3651 = sbr.rel target = $region158
              $region163: #{autoencoder_forward.1} parent=155 // loop_exit
                _
            $region156: #{autoencoder_forward.1} parent=147 // pred_fallthru
              _
          $region148: #{autoencoder_forward.1} parent=143 // pred_fallthru
            _
          %3895 = vnop
        $region144: #{autoencoder_forward.1} parent=97 // pred_fallthru
          _
      $region98: #{autoencoder_forward.1} parent=5 // pred_fallthru
        _
      %p3896 = scmp.le.s32.totalorder 2, %s19
      // Predicated region
      $region179: #{autoencoder_forward.1} parent=5 // pred_check
        %p3897 = pneg %p3896
      $region180: #{autoencoder_forward.1} parent=5 // pred_check_branch
        %3899 = sbr.rel (%p3897) target = $region182
      $region181: #{autoencoder_forward.1} parent=5 // pred_region
        %s3900 = ssub.s32 %s19, 2
        // Predicated region
        $region183: #{autoencoder_forward.1} parent=181 // pred_check
          %p3901 = pneg %p284
        $region184: #{autoencoder_forward.1} parent=181 // pred_check_branch
          %3903 = sbr.rel (%p3901) target = $region186
        $region185: #{autoencoder_forward.1} parent=181 // pred_region
          %s3904 = sand.u32 %s269, 1
          %s3905 = sand.u32 %s269, 1
          %s3906 = smul.addr %s3905, 32
          %s3907 = scalar_lea.vmem [#allocation7], %s3906
        $region186: #{autoencoder_forward.1} parent=181 // pred_fallthru
          _
        // Predicated region
        $region187: #{autoencoder_forward.1} parent=181 // pred_check
          %p3908 = pneg %p310
        $region188: #{autoencoder_forward.1} parent=181 // pred_check_branch
          %3910 = sbr.rel (%p3908) target = $region190
        $region189: #{autoencoder_forward.1} parent=181 // pred_region
          %s3911 = sand.u32 %s295, 1
          %s3912 = sand.u32 %s295, 1
          %s3913 = smul.addr %s3912, 448
          %s3914 = scalar_lea.vmem [#allocation8], %s3913
        $region190: #{autoencoder_forward.1} parent=181 // pred_fallthru
          _
      $region182: #{autoencoder_forward.1} parent=5 // pred_fallthru
        _
    $region6: #{autoencoder_forward.1} parent=1 // loop_footer
      %s23 = sadd.s32 1, %s19
    $region7: #{autoencoder_forward.1} parent=1 // loop_footer_branch
      %18 = sbr.rel target = $region3
    $region8: #{autoencoder_forward.1} parent=1 // loop_exit
      _

</llo_original>
